<compile_context>
chip_gen: v7x
topology: tpu7x:2x2x1
jax: 0.10.0
libtpu: 0.0.40
codegen_flags: <defaults>
</compile_context>

<pallas_src>
import functools
import math

import jax
import jax.numpy as jnp
from jax.experimental import pallas as pl
from jax.experimental.pallas import tpu as pltpu

# ---- config (mirrors Decoder_Condition.__init__) ----
N_LAYERS = 2             # decoder_layer
N_HEAD = 2               # decoder_head
D_MODEL = 32             # decoder_hidden
D_K = D_MODEL // N_HEAD  # = d_v = 16
D_INNER = 64             # conv_filter_size
KERNEL_SIZE = (9, 1)     # conv_kernel_size
MAX_SEQ_LEN = 32         # max_seq_len
STYLE_DIM = 256
LN_EPS = 1e-5
PAD = (KERNEL_SIZE[0] - 1) // 2      # 4


def _decoder_condition_kernel(
    x_ref, kmneg_ref, keep_ref, spk_ref,
    wqkv_ref, bqkv_ref, wo_ref, bo_ref,
    ws1_ref, bs1_ref, c1w_ref, c1b_ref,
    c2w_ref, c2b_ref, ws2_ref, bs2_ref,
    out_ref,
):
    _, S, D = x_ref.shape
    H, DK = N_HEAD, D_K
    K = KERNEL_SIZE[0]

    o = x_ref[...].reshape(S, D)                    # current activations (S, D)
    sbias = kmneg_ref[...].reshape(1, S)            # -1e9 at padded key positions
    keep = keep_ref[...].reshape(S, 1)              # 0.0 at padded rows, else 1.0
    spk = spk_ref[...].reshape(1, STYLE_DIM)
    inv_temp = 1.0 / math.sqrt(DK)
    zpad = jnp.zeros((PAD, D), jnp.float32)

    def cond_ln(v, style):
        gamma = style[:, :D]
        beta = style[:, D:]
        mu = jnp.mean(v, axis=-1, keepdims=True)
        var = jnp.mean(jnp.square(v - mu), axis=-1, keepdims=True)
        return gamma * ((v - mu) * jax.lax.rsqrt(var + LN_EPS)) + beta

    for l in range(N_LAYERS):                       # unrolled 2-layer stack
        # ---------------- multi-head self attention (fused QKV) --------------
        qkv = jnp.dot(o, wqkv_ref[l],
                      preferred_element_type=jnp.float32) + bqkv_ref[l]   # (S, 3D)
        q = qkv[:, :D]
        k = qkv[:, D:2 * D]
        v = qkv[:, 2 * D:]

        ctx_heads = []
        for h in range(H):
            sl = slice(h * DK, (h + 1) * DK)
            s = jnp.dot(q[:, sl], k[:, sl].T,
                        preferred_element_type=jnp.float32) * inv_temp + sbias
            m = jnp.max(s, axis=-1, keepdims=True)
            e = jnp.exp(s - m)
            p = e * pl.reciprocal(jnp.sum(e, axis=-1, keepdims=True), approx=True)
            ctx_heads.append(jnp.dot(p, v[:, sl],
                                     preferred_element_type=jnp.float32))
        ctx = jnp.concatenate(ctx_heads, axis=-1)                         # (S, D)
        o = jnp.dot(ctx, wo_ref[l],
                    preferred_element_type=jnp.float32) + bo_ref[l] + o   # residual

        # ------------- style-conditional layer norm #1 + pad zeroing ---------
        style1 = jnp.dot(spk, ws1_ref[l],
                         preferred_element_type=jnp.float32) + bs1_ref[l]
        o = cond_ln(o, style1) * keep

        # ------------- conv feed-forward (im2col, one contraction-288) -------
        residual = o
        xp = jnp.concatenate([zpad, o, zpad], axis=0)                     # (S+2*PAD, D)
        cols = jnp.concatenate([xp[t:t + S, :] for t in range(K)],
                               axis=-1)                                   # (S, K*D)
        h1 = jnp.dot(cols, c1w_ref[l],
                     preferred_element_type=jnp.float32) + c1b_ref[l]
        h1 = jnp.maximum(h1, 0.0)                                         # ReLU
        h2 = jnp.dot(h1, c2w_ref[l],
                     preferred_element_type=jnp.float32) + c2b_ref[l]
        o = h2 + residual                                                 # residual

        # ------------- style-conditional layer norm #2 + pad zeroing ---------
        style2 = jnp.dot(spk, ws2_ref[l],
                         preferred_element_type=jnp.float32) + bs2_ref[l]
        o = cond_ln(o, style2) * keep

    out_ref[...] = o.reshape(1, S, D)


def _bcast_spec(a):
    zeros = (0,) * a.ndim
    return pl.BlockSpec(a.shape, lambda b, _z=zeros: _z)


def decoder_stack(x, mask_bool, spk, p):
    """Both FFTBlock_CBN layers as a single fused Pallas kernel, grid over batch."""
    B, S, D = x.shape
    mask_f = mask_bool.astype(jnp.float32)
    kmask_neg = (mask_f * -1e9).reshape(B, 1, S)      # key-axis bias (lane layout)
    keep = (1.0 - mask_f).reshape(B, S, 1)            # row-axis keep (sublane layout)
    spk3 = spk.reshape(B, 1, STYLE_DIM)

    weight_args = (p['wqkv'], p['bqkv'], p['wo'], p['bo'],
                   p['ws1'], p['bs1'], p['c1w'], p['c1b'],
                   p['c2w'], p['c2b'], p['ws2'], p['bs2'])

    in_specs = [
        pl.BlockSpec((1, S, D), lambda b: (b, 0, 0)),
        pl.BlockSpec((1, 1, S), lambda b: (b, 0, 0)),
        pl.BlockSpec((1, S, 1), lambda b: (b, 0, 0)),
        pl.BlockSpec((1, 1, STYLE_DIM), lambda b: (b, 0, 0)),
    ] + [_bcast_spec(a) for a in weight_args]

    return pl.pallas_call(
        _decoder_condition_kernel,
        out_shape=jax.ShapeDtypeStruct((B, S, D), jnp.float32),
        grid=(B,),
        in_specs=in_specs,
        out_specs=pl.BlockSpec((1, S, D), lambda b: (b, 0, 0)),
        compiler_params=pltpu.CompilerParams(
            dimension_semantics=("parallel",)),     # v7x: one batch per TensorCore
    )(x, kmask_neg, keep, spk3, *weight_args)


@functools.partial(jax.jit, static_argnames=("max_seq_len", "training"))
def decoder_condition_forward(enc_seq, mask, spk, params,
                              max_seq_len=MAX_SEQ_LEN, training=False):
    """Mirrors Decoder_Condition.forward (return_attns=False, spk is not None)."""
    B, L, D = enc_seq.shape
    if (not training) and L > max_seq_len:
        dec_output = enc_seq
        mask_s = mask
    else:
        max_len = min(L, max_seq_len)
        dec_output = enc_seq[:, :max_len, :]
        mask_s = mask[:, :max_len]
    dec_output = decoder_stack(dec_output, mask_s, spk, params)
    return dec_output, mask_s


def init_params(key):
    def nrm(k, shape, fan_in):
        return jax.random.normal(k, shape, jnp.float32) / jnp.sqrt(float(fan_in))

    per_layer = []
    for _ in range(N_LAYERS):
        key, *ks = jax.random.split(key, 9)
        saln_bias = jnp.concatenate(
            [jnp.ones((1, D_MODEL), jnp.float32),
             jnp.zeros((1, D_MODEL), jnp.float32)], axis=-1)
        per_layer.append(dict(
            # fused q|k|v projection, stored (in, out) for x @ W
            wqkv=jnp.concatenate(
                [nrm(ks[0], (D_MODEL, N_HEAD * D_K), D_MODEL),
                 nrm(ks[1], (D_MODEL, N_HEAD * D_K), D_MODEL),
                 nrm(ks[2], (D_MODEL, N_HEAD * D_K), D_MODEL)], axis=-1),
            bqkv=jnp.zeros((1, 3 * D_MODEL), jnp.float32),
            wo=nrm(ks[3], (N_HEAD * D_K, D_MODEL), N_HEAD * D_K),
            bo=jnp.zeros((1, D_MODEL), jnp.float32),
            # style-conditional LN: (gamma;beta) = spk @ ws + bs
            ws1=nrm(ks[4], (STYLE_DIM, 2 * D_MODEL), STYLE_DIM),
            bs1=saln_bias,
            # conv1 (k=9) stored in im2col layout: (K*D_MODEL, D_INNER),
            # row (k*D + c) corresponds to PyTorch weight[out, c, k]
            c1w=nrm(ks[5], (KERNEL_SIZE[0] * D_MODEL, D_INNER),
                    D_MODEL * KERNEL_SIZE[0]),
            c1b=jnp.zeros((1, D_INNER), jnp.float32),
            # conv2 (k=1) -> pointwise (D_INNER, D_MODEL)
            c2w=nrm(ks[6], (D_INNER, D_MODEL), D_INNER * KERNEL_SIZE[1]),
            c2b=jnp.zeros((1, D_MODEL), jnp.float32),
            ws2=nrm(ks[7], (STYLE_DIM, 2 * D_MODEL), STYLE_DIM),
            bs2=saln_bias,
        ))
    # stack per-layer weights on a leading axis so both layers live in one kernel
    return {k: jnp.stack([lp[k] for lp in per_layer], axis=0)
            for k in per_layer[0]}


if __name__ == "__main__":
    key = jax.random.PRNGKey(0)
    k_x, k_spk, k_p = jax.random.split(key, 3)

    B, S = 2, 16
    enc_seq = jax.random.normal(k_x, (B, S, D_MODEL), jnp.float32)
    spk = jax.random.normal(k_spk, (B, STYLE_DIM), jnp.float32)
    lengths = jnp.array([S, S - 4])
    mask = jnp.arange(S)[None, :] >= lengths[:, None]   # True where padded

    params = init_params(k_p)

    dec_out, out_mask = decoder_condition_forward(enc_seq, mask, spk, params)
    jax.block_until_ready(dec_out)

    assert dec_out.shape == (B, S, D_MODEL)
    assert out_mask.shape == (B, S)
    assert bool(jnp.all(jnp.isfinite(dec_out)))
    # padded rows must be zeroed by the final masked_fill
    assert bool(jnp.all(jnp.abs(dec_out[1, S - 4:, :]) == 0.0))
    print("KERNEL_OK")
</pallas_src>

<mosaic_0001>
module attributes {stable_mosaic.version = 11 : i64} {
  func.func @_decoder_condition_kernel(%arg0: i32, %arg1: memref<1x16x32xf32, #tpu.memory_space<vmem>>, %arg2: memref<1x1x16xf32, #tpu.memory_space<vmem>>, %arg3: memref<1x16x1xf32, #tpu.memory_space<vmem>>, %arg4: memref<1x1x256xf32, #tpu.memory_space<vmem>>, %arg5: memref<2x32x96xf32, #tpu.memory_space<vmem>>, %arg6: memref<2x1x96xf32, #tpu.memory_space<vmem>>, %arg7: memref<2x32x32xf32, #tpu.memory_space<vmem>>, %arg8: memref<2x1x32xf32, #tpu.memory_space<vmem>>, %arg9: memref<2x256x64xf32, #tpu.memory_space<vmem>>, %arg10: memref<2x1x64xf32, #tpu.memory_space<vmem>>, %arg11: memref<2x288x64xf32, #tpu.memory_space<vmem>>, %arg12: memref<2x1x64xf32, #tpu.memory_space<vmem>>, %arg13: memref<2x64x32xf32, #tpu.memory_space<vmem>>, %arg14: memref<2x1x32xf32, #tpu.memory_space<vmem>>, %arg15: memref<2x256x64xf32, #tpu.memory_space<vmem>>, %arg16: memref<2x1x64xf32, #tpu.memory_space<vmem>>, %arg17: memref<1x16x32xf32, #tpu.memory_space<vmem>>) attributes {dimension_semantics = [#tpu.dimension_semantics<parallel>], iteration_bounds = array<i64: 2>, scalar_prefetch = 0 : i64, scratch_operands = 0 : i64, tpu.core_type = #tpu.core_type<tc>, window_params = [{transform_indices = @transform_0, window_bounds = array<i64: 1, 16, 32>}, {transform_indices = @transform_1, window_bounds = array<i64: 1, 1, 16>}, {transform_indices = @transform_2, window_bounds = array<i64: 1, 16, 1>}, {transform_indices = @transform_3, window_bounds = array<i64: 1, 1, 256>}, {pipeline_mode = #tpu.pipeline_mode<synchronous>, transform_indices = @transform_4, window_bounds = array<i64: 2, 32, 96>}, {pipeline_mode = #tpu.pipeline_mode<synchronous>, transform_indices = @transform_5, window_bounds = array<i64: 2, 1, 96>}, {pipeline_mode = #tpu.pipeline_mode<synchronous>, transform_indices = @transform_6, window_bounds = array<i64: 2, 32, 32>}, {pipeline_mode = #tpu.pipeline_mode<synchronous>, transform_indices = @transform_7, window_bounds = array<i64: 2, 1, 32>}, {pipeline_mode = #tpu.pipeline_mode<synchronous>, transform_indices = @transform_8, window_bounds = array<i64: 2, 256, 64>}, {pipeline_mode = #tpu.pipeline_mode<synchronous>, transform_indices = @transform_9, window_bounds = array<i64: 2, 1, 64>}, {pipeline_mode = #tpu.pipeline_mode<synchronous>, transform_indices = @transform_10, window_bounds = array<i64: 2, 288, 64>}, {pipeline_mode = #tpu.pipeline_mode<synchronous>, transform_indices = @transform_11, window_bounds = array<i64: 2, 1, 64>}, {pipeline_mode = #tpu.pipeline_mode<synchronous>, transform_indices = @transform_12, window_bounds = array<i64: 2, 64, 32>}, {pipeline_mode = #tpu.pipeline_mode<synchronous>, transform_indices = @transform_13, window_bounds = array<i64: 2, 1, 32>}, {pipeline_mode = #tpu.pipeline_mode<synchronous>, transform_indices = @transform_14, window_bounds = array<i64: 2, 256, 64>}, {pipeline_mode = #tpu.pipeline_mode<synchronous>, transform_indices = @transform_15, window_bounds = array<i64: 2, 1, 64>}, {transform_indices = @transform_16, window_bounds = array<i64: 1, 16, 32>}]} {
    %c0 = arith.constant 0 : index
    %c0_0 = arith.constant 0 : index
    %c0_1 = arith.constant 0 : index
    %0 = vector.load %arg1[%c0, %c0_0, %c0_1] : memref<1x16x32xf32, #tpu.memory_space<vmem>>, vector<1x16x32xf32>
    %1 = vector.shape_cast %0 : vector<1x16x32xf32> to vector<16x32xf32>
    %c0_2 = arith.constant 0 : index
    %c0_3 = arith.constant 0 : index
    %c0_4 = arith.constant 0 : index
    %2 = vector.load %arg2[%c0_2, %c0_3, %c0_4] : memref<1x1x16xf32, #tpu.memory_space<vmem>>, vector<1x1x16xf32>
    %3 = vector.shape_cast %2 : vector<1x1x16xf32> to vector<1x16xf32>
    %c0_5 = arith.constant 0 : index
    %c0_6 = arith.constant 0 : index
    %c0_7 = arith.constant 0 : index
    %4 = vector.load %arg3[%c0_5, %c0_6, %c0_7] : memref<1x16x1xf32, #tpu.memory_space<vmem>>, vector<1x16x1xf32>
    %5 = vector.shape_cast %4 : vector<1x16x1xf32> to vector<16x1xf32>
    %c0_8 = arith.constant 0 : index
    %c0_9 = arith.constant 0 : index
    %c0_10 = arith.constant 0 : index
    %6 = vector.load %arg4[%c0_8, %c0_9, %c0_10] : memref<1x1x256xf32, #tpu.memory_space<vmem>>, vector<1x1x256xf32>
    %7 = vector.shape_cast %6 : vector<1x1x256xf32> to vector<1x256xf32>
    %cst = arith.constant 0.000000e+00 : f32
    %8 = vector.broadcast %cst : f32 to vector<4x32xf32>
    %c0_11 = arith.constant 0 : index
    %c0_12 = arith.constant 0 : index
    %c0_13 = arith.constant 0 : index
    %9 = vector.load %arg5[%c0_11, %c0_12, %c0_13] : memref<2x32x96xf32, #tpu.memory_space<vmem>>, vector<1x32x96xf32>
    %10 = vector.shape_cast %9 : vector<1x32x96xf32> to vector<32x96xf32>
    %cst_14 = arith.constant dense<0.000000e+00> : vector<16x96xf32>
    %11 = tpu.matmul %1, %10, %cst_14 {dimension_numbers = #tpu.dot_dimension_numbers<[1], [0], [0], [1], [0, 0, 1, 1], [], []>} : vector<16x32xf32>, vector<32x96xf32>, vector<16x96xf32> -> vector<16x96xf32>
    %c0_15 = arith.constant 0 : index
    %c0_16 = arith.constant 0 : index
    %c0_17 = arith.constant 0 : index
    %12 = vector.load %arg6[%c0_15, %c0_16, %c0_17] : memref<2x1x96xf32, #tpu.memory_space<vmem>>, vector<1x1x96xf32>
    %13 = vector.shape_cast %12 : vector<1x1x96xf32> to vector<1x96xf32>
    %14 = vector.broadcast %13 : vector<1x96xf32> to vector<16x96xf32>
    %15 = arith.addf %11, %14 : vector<16x96xf32>
    %16 = vector.extract_strided_slice %15 {offsets = [0, 0], sizes = [16, 32], strides = [1, 1]} : vector<16x96xf32> to vector<16x32xf32>
    %17 = vector.extract_strided_slice %15 {offsets = [0, 32], sizes = [16, 32], strides = [1, 1]} : vector<16x96xf32> to vector<16x32xf32>
    %18 = vector.extract_strided_slice %15 {offsets = [0, 64], sizes = [16, 32], strides = [1, 1]} : vector<16x96xf32> to vector<16x32xf32>
    %19 = vector.extract_strided_slice %16 {offsets = [0, 0], sizes = [16, 16], strides = [1, 1]} : vector<16x32xf32> to vector<16x16xf32>
    %20 = vector.extract_strided_slice %17 {offsets = [0, 0], sizes = [16, 16], strides = [1, 1]} : vector<16x32xf32> to vector<16x16xf32>
    %21 = tpu.transpose %20, [1, 0] : vector<16x16xf32> -> vector<16x16xf32>
    %cst_18 = arith.constant dense<0.000000e+00> : vector<16x16xf32>
    %22 = tpu.matmul %19, %21, %cst_18 {dimension_numbers = #tpu.dot_dimension_numbers<[1], [0], [0], [1], [0, 0, 1, 1], [], []>} : vector<16x16xf32>, vector<16x16xf32>, vector<16x16xf32> -> vector<16x16xf32>
    %cst_19 = arith.constant 2.500000e-01 : f32
    %23 = vector.broadcast %cst_19 : f32 to vector<16x16xf32>
    %24 = arith.mulf %22, %23 : vector<16x16xf32>
    %25 = vector.broadcast %3 : vector<1x16xf32> to vector<16x16xf32>
    %26 = arith.addf %24, %25 : vector<16x16xf32>
    %cst_20 = arith.constant dense<0xFF800000> : vector<16xf32>
    %27 = vector.multi_reduction <maximumf>, %26, %cst_20 [1] : vector<16x16xf32> to vector<16xf32>
    %28 = vector.shape_cast %27 : vector<16xf32> to vector<16x1xf32>
    %29 = vector.broadcast %28 : vector<16x1xf32> to vector<16x16xf32>
    %30 = arith.subf %26, %29 : vector<16x16xf32>
    %31 = math.exp %30 : vector<16x16xf32>
    %cst_21 = arith.constant dense<0.000000e+00> : vector<16xf32>
    %32 = vector.multi_reduction <add>, %31, %cst_21 [1] : vector<16x16xf32> to vector<16xf32>
    %33 = vector.shape_cast %32 : vector<16xf32> to vector<16x1xf32>
    %34 = tpu.reciprocal %33 {approx = true} : vector<16x1xf32> -> vector<16x1xf32>
    %35 = vector.broadcast %34 : vector<16x1xf32> to vector<16x16xf32>
    %36 = arith.mulf %31, %35 : vector<16x16xf32>
    %37 = vector.extract_strided_slice %18 {offsets = [0, 0], sizes = [16, 16], strides = [1, 1]} : vector<16x32xf32> to vector<16x16xf32>
    %cst_22 = arith.constant dense<0.000000e+00> : vector<16x16xf32>
    %38 = tpu.matmul %36, %37, %cst_22 {dimension_numbers = #tpu.dot_dimension_numbers<[1], [0], [0], [1], [0, 0, 1, 1], [], []>} : vector<16x16xf32>, vector<16x16xf32>, vector<16x16xf32> -> vector<16x16xf32>
    %39 = vector.extract_strided_slice %16 {offsets = [0, 16], sizes = [16, 16], strides = [1, 1]} : vector<16x32xf32> to vector<16x16xf32>
    %40 = vector.extract_strided_slice %17 {offsets = [0, 16], sizes = [16, 16], strides = [1, 1]} : vector<16x32xf32> to vector<16x16xf32>
    %41 = tpu.transpose %40, [1, 0] : vector<16x16xf32> -> vector<16x16xf32>
    %cst_23 = arith.constant dense<0.000000e+00> : vector<16x16xf32>
    %42 = tpu.matmul %39, %41, %cst_23 {dimension_numbers = #tpu.dot_dimension_numbers<[1], [0], [0], [1], [0, 0, 1, 1], [], []>} : vector<16x16xf32>, vector<16x16xf32>, vector<16x16xf32> -> vector<16x16xf32>
    %cst_24 = arith.constant 2.500000e-01 : f32
    %43 = vector.broadcast %cst_24 : f32 to vector<16x16xf32>
    %44 = arith.mulf %42, %43 : vector<16x16xf32>
    %45 = vector.broadcast %3 : vector<1x16xf32> to vector<16x16xf32>
    %46 = arith.addf %44, %45 : vector<16x16xf32>
    %cst_25 = arith.constant dense<0xFF800000> : vector<16xf32>
    %47 = vector.multi_reduction <maximumf>, %46, %cst_25 [1] : vector<16x16xf32> to vector<16xf32>
    %48 = vector.shape_cast %47 : vector<16xf32> to vector<16x1xf32>
    %49 = vector.broadcast %48 : vector<16x1xf32> to vector<16x16xf32>
    %50 = arith.subf %46, %49 : vector<16x16xf32>
    %51 = math.exp %50 : vector<16x16xf32>
    %cst_26 = arith.constant dense<0.000000e+00> : vector<16xf32>
    %52 = vector.multi_reduction <add>, %51, %cst_26 [1] : vector<16x16xf32> to vector<16xf32>
    %53 = vector.shape_cast %52 : vector<16xf32> to vector<16x1xf32>
    %54 = tpu.reciprocal %53 {approx = true} : vector<16x1xf32> -> vector<16x1xf32>
    %55 = vector.broadcast %54 : vector<16x1xf32> to vector<16x16xf32>
    %56 = arith.mulf %51, %55 : vector<16x16xf32>
    %57 = vector.extract_strided_slice %18 {offsets = [0, 16], sizes = [16, 16], strides = [1, 1]} : vector<16x32xf32> to vector<16x16xf32>
    %cst_27 = arith.constant dense<0.000000e+00> : vector<16x16xf32>
    %58 = tpu.matmul %56, %57, %cst_27 {dimension_numbers = #tpu.dot_dimension_numbers<[1], [0], [0], [1], [0, 0, 1, 1], [], []>} : vector<16x16xf32>, vector<16x16xf32>, vector<16x16xf32> -> vector<16x16xf32>
    %59 = tpu.concatenate %38, %58 in 1 : vector<16x16xf32>, vector<16x16xf32> -> vector<16x32xf32>
    %c0_28 = arith.constant 0 : index
    %c0_29 = arith.constant 0 : index
    %c0_30 = arith.constant 0 : index
    %60 = vector.load %arg7[%c0_28, %c0_29, %c0_30] : memref<2x32x32xf32, #tpu.memory_space<vmem>>, vector<1x32x32xf32>
    %61 = vector.shape_cast %60 : vector<1x32x32xf32> to vector<32x32xf32>
    %cst_31 = arith.constant dense<0.000000e+00> : vector<16x32xf32>
    %62 = tpu.matmul %59, %61, %cst_31 {dimension_numbers = #tpu.dot_dimension_numbers<[1], [0], [0], [1], [0, 0, 1, 1], [], []>} : vector<16x32xf32>, vector<32x32xf32>, vector<16x32xf32> -> vector<16x32xf32>
    %c0_32 = arith.constant 0 : index
    %c0_33 = arith.constant 0 : index
    %c0_34 = arith.constant 0 : index
    %63 = vector.load %arg8[%c0_32, %c0_33, %c0_34] : memref<2x1x32xf32, #tpu.memory_space<vmem>>, vector<1x1x32xf32>
    %64 = vector.shape_cast %63 : vector<1x1x32xf32> to vector<1x32xf32>
    %65 = vector.broadcast %64 : vector<1x32xf32> to vector<16x32xf32>
    %66 = arith.addf %62, %65 : vector<16x32xf32>
    %67 = arith.addf %66, %1 : vector<16x32xf32>
    %c0_35 = arith.constant 0 : index
    %c0_36 = arith.constant 0 : index
    %c0_37 = arith.constant 0 : index
    %68 = vector.load %arg9[%c0_35, %c0_36, %c0_37] : memref<2x256x64xf32, #tpu.memory_space<vmem>>, vector<1x256x64xf32>
    %69 = vector.shape_cast %68 : vector<1x256x64xf32> to vector<256x64xf32>
    %cst_38 = arith.constant dense<0.000000e+00> : vector<1x64xf32>
    %70 = tpu.matmul %7, %69, %cst_38 {dimension_numbers = #tpu.dot_dimension_numbers<[1], [0], [0], [1], [0, 0, 1, 1], [], []>} : vector<1x256xf32>, vector<256x64xf32>, vector<1x64xf32> -> vector<1x64xf32>
    %c0_39 = arith.constant 0 : index
    %c0_40 = arith.constant 0 : index
    %c0_41 = arith.constant 0 : index
    %71 = vector.load %arg10[%c0_39, %c0_40, %c0_41] : memref<2x1x64xf32, #tpu.memory_space<vmem>>, vector<1x1x64xf32>
    %72 = vector.shape_cast %71 : vector<1x1x64xf32> to vector<1x64xf32>
    %73 = arith.addf %70, %72 : vector<1x64xf32>
    %74 = vector.extract_strided_slice %73 {offsets = [0, 0], sizes = [1, 32], strides = [1, 1]} : vector<1x64xf32> to vector<1x32xf32>
    %75 = vector.extract_strided_slice %73 {offsets = [0, 32], sizes = [1, 32], strides = [1, 1]} : vector<1x64xf32> to vector<1x32xf32>
    %cst_42 = arith.constant dense<0.000000e+00> : vector<16xf32>
    %76 = vector.multi_reduction <add>, %67, %cst_42 [1] : vector<16x32xf32> to vector<16xf32>
    %77 = vector.shape_cast %76 : vector<16xf32> to vector<16x1xf32>
    %cst_43 = arith.constant 3.200000e+01 : f32
    %78 = vector.broadcast %cst_43 : f32 to vector<16x1xf32>
    %79 = arith.divf %77, %78 : vector<16x1xf32>
    %80 = vector.broadcast %79 : vector<16x1xf32> to vector<16x32xf32>
    %81 = arith.subf %67, %80 : vector<16x32xf32>
    %82 = arith.mulf %81, %81 : vector<16x32xf32>
    %cst_44 = arith.constant dense<0.000000e+00> : vector<16xf32>
    %83 = vector.multi_reduction <add>, %82, %cst_44 [1] : vector<16x32xf32> to vector<16xf32>
    %84 = vector.shape_cast %83 : vector<16xf32> to vector<16x1xf32>
    %cst_45 = arith.constant 3.200000e+01 : f32
    %85 = vector.broadcast %cst_45 : f32 to vector<16x1xf32>
    %86 = arith.divf %84, %85 : vector<16x1xf32>
    %87 = vector.broadcast %79 : vector<16x1xf32> to vector<16x32xf32>
    %88 = arith.subf %67, %87 : vector<16x32xf32>
    %cst_46 = arith.constant 9.99999974E-6 : f32
    %89 = vector.broadcast %cst_46 : f32 to vector<16x1xf32>
    %90 = arith.addf %86, %89 : vector<16x1xf32>
    %91 = math.rsqrt %90 : vector<16x1xf32>
    %92 = vector.broadcast %91 : vector<16x1xf32> to vector<16x32xf32>
    %93 = arith.mulf %88, %92 : vector<16x32xf32>
    %94 = vector.broadcast %74 : vector<1x32xf32> to vector<16x32xf32>
    %95 = arith.mulf %94, %93 : vector<16x32xf32>
    %96 = vector.broadcast %75 : vector<1x32xf32> to vector<16x32xf32>
    %97 = arith.addf %95, %96 : vector<16x32xf32>
    %98 = vector.broadcast %5 : vector<16x1xf32> to vector<16x32xf32>
    %99 = arith.mulf %97, %98 : vector<16x32xf32>
    %100 = tpu.concatenate %8, %99, %8 in 0 : vector<4x32xf32>, vector<16x32xf32>, vector<4x32xf32> -> vector<24x32xf32>
    %101 = vector.extract_strided_slice %100 {offsets = [0, 0], sizes = [16, 32], strides = [1, 1]} : vector<24x32xf32> to vector<16x32xf32>
    %102 = vector.extract_strided_slice %100 {offsets = [1, 0], sizes = [16, 32], strides = [1, 1]} : vector<24x32xf32> to vector<16x32xf32>
    %103 = vector.extract_strided_slice %100 {offsets = [2, 0], sizes = [16, 32], strides = [1, 1]} : vector<24x32xf32> to vector<16x32xf32>
    %104 = vector.extract_strided_slice %100 {offsets = [3, 0], sizes = [16, 32], strides = [1, 1]} : vector<24x32xf32> to vector<16x32xf32>
    %105 = vector.extract_strided_slice %100 {offsets = [4, 0], sizes = [16, 32], strides = [1, 1]} : vector<24x32xf32> to vector<16x32xf32>
    %106 = vector.extract_strided_slice %100 {offsets = [5, 0], sizes = [16, 32], strides = [1, 1]} : vector<24x32xf32> to vector<16x32xf32>
    %107 = vector.extract_strided_slice %100 {offsets = [6, 0], sizes = [16, 32], strides = [1, 1]} : vector<24x32xf32> to vector<16x32xf32>
    %108 = vector.extract_strided_slice %100 {offsets = [7, 0], sizes = [16, 32], strides = [1, 1]} : vector<24x32xf32> to vector<16x32xf32>
    %109 = vector.extract_strided_slice %100 {offsets = [8, 0], sizes = [16, 32], strides = [1, 1]} : vector<24x32xf32> to vector<16x32xf32>
    %110 = tpu.concatenate %101, %102, %103, %104, %105, %106, %107, %108, %109 in 1 : vector<16x32xf32>, vector<16x32xf32>, vector<16x32xf32>, vector<16x32xf32>, vector<16x32xf32>, vector<16x32xf32>, vector<16x32xf32>, vector<16x32xf32>, vector<16x32xf32> -> vector<16x288xf32>
    %c0_47 = arith.constant 0 : index
    %c0_48 = arith.constant 0 : index
    %c0_49 = arith.constant 0 : index
    %111 = vector.load %arg11[%c0_47, %c0_48, %c0_49] : memref<2x288x64xf32, #tpu.memory_space<vmem>>, vector<1x288x64xf32>
    %112 = vector.shape_cast %111 : vector<1x288x64xf32> to vector<288x64xf32>
    %cst_50 = arith.constant dense<0.000000e+00> : vector<16x64xf32>
    %113 = tpu.matmul %110, %112, %cst_50 {dimension_numbers = #tpu.dot_dimension_numbers<[1], [0], [0], [1], [0, 0, 1, 1], [], []>} : vector<16x288xf32>, vector<288x64xf32>, vector<16x64xf32> -> vector<16x64xf32>
    %c0_51 = arith.constant 0 : index
    %c0_52 = arith.constant 0 : index
    %c0_53 = arith.constant 0 : index
    %114 = vector.load %arg12[%c0_51, %c0_52, %c0_53] : memref<2x1x64xf32, #tpu.memory_space<vmem>>, vector<1x1x64xf32>
    %115 = vector.shape_cast %114 : vector<1x1x64xf32> to vector<1x64xf32>
    %116 = vector.broadcast %115 : vector<1x64xf32> to vector<16x64xf32>
    %117 = arith.addf %113, %116 : vector<16x64xf32>
    %cst_54 = arith.constant 0.000000e+00 : f32
    %118 = vector.broadcast %cst_54 : f32 to vector<16x64xf32>
    %119 = arith.maximumf %117, %118 : vector<16x64xf32>
    %c0_55 = arith.constant 0 : index
    %c0_56 = arith.constant 0 : index
    %c0_57 = arith.constant 0 : index
    %120 = vector.load %arg13[%c0_55, %c0_56, %c0_57] : memref<2x64x32xf32, #tpu.memory_space<vmem>>, vector<1x64x32xf32>
    %121 = vector.shape_cast %120 : vector<1x64x32xf32> to vector<64x32xf32>
    %cst_58 = arith.constant dense<0.000000e+00> : vector<16x32xf32>
    %122 = tpu.matmul %119, %121, %cst_58 {dimension_numbers = #tpu.dot_dimension_numbers<[1], [0], [0], [1], [0, 0, 1, 1], [], []>} : vector<16x64xf32>, vector<64x32xf32>, vector<16x32xf32> -> vector<16x32xf32>
    %c0_59 = arith.constant 0 : index
    %c0_60 = arith.constant 0 : index
    %c0_61 = arith.constant 0 : index
    %123 = vector.load %arg14[%c0_59, %c0_60, %c0_61] : memref<2x1x32xf32, #tpu.memory_space<vmem>>, vector<1x1x32xf32>
    %124 = vector.shape_cast %123 : vector<1x1x32xf32> to vector<1x32xf32>
    %125 = vector.broadcast %124 : vector<1x32xf32> to vector<16x32xf32>
    %126 = arith.addf %122, %125 : vector<16x32xf32>
    %127 = arith.addf %126, %99 : vector<16x32xf32>
    %c0_62 = arith.constant 0 : index
    %c0_63 = arith.constant 0 : index
    %c0_64 = arith.constant 0 : index
    %128 = vector.load %arg15[%c0_62, %c0_63, %c0_64] : memref<2x256x64xf32, #tpu.memory_space<vmem>>, vector<1x256x64xf32>
    %129 = vector.shape_cast %128 : vector<1x256x64xf32> to vector<256x64xf32>
    %cst_65 = arith.constant dense<0.000000e+00> : vector<1x64xf32>
    %130 = tpu.matmul %7, %129, %cst_65 {dimension_numbers = #tpu.dot_dimension_numbers<[1], [0], [0], [1], [0, 0, 1, 1], [], []>} : vector<1x256xf32>, vector<256x64xf32>, vector<1x64xf32> -> vector<1x64xf32>
    %c0_66 = arith.constant 0 : index
    %c0_67 = arith.constant 0 : index
    %c0_68 = arith.constant 0 : index
    %131 = vector.load %arg16[%c0_66, %c0_67, %c0_68] : memref<2x1x64xf32, #tpu.memory_space<vmem>>, vector<1x1x64xf32>
    %132 = vector.shape_cast %131 : vector<1x1x64xf32> to vector<1x64xf32>
    %133 = arith.addf %130, %132 : vector<1x64xf32>
    %134 = vector.extract_strided_slice %133 {offsets = [0, 0], sizes = [1, 32], strides = [1, 1]} : vector<1x64xf32> to vector<1x32xf32>
    %135 = vector.extract_strided_slice %133 {offsets = [0, 32], sizes = [1, 32], strides = [1, 1]} : vector<1x64xf32> to vector<1x32xf32>
    %cst_69 = arith.constant dense<0.000000e+00> : vector<16xf32>
    %136 = vector.multi_reduction <add>, %127, %cst_69 [1] : vector<16x32xf32> to vector<16xf32>
    %137 = vector.shape_cast %136 : vector<16xf32> to vector<16x1xf32>
    %cst_70 = arith.constant 3.200000e+01 : f32
    %138 = vector.broadcast %cst_70 : f32 to vector<16x1xf32>
    %139 = arith.divf %137, %138 : vector<16x1xf32>
    %140 = vector.broadcast %139 : vector<16x1xf32> to vector<16x32xf32>
    %141 = arith.subf %127, %140 : vector<16x32xf32>
    %142 = arith.mulf %141, %141 : vector<16x32xf32>
    %cst_71 = arith.constant dense<0.000000e+00> : vector<16xf32>
    %143 = vector.multi_reduction <add>, %142, %cst_71 [1] : vector<16x32xf32> to vector<16xf32>
    %144 = vector.shape_cast %143 : vector<16xf32> to vector<16x1xf32>
    %cst_72 = arith.constant 3.200000e+01 : f32
    %145 = vector.broadcast %cst_72 : f32 to vector<16x1xf32>
    %146 = arith.divf %144, %145 : vector<16x1xf32>
    %147 = vector.broadcast %139 : vector<16x1xf32> to vector<16x32xf32>
    %148 = arith.subf %127, %147 : vector<16x32xf32>
    %cst_73 = arith.constant 9.99999974E-6 : f32
    %149 = vector.broadcast %cst_73 : f32 to vector<16x1xf32>
    %150 = arith.addf %146, %149 : vector<16x1xf32>
    %151 = math.rsqrt %150 : vector<16x1xf32>
    %152 = vector.broadcast %151 : vector<16x1xf32> to vector<16x32xf32>
    %153 = arith.mulf %148, %152 : vector<16x32xf32>
    %154 = vector.broadcast %134 : vector<1x32xf32> to vector<16x32xf32>
    %155 = arith.mulf %154, %153 : vector<16x32xf32>
    %156 = vector.broadcast %135 : vector<1x32xf32> to vector<16x32xf32>
    %157 = arith.addf %155, %156 : vector<16x32xf32>
    %158 = vector.broadcast %5 : vector<16x1xf32> to vector<16x32xf32>
    %159 = arith.mulf %157, %158 : vector<16x32xf32>
    %c1 = arith.constant 1 : index
    %c0_74 = arith.constant 0 : index
    %c0_75 = arith.constant 0 : index
    %160 = vector.load %arg5[%c1, %c0_74, %c0_75] : memref<2x32x96xf32, #tpu.memory_space<vmem>>, vector<1x32x96xf32>
    %161 = vector.shape_cast %160 : vector<1x32x96xf32> to vector<32x96xf32>
    %cst_76 = arith.constant dense<0.000000e+00> : vector<16x96xf32>
    %162 = tpu.matmul %159, %161, %cst_76 {dimension_numbers = #tpu.dot_dimension_numbers<[1], [0], [0], [1], [0, 0, 1, 1], [], []>} : vector<16x32xf32>, vector<32x96xf32>, vector<16x96xf32> -> vector<16x96xf32>
    %c1_77 = arith.constant 1 : index
    %c0_78 = arith.constant 0 : index
    %c0_79 = arith.constant 0 : index
    %163 = vector.load %arg6[%c1_77, %c0_78, %c0_79] : memref<2x1x96xf32, #tpu.memory_space<vmem>>, vector<1x1x96xf32>
    %164 = vector.shape_cast %163 : vector<1x1x96xf32> to vector<1x96xf32>
    %165 = vector.broadcast %164 : vector<1x96xf32> to vector<16x96xf32>
    %166 = arith.addf %162, %165 : vector<16x96xf32>
    %167 = vector.extract_strided_slice %166 {offsets = [0, 0], sizes = [16, 32], strides = [1, 1]} : vector<16x96xf32> to vector<16x32xf32>
    %168 = vector.extract_strided_slice %166 {offsets = [0, 32], sizes = [16, 32], strides = [1, 1]} : vector<16x96xf32> to vector<16x32xf32>
    %169 = vector.extract_strided_slice %166 {offsets = [0, 64], sizes = [16, 32], strides = [1, 1]} : vector<16x96xf32> to vector<16x32xf32>
    %170 = vector.extract_strided_slice %167 {offsets = [0, 0], sizes = [16, 16], strides = [1, 1]} : vector<16x32xf32> to vector<16x16xf32>
    %171 = vector.extract_strided_slice %168 {offsets = [0, 0], sizes = [16, 16], strides = [1, 1]} : vector<16x32xf32> to vector<16x16xf32>
    %172 = tpu.transpose %171, [1, 0] : vector<16x16xf32> -> vector<16x16xf32>
    %cst_80 = arith.constant dense<0.000000e+00> : vector<16x16xf32>
    %173 = tpu.matmul %170, %172, %cst_80 {dimension_numbers = #tpu.dot_dimension_numbers<[1], [0], [0], [1], [0, 0, 1, 1], [], []>} : vector<16x16xf32>, vector<16x16xf32>, vector<16x16xf32> -> vector<16x16xf32>
    %cst_81 = arith.constant 2.500000e-01 : f32
    %174 = vector.broadcast %cst_81 : f32 to vector<16x16xf32>
    %175 = arith.mulf %173, %174 : vector<16x16xf32>
    %176 = vector.broadcast %3 : vector<1x16xf32> to vector<16x16xf32>
    %177 = arith.addf %175, %176 : vector<16x16xf32>
    %cst_82 = arith.constant dense<0xFF800000> : vector<16xf32>
    %178 = vector.multi_reduction <maximumf>, %177, %cst_82 [1] : vector<16x16xf32> to vector<16xf32>
    %179 = vector.shape_cast %178 : vector<16xf32> to vector<16x1xf32>
    %180 = vector.broadcast %179 : vector<16x1xf32> to vector<16x16xf32>
    %181 = arith.subf %177, %180 : vector<16x16xf32>
    %182 = math.exp %181 : vector<16x16xf32>
    %cst_83 = arith.constant dense<0.000000e+00> : vector<16xf32>
    %183 = vector.multi_reduction <add>, %182, %cst_83 [1] : vector<16x16xf32> to vector<16xf32>
    %184 = vector.shape_cast %183 : vector<16xf32> to vector<16x1xf32>
    %185 = tpu.reciprocal %184 {approx = true} : vector<16x1xf32> -> vector<16x1xf32>
    %186 = vector.broadcast %185 : vector<16x1xf32> to vector<16x16xf32>
    %187 = arith.mulf %182, %186 : vector<16x16xf32>
    %188 = vector.extract_strided_slice %169 {offsets = [0, 0], sizes = [16, 16], strides = [1, 1]} : vector<16x32xf32> to vector<16x16xf32>
    %cst_84 = arith.constant dense<0.000000e+00> : vector<16x16xf32>
    %189 = tpu.matmul %187, %188, %cst_84 {dimension_numbers = #tpu.dot_dimension_numbers<[1], [0], [0], [1], [0, 0, 1, 1], [], []>} : vector<16x16xf32>, vector<16x16xf32>, vector<16x16xf32> -> vector<16x16xf32>
    %190 = vector.extract_strided_slice %167 {offsets = [0, 16], sizes = [16, 16], strides = [1, 1]} : vector<16x32xf32> to vector<16x16xf32>
    %191 = vector.extract_strided_slice %168 {offsets = [0, 16], sizes = [16, 16], strides = [1, 1]} : vector<16x32xf32> to vector<16x16xf32>
    %192 = tpu.transpose %191, [1, 0] : vector<16x16xf32> -> vector<16x16xf32>
    %cst_85 = arith.constant dense<0.000000e+00> : vector<16x16xf32>
    %193 = tpu.matmul %190, %192, %cst_85 {dimension_numbers = #tpu.dot_dimension_numbers<[1], [0], [0], [1], [0, 0, 1, 1], [], []>} : vector<16x16xf32>, vector<16x16xf32>, vector<16x16xf32> -> vector<16x16xf32>
    %cst_86 = arith.constant 2.500000e-01 : f32
    %194 = vector.broadcast %cst_86 : f32 to vector<16x16xf32>
    %195 = arith.mulf %193, %194 : vector<16x16xf32>
    %196 = vector.broadcast %3 : vector<1x16xf32> to vector<16x16xf32>
    %197 = arith.addf %195, %196 : vector<16x16xf32>
    %cst_87 = arith.constant dense<0xFF800000> : vector<16xf32>
    %198 = vector.multi_reduction <maximumf>, %197, %cst_87 [1] : vector<16x16xf32> to vector<16xf32>
    %199 = vector.shape_cast %198 : vector<16xf32> to vector<16x1xf32>
    %200 = vector.broadcast %199 : vector<16x1xf32> to vector<16x16xf32>
    %201 = arith.subf %197, %200 : vector<16x16xf32>
    %202 = math.exp %201 : vector<16x16xf32>
    %cst_88 = arith.constant dense<0.000000e+00> : vector<16xf32>
    %203 = vector.multi_reduction <add>, %202, %cst_88 [1] : vector<16x16xf32> to vector<16xf32>
    %204 = vector.shape_cast %203 : vector<16xf32> to vector<16x1xf32>
    %205 = tpu.reciprocal %204 {approx = true} : vector<16x1xf32> -> vector<16x1xf32>
    %206 = vector.broadcast %205 : vector<16x1xf32> to vector<16x16xf32>
    %207 = arith.mulf %202, %206 : vector<16x16xf32>
    %208 = vector.extract_strided_slice %169 {offsets = [0, 16], sizes = [16, 16], strides = [1, 1]} : vector<16x32xf32> to vector<16x16xf32>
    %cst_89 = arith.constant dense<0.000000e+00> : vector<16x16xf32>
    %209 = tpu.matmul %207, %208, %cst_89 {dimension_numbers = #tpu.dot_dimension_numbers<[1], [0], [0], [1], [0, 0, 1, 1], [], []>} : vector<16x16xf32>, vector<16x16xf32>, vector<16x16xf32> -> vector<16x16xf32>
    %210 = tpu.concatenate %189, %209 in 1 : vector<16x16xf32>, vector<16x16xf32> -> vector<16x32xf32>
    %c1_90 = arith.constant 1 : index
    %c0_91 = arith.constant 0 : index
    %c0_92 = arith.constant 0 : index
    %211 = vector.load %arg7[%c1_90, %c0_91, %c0_92] : memref<2x32x32xf32, #tpu.memory_space<vmem>>, vector<1x32x32xf32>
    %212 = vector.shape_cast %211 : vector<1x32x32xf32> to vector<32x32xf32>
    %cst_93 = arith.constant dense<0.000000e+00> : vector<16x32xf32>
    %213 = tpu.matmul %210, %212, %cst_93 {dimension_numbers = #tpu.dot_dimension_numbers<[1], [0], [0], [1], [0, 0, 1, 1], [], []>} : vector<16x32xf32>, vector<32x32xf32>, vector<16x32xf32> -> vector<16x32xf32>
    %c1_94 = arith.constant 1 : index
    %c0_95 = arith.constant 0 : index
    %c0_96 = arith.constant 0 : index
    %214 = vector.load %arg8[%c1_94, %c0_95, %c0_96] : memref<2x1x32xf32, #tpu.memory_space<vmem>>, vector<1x1x32xf32>
    %215 = vector.shape_cast %214 : vector<1x1x32xf32> to vector<1x32xf32>
    %216 = vector.broadcast %215 : vector<1x32xf32> to vector<16x32xf32>
    %217 = arith.addf %213, %216 : vector<16x32xf32>
    %218 = arith.addf %217, %159 : vector<16x32xf32>
    %c1_97 = arith.constant 1 : index
    %c0_98 = arith.constant 0 : index
    %c0_99 = arith.constant 0 : index
    %219 = vector.load %arg9[%c1_97, %c0_98, %c0_99] : memref<2x256x64xf32, #tpu.memory_space<vmem>>, vector<1x256x64xf32>
    %220 = vector.shape_cast %219 : vector<1x256x64xf32> to vector<256x64xf32>
    %cst_100 = arith.constant dense<0.000000e+00> : vector<1x64xf32>
    %221 = tpu.matmul %7, %220, %cst_100 {dimension_numbers = #tpu.dot_dimension_numbers<[1], [0], [0], [1], [0, 0, 1, 1], [], []>} : vector<1x256xf32>, vector<256x64xf32>, vector<1x64xf32> -> vector<1x64xf32>
    %c1_101 = arith.constant 1 : index
    %c0_102 = arith.constant 0 : index
    %c0_103 = arith.constant 0 : index
    %222 = vector.load %arg10[%c1_101, %c0_102, %c0_103] : memref<2x1x64xf32, #tpu.memory_space<vmem>>, vector<1x1x64xf32>
    %223 = vector.shape_cast %222 : vector<1x1x64xf32> to vector<1x64xf32>
    %224 = arith.addf %221, %223 : vector<1x64xf32>
    %225 = vector.extract_strided_slice %224 {offsets = [0, 0], sizes = [1, 32], strides = [1, 1]} : vector<1x64xf32> to vector<1x32xf32>
    %226 = vector.extract_strided_slice %224 {offsets = [0, 32], sizes = [1, 32], strides = [1, 1]} : vector<1x64xf32> to vector<1x32xf32>
    %cst_104 = arith.constant dense<0.000000e+00> : vector<16xf32>
    %227 = vector.multi_reduction <add>, %218, %cst_104 [1] : vector<16x32xf32> to vector<16xf32>
    %228 = vector.shape_cast %227 : vector<16xf32> to vector<16x1xf32>
    %cst_105 = arith.constant 3.200000e+01 : f32
    %229 = vector.broadcast %cst_105 : f32 to vector<16x1xf32>
    %230 = arith.divf %228, %229 : vector<16x1xf32>
    %231 = vector.broadcast %230 : vector<16x1xf32> to vector<16x32xf32>
    %232 = arith.subf %218, %231 : vector<16x32xf32>
    %233 = arith.mulf %232, %232 : vector<16x32xf32>
    %cst_106 = arith.constant dense<0.000000e+00> : vector<16xf32>
    %234 = vector.multi_reduction <add>, %233, %cst_106 [1] : vector<16x32xf32> to vector<16xf32>
    %235 = vector.shape_cast %234 : vector<16xf32> to vector<16x1xf32>
    %cst_107 = arith.constant 3.200000e+01 : f32
    %236 = vector.broadcast %cst_107 : f32 to vector<16x1xf32>
    %237 = arith.divf %235, %236 : vector<16x1xf32>
    %238 = vector.broadcast %230 : vector<16x1xf32> to vector<16x32xf32>
    %239 = arith.subf %218, %238 : vector<16x32xf32>
    %cst_108 = arith.constant 9.99999974E-6 : f32
    %240 = vector.broadcast %cst_108 : f32 to vector<16x1xf32>
    %241 = arith.addf %237, %240 : vector<16x1xf32>
    %242 = math.rsqrt %241 : vector<16x1xf32>
    %243 = vector.broadcast %242 : vector<16x1xf32> to vector<16x32xf32>
    %244 = arith.mulf %239, %243 : vector<16x32xf32>
    %245 = vector.broadcast %225 : vector<1x32xf32> to vector<16x32xf32>
    %246 = arith.mulf %245, %244 : vector<16x32xf32>
    %247 = vector.broadcast %226 : vector<1x32xf32> to vector<16x32xf32>
    %248 = arith.addf %246, %247 : vector<16x32xf32>
    %249 = vector.broadcast %5 : vector<16x1xf32> to vector<16x32xf32>
    %250 = arith.mulf %248, %249 : vector<16x32xf32>
    %251 = tpu.concatenate %8, %250, %8 in 0 : vector<4x32xf32>, vector<16x32xf32>, vector<4x32xf32> -> vector<24x32xf32>
    %252 = vector.extract_strided_slice %251 {offsets = [0, 0], sizes = [16, 32], strides = [1, 1]} : vector<24x32xf32> to vector<16x32xf32>
    %253 = vector.extract_strided_slice %251 {offsets = [1, 0], sizes = [16, 32], strides = [1, 1]} : vector<24x32xf32> to vector<16x32xf32>
    %254 = vector.extract_strided_slice %251 {offsets = [2, 0], sizes = [16, 32], strides = [1, 1]} : vector<24x32xf32> to vector<16x32xf32>
    %255 = vector.extract_strided_slice %251 {offsets = [3, 0], sizes = [16, 32], strides = [1, 1]} : vector<24x32xf32> to vector<16x32xf32>
    %256 = vector.extract_strided_slice %251 {offsets = [4, 0], sizes = [16, 32], strides = [1, 1]} : vector<24x32xf32> to vector<16x32xf32>
    %257 = vector.extract_strided_slice %251 {offsets = [5, 0], sizes = [16, 32], strides = [1, 1]} : vector<24x32xf32> to vector<16x32xf32>
    %258 = vector.extract_strided_slice %251 {offsets = [6, 0], sizes = [16, 32], strides = [1, 1]} : vector<24x32xf32> to vector<16x32xf32>
    %259 = vector.extract_strided_slice %251 {offsets = [7, 0], sizes = [16, 32], strides = [1, 1]} : vector<24x32xf32> to vector<16x32xf32>
    %260 = vector.extract_strided_slice %251 {offsets = [8, 0], sizes = [16, 32], strides = [1, 1]} : vector<24x32xf32> to vector<16x32xf32>
    %261 = tpu.concatenate %252, %253, %254, %255, %256, %257, %258, %259, %260 in 1 : vector<16x32xf32>, vector<16x32xf32>, vector<16x32xf32>, vector<16x32xf32>, vector<16x32xf32>, vector<16x32xf32>, vector<16x32xf32>, vector<16x32xf32>, vector<16x32xf32> -> vector<16x288xf32>
    %c1_109 = arith.constant 1 : index
    %c0_110 = arith.constant 0 : index
    %c0_111 = arith.constant 0 : index
    %262 = vector.load %arg11[%c1_109, %c0_110, %c0_111] : memref<2x288x64xf32, #tpu.memory_space<vmem>>, vector<1x288x64xf32>
    %263 = vector.shape_cast %262 : vector<1x288x64xf32> to vector<288x64xf32>
    %cst_112 = arith.constant dense<0.000000e+00> : vector<16x64xf32>
    %264 = tpu.matmul %261, %263, %cst_112 {dimension_numbers = #tpu.dot_dimension_numbers<[1], [0], [0], [1], [0, 0, 1, 1], [], []>} : vector<16x288xf32>, vector<288x64xf32>, vector<16x64xf32> -> vector<16x64xf32>
    %c1_113 = arith.constant 1 : index
    %c0_114 = arith.constant 0 : index
    %c0_115 = arith.constant 0 : index
    %265 = vector.load %arg12[%c1_113, %c0_114, %c0_115] : memref<2x1x64xf32, #tpu.memory_space<vmem>>, vector<1x1x64xf32>
    %266 = vector.shape_cast %265 : vector<1x1x64xf32> to vector<1x64xf32>
    %267 = vector.broadcast %266 : vector<1x64xf32> to vector<16x64xf32>
    %268 = arith.addf %264, %267 : vector<16x64xf32>
    %cst_116 = arith.constant 0.000000e+00 : f32
    %269 = vector.broadcast %cst_116 : f32 to vector<16x64xf32>
    %270 = arith.maximumf %268, %269 : vector<16x64xf32>
    %c1_117 = arith.constant 1 : index
    %c0_118 = arith.constant 0 : index
    %c0_119 = arith.constant 0 : index
    %271 = vector.load %arg13[%c1_117, %c0_118, %c0_119] : memref<2x64x32xf32, #tpu.memory_space<vmem>>, vector<1x64x32xf32>
    %272 = vector.shape_cast %271 : vector<1x64x32xf32> to vector<64x32xf32>
    %cst_120 = arith.constant dense<0.000000e+00> : vector<16x32xf32>
    %273 = tpu.matmul %270, %272, %cst_120 {dimension_numbers = #tpu.dot_dimension_numbers<[1], [0], [0], [1], [0, 0, 1, 1], [], []>} : vector<16x64xf32>, vector<64x32xf32>, vector<16x32xf32> -> vector<16x32xf32>
    %c1_121 = arith.constant 1 : index
    %c0_122 = arith.constant 0 : index
    %c0_123 = arith.constant 0 : index
    %274 = vector.load %arg14[%c1_121, %c0_122, %c0_123] : memref<2x1x32xf32, #tpu.memory_space<vmem>>, vector<1x1x32xf32>
    %275 = vector.shape_cast %274 : vector<1x1x32xf32> to vector<1x32xf32>
    %276 = vector.broadcast %275 : vector<1x32xf32> to vector<16x32xf32>
    %277 = arith.addf %273, %276 : vector<16x32xf32>
    %278 = arith.addf %277, %250 : vector<16x32xf32>
    %c1_124 = arith.constant 1 : index
    %c0_125 = arith.constant 0 : index
    %c0_126 = arith.constant 0 : index
    %279 = vector.load %arg15[%c1_124, %c0_125, %c0_126] : memref<2x256x64xf32, #tpu.memory_space<vmem>>, vector<1x256x64xf32>
    %280 = vector.shape_cast %279 : vector<1x256x64xf32> to vector<256x64xf32>
    %cst_127 = arith.constant dense<0.000000e+00> : vector<1x64xf32>
    %281 = tpu.matmul %7, %280, %cst_127 {dimension_numbers = #tpu.dot_dimension_numbers<[1], [0], [0], [1], [0, 0, 1, 1], [], []>} : vector<1x256xf32>, vector<256x64xf32>, vector<1x64xf32> -> vector<1x64xf32>
    %c1_128 = arith.constant 1 : index
    %c0_129 = arith.constant 0 : index
    %c0_130 = arith.constant 0 : index
    %282 = vector.load %arg16[%c1_128, %c0_129, %c0_130] : memref<2x1x64xf32, #tpu.memory_space<vmem>>, vector<1x1x64xf32>
    %283 = vector.shape_cast %282 : vector<1x1x64xf32> to vector<1x64xf32>
    %284 = arith.addf %281, %283 : vector<1x64xf32>
    %285 = vector.extract_strided_slice %284 {offsets = [0, 0], sizes = [1, 32], strides = [1, 1]} : vector<1x64xf32> to vector<1x32xf32>
    %286 = vector.extract_strided_slice %284 {offsets = [0, 32], sizes = [1, 32], strides = [1, 1]} : vector<1x64xf32> to vector<1x32xf32>
    %cst_131 = arith.constant dense<0.000000e+00> : vector<16xf32>
    %287 = vector.multi_reduction <add>, %278, %cst_131 [1] : vector<16x32xf32> to vector<16xf32>
    %288 = vector.shape_cast %287 : vector<16xf32> to vector<16x1xf32>
    %cst_132 = arith.constant 3.200000e+01 : f32
    %289 = vector.broadcast %cst_132 : f32 to vector<16x1xf32>
    %290 = arith.divf %288, %289 : vector<16x1xf32>
    %291 = vector.broadcast %290 : vector<16x1xf32> to vector<16x32xf32>
    %292 = arith.subf %278, %291 : vector<16x32xf32>
    %293 = arith.mulf %292, %292 : vector<16x32xf32>
    %cst_133 = arith.constant dense<0.000000e+00> : vector<16xf32>
    %294 = vector.multi_reduction <add>, %293, %cst_133 [1] : vector<16x32xf32> to vector<16xf32>
    %295 = vector.shape_cast %294 : vector<16xf32> to vector<16x1xf32>
    %cst_134 = arith.constant 3.200000e+01 : f32
    %296 = vector.broadcast %cst_134 : f32 to vector<16x1xf32>
    %297 = arith.divf %295, %296 : vector<16x1xf32>
    %298 = vector.broadcast %290 : vector<16x1xf32> to vector<16x32xf32>
    %299 = arith.subf %278, %298 : vector<16x32xf32>
    %cst_135 = arith.constant 9.99999974E-6 : f32
    %300 = vector.broadcast %cst_135 : f32 to vector<16x1xf32>
    %301 = arith.addf %297, %300 : vector<16x1xf32>
    %302 = math.rsqrt %301 : vector<16x1xf32>
    %303 = vector.broadcast %302 : vector<16x1xf32> to vector<16x32xf32>
    %304 = arith.mulf %299, %303 : vector<16x32xf32>
    %305 = vector.broadcast %285 : vector<1x32xf32> to vector<16x32xf32>
    %306 = arith.mulf %305, %304 : vector<16x32xf32>
    %307 = vector.broadcast %286 : vector<1x32xf32> to vector<16x32xf32>
    %308 = arith.addf %306, %307 : vector<16x32xf32>
    %309 = vector.broadcast %5 : vector<16x1xf32> to vector<16x32xf32>
    %310 = arith.mulf %308, %309 : vector<16x32xf32>
    %311 = vector.shape_cast %310 : vector<16x32xf32> to vector<1x16x32xf32>
    %c0_136 = arith.constant 0 : index
    %c0_137 = arith.constant 0 : index
    %c0_138 = arith.constant 0 : index
    %312 = vector.load %arg17[%c0_136, %c0_137, %c0_138] : memref<1x16x32xf32, #tpu.memory_space<vmem>>, vector<1x16x32xf32>
    tpu.vector_store %arg17[%c0_136, %c0_137, %c0_138], %311 {strides = array<i32>} : memref<1x16x32xf32, #tpu.memory_space<vmem>>, vector<1x16x32xf32>,
    return
  }
  func.func @transform_0(%arg0: i32) -> (i32, i32, i32) {
    %c0_i32 = arith.constant 0 : i32
    %c0_i32_0 = arith.constant 0 : i32
    %c0_i32_1 = arith.constant 0 : i32
    return %arg0, %c0_i32, %c0_i32_0 : i32, i32, i32
  }
  func.func @transform_1(%arg0: i32) -> (i32, i32, i32) {
    %c0_i32 = arith.constant 0 : i32
    %c0_i32_0 = arith.constant 0 : i32
    %c0_i32_1 = arith.constant 0 : i32
    return %arg0, %c0_i32, %c0_i32_0 : i32, i32, i32
  }
  func.func @transform_2(%arg0: i32) -> (i32, i32, i32) {
    %c0_i32 = arith.constant 0 : i32
    %c0_i32_0 = arith.constant 0 : i32
    %c0_i32_1 = arith.constant 0 : i32
    return %arg0, %c0_i32, %c0_i32_0 : i32, i32, i32
  }
  func.func @transform_3(%arg0: i32) -> (i32, i32, i32) {
    %c0_i32 = arith.constant 0 : i32
    %c0_i32_0 = arith.constant 0 : i32
    %c0_i32_1 = arith.constant 0 : i32
    return %arg0, %c0_i32, %c0_i32_0 : i32, i32, i32
  }
  func.func @transform_4(%arg0: i32) -> (i32, i32, i32) {
    %c0_i32 = arith.constant 0 : i32
    %c0_i32_0 = arith.constant 0 : i32
    %c0_i32_1 = arith.constant 0 : i32
    %c0_i32_2 = arith.constant 0 : i32
    return %c0_i32, %c0_i32_0, %c0_i32_1 : i32, i32, i32
  }
  func.func @transform_5(%arg0: i32) -> (i32, i32, i32) {
    %c0_i32 = arith.constant 0 : i32
    %c0_i32_0 = arith.constant 0 : i32
    %c0_i32_1 = arith.constant 0 : i32
    %c0_i32_2 = arith.constant 0 : i32
    return %c0_i32, %c0_i32_0, %c0_i32_1 : i32, i32, i32
  }
  func.func @transform_6(%arg0: i32) -> (i32, i32, i32) {
    %c0_i32 = arith.constant 0 : i32
    %c0_i32_0 = arith.constant 0 : i32
    %c0_i32_1 = arith.constant 0 : i32
    %c0_i32_2 = arith.constant 0 : i32
    return %c0_i32, %c0_i32_0, %c0_i32_1 : i32, i32, i32
  }
  func.func @transform_7(%arg0: i32) -> (i32, i32, i32) {
    %c0_i32 = arith.constant 0 : i32
    %c0_i32_0 = arith.constant 0 : i32
    %c0_i32_1 = arith.constant 0 : i32
    %c0_i32_2 = arith.constant 0 : i32
    return %c0_i32, %c0_i32_0, %c0_i32_1 : i32, i32, i32
  }
  func.func @transform_8(%arg0: i32) -> (i32, i32, i32) {
    %c0_i32 = arith.constant 0 : i32
    %c0_i32_0 = arith.constant 0 : i32
    %c0_i32_1 = arith.constant 0 : i32
    %c0_i32_2 = arith.constant 0 : i32
    return %c0_i32, %c0_i32_0, %c0_i32_1 : i32, i32, i32
  }
  func.func @transform_9(%arg0: i32) -> (i32, i32, i32) {
    %c0_i32 = arith.constant 0 : i32
    %c0_i32_0 = arith.constant 0 : i32
    %c0_i32_1 = arith.constant 0 : i32
    %c0_i32_2 = arith.constant 0 : i32
    return %c0_i32, %c0_i32_0, %c0_i32_1 : i32, i32, i32
  }
  func.func @transform_10(%arg0: i32) -> (i32, i32, i32) {
    %c0_i32 = arith.constant 0 : i32
    %c0_i32_0 = arith.constant 0 : i32
    %c0_i32_1 = arith.constant 0 : i32
    %c0_i32_2 = arith.constant 0 : i32
    return %c0_i32, %c0_i32_0, %c0_i32_1 : i32, i32, i32
  }
  func.func @transform_11(%arg0: i32) -> (i32, i32, i32) {
    %c0_i32 = arith.constant 0 : i32
    %c0_i32_0 = arith.constant 0 : i32
    %c0_i32_1 = arith.constant 0 : i32
    %c0_i32_2 = arith.constant 0 : i32
    return %c0_i32, %c0_i32_0, %c0_i32_1 : i32, i32, i32
  }
  func.func @transform_12(%arg0: i32) -> (i32, i32, i32) {
    %c0_i32 = arith.constant 0 : i32
    %c0_i32_0 = arith.constant 0 : i32
    %c0_i32_1 = arith.constant 0 : i32
    %c0_i32_2 = arith.constant 0 : i32
    return %c0_i32, %c0_i32_0, %c0_i32_1 : i32, i32, i32
  }
  func.func @transform_13(%arg0: i32) -> (i32, i32, i32) {
    %c0_i32 = arith.constant 0 : i32
    %c0_i32_0 = arith.constant 0 : i32
    %c0_i32_1 = arith.constant 0 : i32
    %c0_i32_2 = arith.constant 0 : i32
    return %c0_i32, %c0_i32_0, %c0_i32_1 : i32, i32, i32
  }
  func.func @transform_14(%arg0: i32) -> (i32, i32, i32) {
    %c0_i32 = arith.constant 0 : i32
    %c0_i32_0 = arith.constant 0 : i32
    %c0_i32_1 = arith.constant 0 : i32
    %c0_i32_2 = arith.constant 0 : i32
    return %c0_i32, %c0_i32_0, %c0_i32_1 : i32, i32, i32
  }
  func.func @transform_15(%arg0: i32) -> (i32, i32, i32) {
    %c0_i32 = arith.constant 0 : i32
    %c0_i32_0 = arith.constant 0 : i32
    %c0_i32_1 = arith.constant 0 : i32
    %c0_i32_2 = arith.constant 0 : i32
    return %c0_i32, %c0_i32_0, %c0_i32_1 : i32, i32, i32
  }
  func.func @transform_16(%arg0: i32) -> (i32, i32, i32) {
    %c0_i32 = arith.constant 0 : i32
    %c0_i32_0 = arith.constant 0 : i32
    %c0_i32_1 = arith.constant 0 : i32
    return %arg0, %c0_i32, %c0_i32_0 : i32, i32, i32
  }
}

</mosaic_0001>

<llo_original>
// kernel: decoder_condition_forward.1
$region0: #{decoder_condition_forward.1}
  #allocation0 [shape = 'u32[]', space=smem, size = 0x4, offset = 0x4, fixed_abs, tag = 'smem constant byte address 0x4 - core index']
  #allocation1 [shape = 'u32[144,128]{1,0:T(1,128)}', space=vmem, size = 0x12000, scoped, tag = 'internal scratch']
  %s0 = inlined_call_operand.vmem [shape: f32[2,16,32], index: 0, kind: input, shape index: {}]
  %s1 = inlined_call_operand.vmem [shape: f32[2,1,16], index: 1, kind: input, shape index: {}]
  %s2 = inlined_call_operand.vmem [shape: f32[2,16,1], index: 2, kind: input, shape index: {}]
  %s3 = inlined_call_operand.vmem [shape: f32[2,1,256], index: 3, kind: input, shape index: {}]
  %s4 = inlined_call_operand.vmem [shape: f32[2,32,96], index: 4, kind: input, shape index: {}]
  %s5 = inlined_call_operand.vmem [shape: f32[2,1,96], index: 5, kind: input, shape index: {}]
  %s6 = inlined_call_operand.vmem [shape: f32[2,32,32], index: 6, kind: input, shape index: {}]
  %s7 = inlined_call_operand.vmem [shape: f32[2,1,32], index: 7, kind: input, shape index: {}]
  %s8 = inlined_call_operand.vmem [shape: f32[2,256,64], index: 8, kind: input, shape index: {}]
  %s9 = inlined_call_operand.vmem [shape: f32[2,1,64], index: 9, kind: input, shape index: {}]
  %s10 = inlined_call_operand.vmem [shape: f32[2,288,64], index: 10, kind: input, shape index: {}]
  %s11 = inlined_call_operand.vmem [shape: f32[2,1,64], index: 11, kind: input, shape index: {}]
  %s12 = inlined_call_operand.vmem [shape: f32[2,64,32], index: 12, kind: input, shape index: {}]
  %s13 = inlined_call_operand.vmem [shape: f32[2,1,32], index: 13, kind: input, shape index: {}]
  %s14 = inlined_call_operand.vmem [shape: f32[2,256,64], index: 14, kind: input, shape index: {}]
  %s15 = inlined_call_operand.vmem [shape: f32[2,1,64], index: 15, kind: input, shape index: {}]
  %s16 = inlined_call_operand.hbm [shape: f32[2,16,32], index: 16, kind: output, shape index: {}]
  %s17 = sld [smem:[#allocation0]]
  $region97: #{decoder_condition_forward.1} parent=0
    _
  %s19 = ssub.s32 1, %s17
  %s20 = scalar_select 0, %s19, %s17
  $region1: #{decoder_condition_forward.1} parent=0
    #allocation2 [shape = 'u8[16384]{0}', space=vmem, size = 0x4000, scoped, tag = 'output window, operand 0']
    #allocation3 [shape = 's32[2]{0}', space=sflag, size = 0x8, scoped, tag = 'scoped memory for decoder_condition_forward.1']
    %21 = vsyncpa [#allocation3], 0
    %s22 = scalar_lea.sflag [#allocation3], 1
    %23 = vsyncpa %s22, 0
    loop: start=0, step=1, limit=4
    $region2: #{decoder_condition_forward.1} parent=1 // loop_pre_header
      _
    $region3: #{decoder_condition_forward.1} parent=1 // loop_header
      %s25 = sphi 0, %s29
      %p26 = scmp.ge.s32.totalorder %s25, 4
      %s35 = sphi 0, %s37
      %s38 = sphi 0, %s35
      %s39 = sphi 0, %s38
      %s55 = sphi 0, %s39
      %s61 = sphi 0, %s63
      %s64 = sphi 0, %s61
      %s65 = sphi 0, %s64
      %s81 = sphi 0, %s65
      %s87 = sphi 0, %s89
      %s90 = sphi 0, %s87
      %s91 = sphi 0, %s90
      %s107 = sphi 0, %s91
      %s113 = sphi 0, %s115
      %s116 = sphi 0, %s113
      %s117 = sphi 0, %s116
      %s133 = sphi 0, %s117
      %s137 = sphi 0, %s137
      %s139 = sphi 0, %s137
      %s140 = sphi 0, %s139
      %s154 = sphi 0, %s140
      %s158 = sphi 0, %s158
      %s160 = sphi 0, %s158
      %s161 = sphi 0, %s160
      %s175 = sphi 0, %s161
      %s179 = sphi 0, %s179
      %s181 = sphi 0, %s179
      %s182 = sphi 0, %s181
      %s196 = sphi 0, %s182
      %s200 = sphi 0, %s200
      %s202 = sphi 0, %s200
      %s203 = sphi 0, %s202
      %s217 = sphi 0, %s203
      %s221 = sphi 0, %s221
      %s223 = sphi 0, %s221
      %s224 = sphi 0, %s223
      %s238 = sphi 0, %s224
      %s242 = sphi 0, %s242
      %s244 = sphi 0, %s242
      %s245 = sphi 0, %s244
      %s259 = sphi 0, %s245
      %s263 = sphi 0, %s263
      %s265 = sphi 0, %s263
      %s266 = sphi 0, %s265
      %s280 = sphi 0, %s266
      %s284 = sphi 0, %s284
      %s286 = sphi 0, %s284
      %s287 = sphi 0, %s286
      %s301 = sphi 0, %s287
      %s305 = sphi 0, %s305
      %s307 = sphi 0, %s305
      %s308 = sphi 0, %s307
      %s322 = sphi 0, %s308
      %s326 = sphi 0, %s326
      %s328 = sphi 0, %s326
      %s329 = sphi 0, %s328
      %s343 = sphi 0, %s329
      %s347 = sphi 0, %s347
      %s349 = sphi 0, %s347
      %s350 = sphi 0, %s349
      %s364 = sphi 0, %s350
      %s368 = sphi 0, %s368
      %s370 = sphi 0, %s368
      %s371 = sphi 0, %s370
      %s385 = sphi 0, %s371
      %s391 = sphi 0, %s393
      %s394 = sphi 0, %s391
      %s395 = sphi 0, %s394
      %s411 = sphi 0, %s395
    $region4: #{decoder_condition_forward.1} parent=1 // loop_header_branch
      %28 = sbr.rel (%p26) target = $region8
    $region5: #{decoder_condition_forward.1} parent=1 // loop_body
      %s30 = ssub.s32 %s25, 1
      %s31 = ssub.s32 %s25, 2
      %s32 = sadd.s32 %s25, 1
      %s33 = ssub.s32 %s25, %s32
      %p34 = scmp.eq.s32.totalorder %s33, 0
      %s36 = sadd.s32 %s35, 1
      %s37 = scalar_select %p34, %s35, %s36
      %p40 = pneg %p34
      %p41 = scmp.eq.s32.totalorder %s25, 1
      %p42 = por %p40, %p41
      %p43 = scmp.ne.s32.totalorder %s35, %s38
      %p44 = scmp.eq.s32.totalorder %s25, 0
      %p45 = por %p43, %p44
      %p46 = scmp.ne.s32.totalorder %s35, %s38
      %p47 = scmp.eq.s32.totalorder %s30, 1
      %p48 = por %p46, %p47
      %p49 = scmp.ne.s32.totalorder %s38, %s39
      %p50 = scmp.eq.s32.totalorder %s30, 0
      %p51 = por %p49, %p50
      %p52 = scmp.ne.s32.totalorder %s38, %s39
      %p53 = scmp.eq.s32.totalorder %s31, 1
      %p54 = por %p52, %p53
      %p56 = scmp.ne.s32.totalorder %s39, %s55
      %p57 = scmp.eq.s32.totalorder %s31, 0
      %p58 = por %p56, %p57
      %s59 = ssub.s32 %s25, %s32
      %p60 = scmp.eq.s32.totalorder %s59, 0
      %s62 = sadd.s32 %s61, 1
      %s63 = scalar_select %p60, %s61, %s62
      %p66 = pneg %p60
      %p67 = scmp.eq.s32.totalorder %s25, 1
      %p68 = por %p66, %p67
      %p69 = scmp.ne.s32.totalorder %s61, %s64
      %p70 = scmp.eq.s32.totalorder %s25, 0
      %p71 = por %p69, %p70
      %p72 = scmp.ne.s32.totalorder %s61, %s64
      %p73 = scmp.eq.s32.totalorder %s30, 1
      %p74 = por %p72, %p73
      %p75 = scmp.ne.s32.totalorder %s64, %s65
      %p76 = scmp.eq.s32.totalorder %s30, 0
      %p77 = por %p75, %p76
      %p78 = scmp.ne.s32.totalorder %s64, %s65
      %p79 = scmp.eq.s32.totalorder %s31, 1
      %p80 = por %p78, %p79
      %p82 = scmp.ne.s32.totalorder %s65, %s81
      %p83 = scmp.eq.s32.totalorder %s31, 0
      %p84 = por %p82, %p83
      %s85 = ssub.s32 %s25, %s32
      %p86 = scmp.eq.s32.totalorder %s85, 0
      %s88 = sadd.s32 %s87, 1
      %s89 = scalar_select %p86, %s87, %s88
      %p92 = pneg %p86
      %p93 = scmp.eq.s32.totalorder %s25, 1
      %p94 = por %p92, %p93
      %p95 = scmp.ne.s32.totalorder %s87, %s90
      %p96 = scmp.eq.s32.totalorder %s25, 0
      %p97 = por %p95, %p96
      %p98 = scmp.ne.s32.totalorder %s87, %s90
      %p99 = scmp.eq.s32.totalorder %s30, 1
      %p100 = por %p98, %p99
      %p101 = scmp.ne.s32.totalorder %s90, %s91
      %p102 = scmp.eq.s32.totalorder %s30, 0
      %p103 = por %p101, %p102
      %p104 = scmp.ne.s32.totalorder %s90, %s91
      %p105 = scmp.eq.s32.totalorder %s31, 1
      %p106 = por %p104, %p105
      %p108 = scmp.ne.s32.totalorder %s91, %s107
      %p109 = scmp.eq.s32.totalorder %s31, 0
      %p110 = por %p108, %p109
      %s111 = ssub.s32 %s25, %s32
      %p112 = scmp.eq.s32.totalorder %s111, 0
      %s114 = sadd.s32 %s113, 1
      %s115 = scalar_select %p112, %s113, %s114
      %p118 = pneg %p112
      %p119 = scmp.eq.s32.totalorder %s25, 1
      %p120 = por %p118, %p119
      %p121 = scmp.ne.s32.totalorder %s113, %s116
      %p122 = scmp.eq.s32.totalorder %s25, 0
      %p123 = por %p121, %p122
      %p124 = scmp.ne.s32.totalorder %s113, %s116
      %p125 = scmp.eq.s32.totalorder %s30, 1
      %p126 = por %p124, %p125
      %p127 = scmp.ne.s32.totalorder %s116, %s117
      %p128 = scmp.eq.s32.totalorder %s30, 0
      %p129 = por %p127, %p128
      %p130 = scmp.ne.s32.totalorder %s116, %s117
      %p131 = scmp.eq.s32.totalorder %s31, 1
      %p132 = por %p130, %p131
      %p134 = scmp.ne.s32.totalorder %s117, %s133
      %p135 = scmp.eq.s32.totalorder %s31, 0
      %p136 = por %p134, %p135
      %s138 = sadd.s32 %s137, 1
      %p141 = scmp.eq.s32.totalorder %s25, 1
      %p142 = scmp.ne.s32.totalorder %s137, %s139
      %p143 = scmp.eq.s32.totalorder %s25, 0
      %p144 = por %p142, %p143
      %p145 = scmp.ne.s32.totalorder %s137, %s139
      %p146 = scmp.eq.s32.totalorder %s30, 1
      %p147 = por %p145, %p146
      %p148 = scmp.ne.s32.totalorder %s139, %s140
      %p149 = scmp.eq.s32.totalorder %s30, 0
      %p150 = por %p148, %p149
      %p151 = scmp.ne.s32.totalorder %s139, %s140
      %p152 = scmp.eq.s32.totalorder %s31, 1
      %p153 = por %p151, %p152
      %p155 = scmp.ne.s32.totalorder %s140, %s154
      %p156 = scmp.eq.s32.totalorder %s31, 0
      %p157 = por %p155, %p156
      %s159 = sadd.s32 %s158, 1
      %p162 = scmp.eq.s32.totalorder %s25, 1
      %p163 = scmp.ne.s32.totalorder %s158, %s160
      %p164 = scmp.eq.s32.totalorder %s25, 0
      %p165 = por %p163, %p164
      %p166 = scmp.ne.s32.totalorder %s158, %s160
      %p167 = scmp.eq.s32.totalorder %s30, 1
      %p168 = por %p166, %p167
      %p169 = scmp.ne.s32.totalorder %s160, %s161
      %p170 = scmp.eq.s32.totalorder %s30, 0
      %p171 = por %p169, %p170
      %p172 = scmp.ne.s32.totalorder %s160, %s161
      %p173 = scmp.eq.s32.totalorder %s31, 1
      %p174 = por %p172, %p173
      %p176 = scmp.ne.s32.totalorder %s161, %s175
      %p177 = scmp.eq.s32.totalorder %s31, 0
      %p178 = por %p176, %p177
      %s180 = sadd.s32 %s179, 1
      %p183 = scmp.eq.s32.totalorder %s25, 1
      %p184 = scmp.ne.s32.totalorder %s179, %s181
      %p185 = scmp.eq.s32.totalorder %s25, 0
      %p186 = por %p184, %p185
      %p187 = scmp.ne.s32.totalorder %s179, %s181
      %p188 = scmp.eq.s32.totalorder %s30, 1
      %p189 = por %p187, %p188
      %p190 = scmp.ne.s32.totalorder %s181, %s182
      %p191 = scmp.eq.s32.totalorder %s30, 0
      %p192 = por %p190, %p191
      %p193 = scmp.ne.s32.totalorder %s181, %s182
      %p194 = scmp.eq.s32.totalorder %s31, 1
      %p195 = por %p193, %p194
      %p197 = scmp.ne.s32.totalorder %s182, %s196
      %p198 = scmp.eq.s32.totalorder %s31, 0
      %p199 = por %p197, %p198
      %s201 = sadd.s32 %s200, 1
      %p204 = scmp.eq.s32.totalorder %s25, 1
      %p205 = scmp.ne.s32.totalorder %s200, %s202
      %p206 = scmp.eq.s32.totalorder %s25, 0
      %p207 = por %p205, %p206
      %p208 = scmp.ne.s32.totalorder %s200, %s202
      %p209 = scmp.eq.s32.totalorder %s30, 1
      %p210 = por %p208, %p209
      %p211 = scmp.ne.s32.totalorder %s202, %s203
      %p212 = scmp.eq.s32.totalorder %s30, 0
      %p213 = por %p211, %p212
      %p214 = scmp.ne.s32.totalorder %s202, %s203
      %p215 = scmp.eq.s32.totalorder %s31, 1
      %p216 = por %p214, %p215
      %p218 = scmp.ne.s32.totalorder %s203, %s217
      %p219 = scmp.eq.s32.totalorder %s31, 0
      %p220 = por %p218, %p219
      %s222 = sadd.s32 %s221, 1
      %p225 = scmp.eq.s32.totalorder %s25, 1
      %p226 = scmp.ne.s32.totalorder %s221, %s223
      %p227 = scmp.eq.s32.totalorder %s25, 0
      %p228 = por %p226, %p227
      %p229 = scmp.ne.s32.totalorder %s221, %s223
      %p230 = scmp.eq.s32.totalorder %s30, 1
      %p231 = por %p229, %p230
      %p232 = scmp.ne.s32.totalorder %s223, %s224
      %p233 = scmp.eq.s32.totalorder %s30, 0
      %p234 = por %p232, %p233
      %p235 = scmp.ne.s32.totalorder %s223, %s224
      %p236 = scmp.eq.s32.totalorder %s31, 1
      %p237 = por %p235, %p236
      %p239 = scmp.ne.s32.totalorder %s224, %s238
      %p240 = scmp.eq.s32.totalorder %s31, 0
      %p241 = por %p239, %p240
      %s243 = sadd.s32 %s242, 1
      %p246 = scmp.eq.s32.totalorder %s25, 1
      %p247 = scmp.ne.s32.totalorder %s242, %s244
      %p248 = scmp.eq.s32.totalorder %s25, 0
      %p249 = por %p247, %p248
      %p250 = scmp.ne.s32.totalorder %s242, %s244
      %p251 = scmp.eq.s32.totalorder %s30, 1
      %p252 = por %p250, %p251
      %p253 = scmp.ne.s32.totalorder %s244, %s245
      %p254 = scmp.eq.s32.totalorder %s30, 0
      %p255 = por %p253, %p254
      %p256 = scmp.ne.s32.totalorder %s244, %s245
      %p257 = scmp.eq.s32.totalorder %s31, 1
      %p258 = por %p256, %p257
      %p260 = scmp.ne.s32.totalorder %s245, %s259
      %p261 = scmp.eq.s32.totalorder %s31, 0
      %p262 = por %p260, %p261
      %s264 = sadd.s32 %s263, 1
      %p267 = scmp.eq.s32.totalorder %s25, 1
      %p268 = scmp.ne.s32.totalorder %s263, %s265
      %p269 = scmp.eq.s32.totalorder %s25, 0
      %p270 = por %p268, %p269
      %p271 = scmp.ne.s32.totalorder %s263, %s265
      %p272 = scmp.eq.s32.totalorder %s30, 1
      %p273 = por %p271, %p272
      %p274 = scmp.ne.s32.totalorder %s265, %s266
      %p275 = scmp.eq.s32.totalorder %s30, 0
      %p276 = por %p274, %p275
      %p277 = scmp.ne.s32.totalorder %s265, %s266
      %p278 = scmp.eq.s32.totalorder %s31, 1
      %p279 = por %p277, %p278
      %p281 = scmp.ne.s32.totalorder %s266, %s280
      %p282 = scmp.eq.s32.totalorder %s31, 0
      %p283 = por %p281, %p282
      %s285 = sadd.s32 %s284, 1
      %p288 = scmp.eq.s32.totalorder %s25, 1
      %p289 = scmp.ne.s32.totalorder %s284, %s286
      %p290 = scmp.eq.s32.totalorder %s25, 0
      %p291 = por %p289, %p290
      %p292 = scmp.ne.s32.totalorder %s284, %s286
      %p293 = scmp.eq.s32.totalorder %s30, 1
      %p294 = por %p292, %p293
      %p295 = scmp.ne.s32.totalorder %s286, %s287
      %p296 = scmp.eq.s32.totalorder %s30, 0
      %p297 = por %p295, %p296
      %p298 = scmp.ne.s32.totalorder %s286, %s287
      %p299 = scmp.eq.s32.totalorder %s31, 1
      %p300 = por %p298, %p299
      %p302 = scmp.ne.s32.totalorder %s287, %s301
      %p303 = scmp.eq.s32.totalorder %s31, 0
      %p304 = por %p302, %p303
      %s306 = sadd.s32 %s305, 1
      %p309 = scmp.eq.s32.totalorder %s25, 1
      %p310 = scmp.ne.s32.totalorder %s305, %s307
      %p311 = scmp.eq.s32.totalorder %s25, 0
      %p312 = por %p310, %p311
      %p313 = scmp.ne.s32.totalorder %s305, %s307
      %p314 = scmp.eq.s32.totalorder %s30, 1
      %p315 = por %p313, %p314
      %p316 = scmp.ne.s32.totalorder %s307, %s308
      %p317 = scmp.eq.s32.totalorder %s30, 0
      %p318 = por %p316, %p317
      %p319 = scmp.ne.s32.totalorder %s307, %s308
      %p320 = scmp.eq.s32.totalorder %s31, 1
      %p321 = por %p319, %p320
      %p323 = scmp.ne.s32.totalorder %s308, %s322
      %p324 = scmp.eq.s32.totalorder %s31, 0
      %p325 = por %p323, %p324
      %s327 = sadd.s32 %s326, 1
      %p330 = scmp.eq.s32.totalorder %s25, 1
      %p331 = scmp.ne.s32.totalorder %s326, %s328
      %p332 = scmp.eq.s32.totalorder %s25, 0
      %p333 = por %p331, %p332
      %p334 = scmp.ne.s32.totalorder %s326, %s328
      %p335 = scmp.eq.s32.totalorder %s30, 1
      %p336 = por %p334, %p335
      %p337 = scmp.ne.s32.totalorder %s328, %s329
      %p338 = scmp.eq.s32.totalorder %s30, 0
      %p339 = por %p337, %p338
      %p340 = scmp.ne.s32.totalorder %s328, %s329
      %p341 = scmp.eq.s32.totalorder %s31, 1
      %p342 = por %p340, %p341
      %p344 = scmp.ne.s32.totalorder %s329, %s343
      %p345 = scmp.eq.s32.totalorder %s31, 0
      %p346 = por %p344, %p345
      %s348 = sadd.s32 %s347, 1
      %p351 = scmp.eq.s32.totalorder %s25, 1
      %p352 = scmp.ne.s32.totalorder %s347, %s349
      %p353 = scmp.eq.s32.totalorder %s25, 0
      %p354 = por %p352, %p353
      %p355 = scmp.ne.s32.totalorder %s347, %s349
      %p356 = scmp.eq.s32.totalorder %s30, 1
      %p357 = por %p355, %p356
      %p358 = scmp.ne.s32.totalorder %s349, %s350
      %p359 = scmp.eq.s32.totalorder %s30, 0
      %p360 = por %p358, %p359
      %p361 = scmp.ne.s32.totalorder %s349, %s350
      %p362 = scmp.eq.s32.totalorder %s31, 1
      %p363 = por %p361, %p362
      %p365 = scmp.ne.s32.totalorder %s350, %s364
      %p366 = scmp.eq.s32.totalorder %s31, 0
      %p367 = por %p365, %p366
      %s369 = sadd.s32 %s368, 1
      %p372 = scmp.eq.s32.totalorder %s25, 1
      %p373 = scmp.ne.s32.totalorder %s368, %s370
      %p374 = scmp.eq.s32.totalorder %s25, 0
      %p375 = por %p373, %p374
      %p376 = scmp.ne.s32.totalorder %s368, %s370
      %p377 = scmp.eq.s32.totalorder %s30, 1
      %p378 = por %p376, %p377
      %p379 = scmp.ne.s32.totalorder %s370, %s371
      %p380 = scmp.eq.s32.totalorder %s30, 0
      %p381 = por %p379, %p380
      %p382 = scmp.ne.s32.totalorder %s370, %s371
      %p383 = scmp.eq.s32.totalorder %s31, 1
      %p384 = por %p382, %p383
      %p386 = scmp.ne.s32.totalorder %s371, %s385
      %p387 = scmp.eq.s32.totalorder %s31, 0
      %p388 = por %p386, %p387
      %s389 = ssub.s32 %s25, %s32
      %p390 = scmp.eq.s32.totalorder %s389, 0
      %s392 = sadd.s32 %s391, 1
      %s393 = scalar_select %p390, %s391, %s392
      %p396 = pneg %p390
      %p397 = scmp.eq.s32.totalorder %s25, 1
      %p398 = por %p396, %p397
      %p399 = scmp.ne.s32.totalorder %s391, %s394
      %p400 = scmp.eq.s32.totalorder %s25, 0
      %p401 = por %p399, %p400
      %p402 = scmp.ne.s32.totalorder %s391, %s394
      %p403 = scmp.eq.s32.totalorder %s30, 1
      %p404 = por %p402, %p403
      %p405 = scmp.ne.s32.totalorder %s394, %s395
      %p406 = scmp.eq.s32.totalorder %s30, 0
      %p407 = por %p405, %p406
      %p408 = scmp.ne.s32.totalorder %s394, %s395
      %p409 = scmp.eq.s32.totalorder %s31, 1
      %p410 = por %p408, %p409
      %p412 = scmp.ne.s32.totalorder %s395, %s411
      %p413 = scmp.eq.s32.totalorder %s31, 0
      %p414 = por %p412, %p413
      %p415 = scmp.le.s32.totalorder 1, %s25
      %p416 = scmp.lt.s32.totalorder %s25, 3
      %p417 = pnand %p415, %p416
      %p418 = pneg %p417
      // Predicated region
      $region9: #{decoder_condition_forward.1} parent=5 // pred_check
        _
      $region10: #{decoder_condition_forward.1} parent=5 // pred_check_branch
        %420 = sbr.rel (%p417) target = $region12
      $region11: #{decoder_condition_forward.1} parent=5 // pred_region
        %s421 = ssub.s32 %s25, 1
        // Predicated region
        $region13: #{decoder_condition_forward.1} parent=11 // pred_check
          %p422 = pneg %p150
        $region14: #{decoder_condition_forward.1} parent=11 // pred_check_branch
          %424 = sbr.rel (%p422) target = $region16
        $region15: #{decoder_condition_forward.1} parent=11 // pred_region
          _
        $region16: #{decoder_condition_forward.1} parent=11 // pred_fallthru
          _
        // Predicated region
        $region17: #{decoder_condition_forward.1} parent=11 // pred_check
          %p425 = pneg %p171
        $region18: #{decoder_condition_forward.1} parent=11 // pred_check_branch
          %427 = sbr.rel (%p425) target = $region20
        $region19: #{decoder_condition_forward.1} parent=11 // pred_region
          _
        $region20: #{decoder_condition_forward.1} parent=11 // pred_fallthru
          _
        // Predicated region
        $region21: #{decoder_condition_forward.1} parent=11 // pred_check
          %p428 = pneg %p192
        $region22: #{decoder_condition_forward.1} parent=11 // pred_check_branch
          %430 = sbr.rel (%p428) target = $region24
        $region23: #{decoder_condition_forward.1} parent=11 // pred_region
          _
        $region24: #{decoder_condition_forward.1} parent=11 // pred_fallthru
          _
        // Predicated region
        $region25: #{decoder_condition_forward.1} parent=11 // pred_check
          %p431 = pneg %p213
        $region26: #{decoder_condition_forward.1} parent=11 // pred_check_branch
          %433 = sbr.rel (%p431) target = $region28
        $region27: #{decoder_condition_forward.1} parent=11 // pred_region
          _
        $region28: #{decoder_condition_forward.1} parent=11 // pred_fallthru
          _
        // Predicated region
        $region29: #{decoder_condition_forward.1} parent=11 // pred_check
          %p434 = pneg %p234
        $region30: #{decoder_condition_forward.1} parent=11 // pred_check_branch
          %436 = sbr.rel (%p434) target = $region32
        $region31: #{decoder_condition_forward.1} parent=11 // pred_region
          _
        $region32: #{decoder_condition_forward.1} parent=11 // pred_fallthru
          _
        // Predicated region
        $region33: #{decoder_condition_forward.1} parent=11 // pred_check
          %p437 = pneg %p255
        $region34: #{decoder_condition_forward.1} parent=11 // pred_check_branch
          %439 = sbr.rel (%p437) target = $region36
        $region35: #{decoder_condition_forward.1} parent=11 // pred_region
          _
        $region36: #{decoder_condition_forward.1} parent=11 // pred_fallthru
          _
        // Predicated region
        $region37: #{decoder_condition_forward.1} parent=11 // pred_check
          %p440 = pneg %p276
        $region38: #{decoder_condition_forward.1} parent=11 // pred_check_branch
          %442 = sbr.rel (%p440) target = $region40
        $region39: #{decoder_condition_forward.1} parent=11 // pred_region
          _
        $region40: #{decoder_condition_forward.1} parent=11 // pred_fallthru
          _
        // Predicated region
        $region41: #{decoder_condition_forward.1} parent=11 // pred_check
          %p443 = pneg %p297
        $region42: #{decoder_condition_forward.1} parent=11 // pred_check_branch
          %445 = sbr.rel (%p443) target = $region44
        $region43: #{decoder_condition_forward.1} parent=11 // pred_region
          _
        $region44: #{decoder_condition_forward.1} parent=11 // pred_fallthru
          _
        // Predicated region
        $region45: #{decoder_condition_forward.1} parent=11 // pred_check
          %p446 = pneg %p318
        $region46: #{decoder_condition_forward.1} parent=11 // pred_check_branch
          %448 = sbr.rel (%p446) target = $region48
        $region47: #{decoder_condition_forward.1} parent=11 // pred_region
          _
        $region48: #{decoder_condition_forward.1} parent=11 // pred_fallthru
          _
        // Predicated region
        $region49: #{decoder_condition_forward.1} parent=11 // pred_check
          %p449 = pneg %p339
        $region50: #{decoder_condition_forward.1} parent=11 // pred_check_branch
          %451 = sbr.rel (%p449) target = $region52
        $region51: #{decoder_condition_forward.1} parent=11 // pred_region
          _
        $region52: #{decoder_condition_forward.1} parent=11 // pred_fallthru
          _
        // Predicated region
        $region53: #{decoder_condition_forward.1} parent=11 // pred_check
          %p452 = pneg %p360
        $region54: #{decoder_condition_forward.1} parent=11 // pred_check_branch
          %454 = sbr.rel (%p452) target = $region56
        $region55: #{decoder_condition_forward.1} parent=11 // pred_region
          _
        $region56: #{decoder_condition_forward.1} parent=11 // pred_fallthru
          _
        // Predicated region
        $region57: #{decoder_condition_forward.1} parent=11 // pred_check
          %p455 = pneg %p381
        $region58: #{decoder_condition_forward.1} parent=11 // pred_check_branch
          %457 = sbr.rel (%p455) target = $region60
        $region59: #{decoder_condition_forward.1} parent=11 // pred_region
          _
        $region60: #{decoder_condition_forward.1} parent=11 // pred_fallthru
          _
      $region12: #{decoder_condition_forward.1} parent=5 // pred_fallthru
        _
      %p458 = scmp.lt.s32.totalorder %s25, 2
      // Predicated region
      $region61: #{decoder_condition_forward.1} parent=5 // pred_check
        %p459 = pneg %p458
      $region62: #{decoder_condition_forward.1} parent=5 // pred_check_branch
        %461 = sbr.rel (%p459) target = $region64
      $region63: #{decoder_condition_forward.1} parent=5 // pred_region
        // Predicated region
        $region65: #{decoder_condition_forward.1} parent=63 // pred_check
          %p462 = pneg %p45
        $region66: #{decoder_condition_forward.1} parent=63 // pred_check_branch
          %464 = sbr.rel (%p462) target = $region68
        $region67: #{decoder_condition_forward.1} parent=63 // pred_region
          %p465 = scmp.lt.s32.totalorder %s25, 1
          %s466 = scalar_select %p465, %s25, 1
          %s467 = smul.addr %s466, 2
          %s468 = smul.addr %s467, 8
          %s469 = scalar_lea.vmem %s0, %s468
        $region68: #{decoder_condition_forward.1} parent=63 // pred_fallthru
          _
        // Predicated region
        $region69: #{decoder_condition_forward.1} parent=63 // pred_check
          %p470 = pneg %p71
        $region70: #{decoder_condition_forward.1} parent=63 // pred_check_branch
          %472 = sbr.rel (%p470) target = $region72
        $region71: #{decoder_condition_forward.1} parent=63 // pred_region
          %p473 = scmp.lt.s32.totalorder %s25, 1
          %s474 = scalar_select %p473, %s25, 1
          %s475 = scalar_lea.vmem %s1, %s474
        $region72: #{decoder_condition_forward.1} parent=63 // pred_fallthru
          _
        // Predicated region
        $region73: #{decoder_condition_forward.1} parent=63 // pred_check
          %p476 = pneg %p97
        $region74: #{decoder_condition_forward.1} parent=63 // pred_check_branch
          %478 = sbr.rel (%p476) target = $region76
        $region75: #{decoder_condition_forward.1} parent=63 // pred_region
          %p479 = scmp.lt.s32.totalorder %s25, 1
          %s480 = scalar_select %p479, %s25, 1
          %s481 = smul.addr %s480, 2
          %s482 = smul.addr %s481, 8
          %s483 = scalar_lea.vmem %s2, %s482
        $region76: #{decoder_condition_forward.1} parent=63 // pred_fallthru
          _
        // Predicated region
        $region77: #{decoder_condition_forward.1} parent=63 // pred_check
          %p484 = pneg %p123
        $region78: #{decoder_condition_forward.1} parent=63 // pred_check_branch
          %486 = sbr.rel (%p484) target = $region80
        $region79: #{decoder_condition_forward.1} parent=63 // pred_region
          %p487 = scmp.lt.s32.totalorder %s25, 1
          %s488 = scalar_select %p487, %s25, 1
          %s489 = smul.addr %s488, 2
          %s490 = scalar_lea.vmem %s3, %s489
        $region80: #{decoder_condition_forward.1} parent=63 // pred_fallthru
          _
      $region64: #{decoder_condition_forward.1} parent=5 // pred_fallthru
        _
      %p491 = scmp.le.s32.totalorder 1, %s25
      %p492 = scmp.lt.s32.totalorder %s25, 3
      %p493 = pnand %p491, %p492
      %p494 = pneg %p493
      // Predicated region
      $region81: #{decoder_condition_forward.1} parent=5 // pred_check
        _
      $region82: #{decoder_condition_forward.1} parent=5 // pred_check_branch
        %496 = sbr.rel (%p493) target = $region84
      $region83: #{decoder_condition_forward.1} parent=5 // pred_region
        %s497 = ssub.s32 %s25, 1
        %p498 = scmp.lt.s32.totalorder %s30, 1
        %s499 = scalar_select %p498, %s30, 1
        %s500 = smul.addr %s499, 2
        %s501 = smul.addr %s500, 8
        %s502 = scalar_lea.vmem %s0, %s501
        %p503 = pneg %p51
        %p504 = pneg %p48
        %p505 = scmp.lt.s32.totalorder %s30, 1
        %s506 = scalar_select %p505, %s30, 1
        %s507 = scalar_lea.vmem %s1, %s506
        %p508 = pneg %p77
        %p509 = pneg %p74
        %p510 = scmp.lt.s32.totalorder %s30, 1
        %s511 = scalar_select %p510, %s30, 1
        %s512 = smul.addr %s511, 2
        %s513 = smul.addr %s512, 8
        %s514 = scalar_lea.vmem %s2, %s513
        %p515 = pneg %p103
        %p516 = pneg %p100
        %p517 = scmp.lt.s32.totalorder %s30, 1
        %s518 = scalar_select %p517, %s30, 1
        %s519 = smul.addr %s518, 2
        %s520 = scalar_lea.vmem %s3, %s519
        %p521 = pneg %p129
        %p522 = pneg %p126
        %p523 = pneg %p150
        %p524 = pneg %p147
        %p525 = pneg %p171
        %p526 = pneg %p168
        %p527 = pneg %p192
        %p528 = pneg %p189
        %p529 = pneg %p213
        %p530 = pneg %p210
        %p531 = pneg %p234
        %p532 = pneg %p231
        %p533 = pneg %p255
        %p534 = pneg %p252
        %p535 = pneg %p276
        %p536 = pneg %p273
        %p537 = pneg %p297
        %p538 = pneg %p294
        %p539 = pneg %p318
        %p540 = pneg %p315
        %p541 = pneg %p339
        %p542 = pneg %p336
        %p543 = pneg %p360
        %p544 = pneg %p357
        %p545 = pneg %p381
        %p546 = pneg %p378
        %p547 = pneg %p407
        %p548 = pneg %p404
        %s549 = sand.u32 %s394, 1
        %s550 = scalar_lea.sflag [#allocation3], %s549
        %s551 = sand.u32 %s394, 1
        %s552 = smul.addr %s551, 16
        %s553 = scalar_lea.vmem [#allocation2], %s552
        %p554 = scmp.lt.s32.totalorder %s30, 1
        %s555 = scalar_select %p554, %s30, 1
        %s556 = smul.addr %s555, 2
        %s557 = smul.addr %s556, 8
        %s558 = scalar_lea.vmem %s0, %s557
        %p559 = scmp.lt.s32.totalorder %s30, 1
        %s560 = scalar_select %p559, %s30, 1
        %s561 = scalar_lea.vmem %s1, %s560
        %p562 = scmp.lt.s32.totalorder %s30, 1
        %s563 = scalar_select %p562, %s30, 1
        %s564 = smul.addr %s563, 2
        %s565 = smul.addr %s564, 8
        %s566 = scalar_lea.vmem %s2, %s565
        %p567 = scmp.lt.s32.totalorder %s30, 1
        %s568 = scalar_select %p567, %s30, 1
        %s569 = smul.addr %s568, 2
        %s570 = scalar_lea.vmem %s3, %s569
        %v571 = vld [vmem:[%s558] sm:$0xff]
        %v572 = vld [vmem:[%s558 + $0x8] sm:$0xff]
        %v573 = vld [vmem:[%s561] sm:$0x1]
        %v574 = vld [vmem:[%s566] sm:$0xff]
        %v575 = vld [vmem:[%s566 + $0x8] sm:$0xff]
        %v576 = vld [vmem:[%s570] sm:$0x3]
        %v577 = vld [vmem:[%s4] sm:$0xff]
        %v578 = vld [vmem:[%s4 + $0x8] sm:$0xff]
        %v579 = vld [vmem:[%s4 + $0x10] sm:$0xff]
        %v580 = vld [vmem:[%s4 + $0x18] sm:$0xff]
        %v581 = vld [vmem:[%s5] sm:$0x1]
        %v583 = vlaneseq
        %v584 = vshrl.u32 %v583, 7
        %v585 = vsub.s32 0, %v584
        %v586 = vrot.slane %v581, %v585
        %vm588 = vcmask 261120
        %v590 = vsel %vm588, %v571, 0
        %v593 = vsel %vm588, %v572, 0
        %595 = vmatprep.subr.mxu0 0.0
        %596 = vmatpush1.msra.mxu0 %v577
        %597 = vmatprep.subr.mxu0 0.0
        %598 = vmatpush1.msra.mxu0 %v578
        %599 = vmatprep.subr.mxu0 0.0
        %600 = vmatpush1.msra.mxu0 %v579
        %601 = vmatprep.subr.mxu0 0.0
        %602 = vmatpush1.msra.mxu0 %v580
        %603 = vmatprep.subr.mxu0 0.0
        %604 = vmatpush1.msra.mxu0 0.0
        %605 = vmatprep.subr.mxu0 0.0
        %606 = vmatpush1.msra.mxu0 0.0
        %607 = vmatprep.subr.mxu0 0.0
        %608 = vmatpush1.msra.mxu0 0.0
        %609 = vmatprep.subr.mxu0 0.0
        %610 = vmatpush1.msra.mxu0 0.0
        %611 = vmatprep.subr.mxu0 0.0
        %612 = vmatpush1.msra.mxu0 0.0
        %613 = vmatprep.subr.mxu0 0.0
        %614 = vmatpush1.msra.mxu0 0.0
        %615 = vmatprep.subr.mxu0 0.0
        %616 = vmatpush1.msra.mxu0 0.0
        %617 = vmatprep.subr.mxu0 0.0
        %618 = vmatpush1.msra.mxu0 0.0
        %619 = vmatprep.subr.mxu0 0.0
        %620 = vmatpush1.msra.mxu0 0.0
        %621 = vmatprep.subr.mxu0 0.0
        %622 = vmatpush1.msra.mxu0 0.0
        %623 = vmatprep.subr.mxu0 0.0
        %624 = vmatpush1.msra.mxu0 0.0
        %625 = vmatprep.subr.mxu0 0.0
        %626 = vmatpush1.msra.mxu0 0.0
        %627 = vmatprep.subr.mxu0 0.0
        %628 = vmatpush1.msra.mxu0 0.0
        %629 = vmatprep.subr.mxu0 0.0
        %630 = vmatpush1.msra.mxu0 0.0
        %631 = vmatprep.subr.mxu0 0.0
        %632 = vmatpush1.msra.mxu0 0.0
        %633 = vmatprep.subr.mxu0 0.0
        %634 = vmatpush1.msra.mxu0 0.0
        %635 = vmatprep.subr.mxu0 0.0
        %636 = vmatpush1.msra.mxu0 0.0
        %637 = vmatprep.subr.mxu0 0.0
        %638 = vmatpush1.msra.mxu0 0.0
        %639 = vmatprep.subr.mxu0 0.0
        %640 = vmatpush1.msra.mxu0 0.0
        %641 = vmatprep.subr.mxu0 0.0
        %642 = vmatpush1.msra.mxu0 0.0
        %643 = vmatprep.subr.mxu0 0.0
        %644 = vmatpush1.msra.mxu0 0.0
        %645 = vmatprep.subr.mxu0 0.0
        %646 = vmatpush1.msra.mxu0 0.0
        %647 = vmatprep.subr.mxu0 0.0
        %648 = vmatpush1.msra.mxu0 0.0
        %649 = vmatprep.subr.mxu0 0.0
        %650 = vmatpush1.msra.mxu0 0.0
        %651 = vmatprep.subr.mxu0 0.0
        %652 = vmatpush1.msra.mxu0 0.0
        %653 = vmatprep.subr.mxu0 0.0
        %654 = vmatpush1.msra.mxu0 0.0
        %655 = vmatprep.subr.mxu0 0.0
        %656 = vmatpush1.msra.mxu0 0.0
        %657 = vmatprep.subr.mxu0 0.0
        %658 = vmatpush1.msra.mxu0 0.0
        %659 = vmatprep.mubr.f32.mxu0 0.0
        %660 = vmatmul.mubr.f32.gmra.mrb[0].mxu0 %v590
        %v661 = vpop.f32.mrb[0].mxu0
        %v662 = vadd.f32 %v586, %v661
        %v663 = vpop.f32.mrb[0].mxu0
        %664 = vmatprep.mubr.f32.mxu0 0.0
        %665 = vmatmul.mubr.f32.gmra.mrb[0].mxu0 %v593
        %v666 = vpop.f32.mrb[0].mxu0
        %v667 = vadd.f32 %v586, %v666
        %v668 = vpop.f32.mrb[0].mxu0
        %669 = vdwg.mxu0
        %672 = vrot.lane.b32.xlu0 %v662, 96
        %v673 = vpop.permute.xlu0 %672
        %674 = vrot.lane.b32.xlu0 %v667, 96
        %v675 = vpop.permute.xlu0 %674
        %vm676 = vcmask 130048
        %v677 = vsel %vm676, %v662, 0
        %v679 = vsel %vm676, %v667, 0
        %v681 = vsel %vm676, %v673, 0
        %v683 = vsel %vm676, %v675, 0
        %685 = vmatprep.subr.mxu0 0.0
        %686 = vmatpush1.xpose.msra.mxu0 %v681
        %687 = vmatprep.subr.mxu0 0.0
        %688 = vmatpush1.xpose.msra.mxu0 %v683
        %689 = vmatprep.subr.mxu0 0.0
        %690 = vmatpush1.xpose.msra.mxu0 0.0
        %691 = vmatprep.subr.mxu0 0.0
        %692 = vmatpush1.xpose.msra.mxu0 0.0
        %693 = vmatprep.subr.mxu0 0.0
        %694 = vmatpush1.xpose.msra.mxu0 0.0
        %695 = vmatprep.subr.mxu0 0.0
        %696 = vmatpush1.xpose.msra.mxu0 0.0
        %697 = vmatprep.subr.mxu0 0.0
        %698 = vmatpush1.xpose.msra.mxu0 0.0
        %699 = vmatprep.subr.mxu0 0.0
        %700 = vmatpush1.xpose.msra.mxu0 0.0
        %701 = vmatprep.subr.mxu0 0.0
        %702 = vmatpush1.xpose.msra.mxu0 0.0
        %703 = vmatprep.subr.mxu0 0.0
        %704 = vmatpush1.xpose.msra.mxu0 0.0
        %705 = vmatprep.subr.mxu0 0.0
        %706 = vmatpush1.xpose.msra.mxu0 0.0
        %707 = vmatprep.subr.mxu0 0.0
        %708 = vmatpush1.xpose.msra.mxu0 0.0
        %709 = vmatprep.subr.mxu0 0.0
        %710 = vmatpush1.xpose.msra.mxu0 0.0
        %711 = vmatprep.subr.mxu0 0.0
        %712 = vmatpush1.xpose.msra.mxu0 0.0
        %713 = vmatprep.subr.mxu0 0.0
        %714 = vmatpush1.xpose.msra.mxu0 0.0
        %715 = vmatprep.subr.mxu0 0.0
        %716 = vmatpush1.xpose.msra.mxu0 0.0
        %717 = vmatprep.subr.mxu0 0.0
        %718 = vmatpush1.xpose.msra.mxu0 0.0
        %719 = vmatprep.subr.mxu0 0.0
        %720 = vmatpush1.xpose.msra.mxu0 0.0
        %721 = vmatprep.subr.mxu0 0.0
        %722 = vmatpush1.xpose.msra.mxu0 0.0
        %723 = vmatprep.subr.mxu0 0.0
        %724 = vmatpush1.xpose.msra.mxu0 0.0
        %725 = vmatprep.subr.mxu0 0.0
        %726 = vmatpush1.xpose.msra.mxu0 0.0
        %727 = vmatprep.subr.mxu0 0.0
        %728 = vmatpush1.xpose.msra.mxu0 0.0
        %729 = vmatprep.subr.mxu0 0.0
        %730 = vmatpush1.xpose.msra.mxu0 0.0
        %731 = vmatprep.subr.mxu0 0.0
        %732 = vmatpush1.xpose.msra.mxu0 0.0
        %733 = vmatprep.subr.mxu0 0.0
        %734 = vmatpush1.xpose.msra.mxu0 0.0
        %735 = vmatprep.subr.mxu0 0.0
        %736 = vmatpush1.xpose.msra.mxu0 0.0
        %737 = vmatprep.subr.mxu0 0.0
        %738 = vmatpush1.xpose.msra.mxu0 0.0
        %739 = vmatprep.subr.mxu0 0.0
        %740 = vmatpush1.xpose.msra.mxu0 0.0
        %741 = vmatprep.subr.mxu0 0.0
        %742 = vmatpush1.xpose.msra.mxu0 0.0
        %743 = vmatprep.subr.mxu0 0.0
        %744 = vmatpush1.xpose.msra.mxu0 0.0
        %745 = vmatprep.subr.mxu0 0.0
        %746 = vmatpush1.xpose.msra.mxu0 0.0
        %747 = vmatprep.subr.mxu0 0.0
        %748 = vmatpush1.xpose.msra.mxu0 0.0
        %749 = vmatprep.mubr.f32.mxu0 0.0
        %750 = vmatmul.mubr.f32.gmra.mrb[0].mxu0 %v677
        %v751 = vpop.f32.mrb[0].mxu0
        %v752 = vadd.f32 0.0, %v751
        %v753 = vpop.f32.mrb[0].mxu0
        %754 = vmatprep.mubr.f32.mxu0 0.0
        %755 = vmatmul.mubr.f32.gmra.mrb[0].mxu0 %v679
        %v756 = vpop.f32.mrb[0].mxu0
        %v757 = vadd.f32 0.0, %v756
        %v758 = vpop.f32.mrb[0].mxu0
        %759 = vdwg.mxu0
        %v760 = vmul.f32 %v752, 0.25
        %v761 = vmul.f32 %v757, 0.25
        %v763 = vlaneseq
        %v764 = vshrl.u32 %v763, 7
        %v765 = vsub.s32 0, %v764
        %v766 = vrot.slane %v573, %v765
        %v768 = vadd.f32 %v760, %v766
        %v769 = vadd.f32 %v761, %v766
        %v770 = vsel %vm676, %v768, -inf
        %771 = vmax.xlane.f32.xlu0 %v770
        %v772 = vpop.xlane.xlu0 %771
        %v773 = vsel %vm676, %v769, -inf
        %774 = vmax.xlane.f32.xlu0 %v773
        %v775 = vpop.xlane.xlu0 %774
        %v776 = vsub.f32 %v768, %v772
        %v777 = vsub.f32 %v769, %v775
        %v778 = vmul.f32 %v776, 1.442695
        %v779 = vpow.pop %v778
        %v780 = vmul.f32 %v777, 1.442695
        %v781 = vpow.pop %v780
        %v782 = vsel %vm676, %v779, 0.0
        %783 = vadd.xlane.f32.xlu0 %v782
        %v784 = vpop.xlane.xlu0 %783
        %v785 = vsel %vm676, %v781, 0.0
        %786 = vadd.xlane.f32.xlu0 %v785
        %v787 = vpop.xlane.xlu0 %786
        %v788 = vrcp.pop %v784
        %v789 = vrcp.pop %v787
        %v790 = vmul.f32 %v779, %v788
        %v791 = vmul.f32 %v781, %v789
        %792 = vrot.lane.b32.xlu0 %v662, 64
        %v793 = vpop.permute.xlu0 %792
        %794 = vrot.lane.b32.xlu0 %v667, 64
        %v795 = vpop.permute.xlu0 %794
        %v799 = vsel %vm676, %v790, 0
        %v802 = vsel %vm676, %v791, 0
        %804 = vmatprep.subr.mxu0 0.0
        %805 = vmatpush1.msra.mxu0 %v793
        %806 = vmatprep.subr.mxu0 0.0
        %807 = vmatpush1.msra.mxu0 %v795
        %808 = vmatprep.subr.mxu0 0.0
        %809 = vmatpush1.msra.mxu0 0.0
        %810 = vmatprep.subr.mxu0 0.0
        %811 = vmatpush1.msra.mxu0 0.0
        %812 = vmatprep.subr.mxu0 0.0
        %813 = vmatpush1.msra.mxu0 0.0
        %814 = vmatprep.subr.mxu0 0.0
        %815 = vmatpush1.msra.mxu0 0.0
        %816 = vmatprep.subr.mxu0 0.0
        %817 = vmatpush1.msra.mxu0 0.0
        %818 = vmatprep.subr.mxu0 0.0
        %819 = vmatpush1.msra.mxu0 0.0
        %820 = vmatprep.subr.mxu0 0.0
        %821 = vmatpush1.msra.mxu0 0.0
        %822 = vmatprep.subr.mxu0 0.0
        %823 = vmatpush1.msra.mxu0 0.0
        %824 = vmatprep.subr.mxu0 0.0
        %825 = vmatpush1.msra.mxu0 0.0
        %826 = vmatprep.subr.mxu0 0.0
        %827 = vmatpush1.msra.mxu0 0.0
        %828 = vmatprep.subr.mxu0 0.0
        %829 = vmatpush1.msra.mxu0 0.0
        %830 = vmatprep.subr.mxu0 0.0
        %831 = vmatpush1.msra.mxu0 0.0
        %832 = vmatprep.subr.mxu0 0.0
        %833 = vmatpush1.msra.mxu0 0.0
        %834 = vmatprep.subr.mxu0 0.0
        %835 = vmatpush1.msra.mxu0 0.0
        %836 = vmatprep.subr.mxu0 0.0
        %837 = vmatpush1.msra.mxu0 0.0
        %838 = vmatprep.subr.mxu0 0.0
        %839 = vmatpush1.msra.mxu0 0.0
        %840 = vmatprep.subr.mxu0 0.0
        %841 = vmatpush1.msra.mxu0 0.0
        %842 = vmatprep.subr.mxu0 0.0
        %843 = vmatpush1.msra.mxu0 0.0
        %844 = vmatprep.subr.mxu0 0.0
        %845 = vmatpush1.msra.mxu0 0.0
        %846 = vmatprep.subr.mxu0 0.0
        %847 = vmatpush1.msra.mxu0 0.0
        %848 = vmatprep.subr.mxu0 0.0
        %849 = vmatpush1.msra.mxu0 0.0
        %850 = vmatprep.subr.mxu0 0.0
        %851 = vmatpush1.msra.mxu0 0.0
        %852 = vmatprep.subr.mxu0 0.0
        %853 = vmatpush1.msra.mxu0 0.0
        %854 = vmatprep.subr.mxu0 0.0
        %855 = vmatpush1.msra.mxu0 0.0
        %856 = vmatprep.subr.mxu0 0.0
        %857 = vmatpush1.msra.mxu0 0.0
        %858 = vmatprep.subr.mxu0 0.0
        %859 = vmatpush1.msra.mxu0 0.0
        %860 = vmatprep.subr.mxu0 0.0
        %861 = vmatpush1.msra.mxu0 0.0
        %862 = vmatprep.subr.mxu0 0.0
        %863 = vmatpush1.msra.mxu0 0.0
        %864 = vmatprep.subr.mxu0 0.0
        %865 = vmatpush1.msra.mxu0 0.0
        %866 = vmatprep.subr.mxu0 0.0
        %867 = vmatpush1.msra.mxu0 0.0
        %868 = vmatprep.mubr.f32.mxu0 0.0
        %869 = vmatmul.mubr.f32.gmra.mrb[0].mxu0 %v799
        %v870 = vpop.f32.mrb[0].mxu0
        %v871 = vadd.f32 0.0, %v870
        %v872 = vpop.f32.mrb[0].mxu0
        %873 = vmatprep.mubr.f32.mxu0 0.0
        %874 = vmatmul.mubr.f32.gmra.mrb[0].mxu0 %v802
        %v875 = vpop.f32.mrb[0].mxu0
        %v876 = vadd.f32 0.0, %v875
        %v877 = vpop.f32.mrb[0].mxu0
        %878 = vdwg.mxu0
        %879 = vrot.lane.b32.xlu0 %v662, 112
        %v880 = vpop.permute.xlu0 %879
        %881 = vrot.lane.b32.xlu0 %v667, 112
        %v882 = vpop.permute.xlu0 %881
        %883 = vrot.lane.b32.xlu0 %v662, 80
        %v884 = vpop.permute.xlu0 %883
        %885 = vrot.lane.b32.xlu0 %v667, 80
        %v886 = vpop.permute.xlu0 %885
        %v887 = vsel %vm676, %v880, 0
        %v889 = vsel %vm676, %v882, 0
        %v891 = vsel %vm676, %v884, 0
        %v893 = vsel %vm676, %v886, 0
        %895 = vmatprep.subr.mxu0 0.0
        %896 = vmatpush1.xpose.msra.mxu0 %v891
        %897 = vmatprep.subr.mxu0 0.0
        %898 = vmatpush1.xpose.msra.mxu0 %v893
        %899 = vmatprep.subr.mxu0 0.0
        %900 = vmatpush1.xpose.msra.mxu0 0.0
        %901 = vmatprep.subr.mxu0 0.0
        %902 = vmatpush1.xpose.msra.mxu0 0.0
        %903 = vmatprep.subr.mxu0 0.0
        %904 = vmatpush1.xpose.msra.mxu0 0.0
        %905 = vmatprep.subr.mxu0 0.0
        %906 = vmatpush1.xpose.msra.mxu0 0.0
        %907 = vmatprep.subr.mxu0 0.0
        %908 = vmatpush1.xpose.msra.mxu0 0.0
        %909 = vmatprep.subr.mxu0 0.0
        %910 = vmatpush1.xpose.msra.mxu0 0.0
        %911 = vmatprep.subr.mxu0 0.0
        %912 = vmatpush1.xpose.msra.mxu0 0.0
        %913 = vmatprep.subr.mxu0 0.0
        %914 = vmatpush1.xpose.msra.mxu0 0.0
        %915 = vmatprep.subr.mxu0 0.0
        %916 = vmatpush1.xpose.msra.mxu0 0.0
        %917 = vmatprep.subr.mxu0 0.0
        %918 = vmatpush1.xpose.msra.mxu0 0.0
        %919 = vmatprep.subr.mxu0 0.0
        %920 = vmatpush1.xpose.msra.mxu0 0.0
        %921 = vmatprep.subr.mxu0 0.0
        %922 = vmatpush1.xpose.msra.mxu0 0.0
        %923 = vmatprep.subr.mxu0 0.0
        %924 = vmatpush1.xpose.msra.mxu0 0.0
        %925 = vmatprep.subr.mxu0 0.0
        %926 = vmatpush1.xpose.msra.mxu0 0.0
        %927 = vmatprep.subr.mxu0 0.0
        %928 = vmatpush1.xpose.msra.mxu0 0.0
        %929 = vmatprep.subr.mxu0 0.0
        %930 = vmatpush1.xpose.msra.mxu0 0.0
        %931 = vmatprep.subr.mxu0 0.0
        %932 = vmatpush1.xpose.msra.mxu0 0.0
        %933 = vmatprep.subr.mxu0 0.0
        %934 = vmatpush1.xpose.msra.mxu0 0.0
        %935 = vmatprep.subr.mxu0 0.0
        %936 = vmatpush1.xpose.msra.mxu0 0.0
        %937 = vmatprep.subr.mxu0 0.0
        %938 = vmatpush1.xpose.msra.mxu0 0.0
        %939 = vmatprep.subr.mxu0 0.0
        %940 = vmatpush1.xpose.msra.mxu0 0.0
        %941 = vmatprep.subr.mxu0 0.0
        %942 = vmatpush1.xpose.msra.mxu0 0.0
        %943 = vmatprep.subr.mxu0 0.0
        %944 = vmatpush1.xpose.msra.mxu0 0.0
        %945 = vmatprep.subr.mxu0 0.0
        %946 = vmatpush1.xpose.msra.mxu0 0.0
        %947 = vmatprep.subr.mxu0 0.0
        %948 = vmatpush1.xpose.msra.mxu0 0.0
        %949 = vmatprep.subr.mxu0 0.0
        %950 = vmatpush1.xpose.msra.mxu0 0.0
        %951 = vmatprep.subr.mxu0 0.0
        %952 = vmatpush1.xpose.msra.mxu0 0.0
        %953 = vmatprep.subr.mxu0 0.0
        %954 = vmatpush1.xpose.msra.mxu0 0.0
        %955 = vmatprep.subr.mxu0 0.0
        %956 = vmatpush1.xpose.msra.mxu0 0.0
        %957 = vmatprep.subr.mxu0 0.0
        %958 = vmatpush1.xpose.msra.mxu0 0.0
        %959 = vmatprep.mubr.f32.mxu0 0.0
        %960 = vmatmul.mubr.f32.gmra.mrb[0].mxu0 %v887
        %v961 = vpop.f32.mrb[0].mxu0
        %v962 = vadd.f32 0.0, %v961
        %v963 = vpop.f32.mrb[0].mxu0
        %964 = vmatprep.mubr.f32.mxu0 0.0
        %965 = vmatmul.mubr.f32.gmra.mrb[0].mxu0 %v889
        %v966 = vpop.f32.mrb[0].mxu0
        %v967 = vadd.f32 0.0, %v966
        %v968 = vpop.f32.mrb[0].mxu0
        %969 = vdwg.mxu0
        %v970 = vmul.f32 %v962, 0.25
        %v971 = vmul.f32 %v967, 0.25
        %v972 = vadd.f32 %v970, %v766
        %v973 = vadd.f32 %v971, %v766
        %v974 = vsel %vm676, %v972, -inf
        %975 = vmax.xlane.f32.xlu0 %v974
        %v976 = vpop.xlane.xlu0 %975
        %v977 = vsel %vm676, %v973, -inf
        %978 = vmax.xlane.f32.xlu0 %v977
        %v979 = vpop.xlane.xlu0 %978
        %v980 = vsub.f32 %v972, %v976
        %v981 = vsub.f32 %v973, %v979
        %v982 = vmul.f32 %v980, 1.442695
        %v983 = vpow.pop %v982
        %v984 = vmul.f32 %v981, 1.442695
        %v985 = vpow.pop %v984
        %v986 = vsel %vm676, %v983, 0.0
        %987 = vadd.xlane.f32.xlu0 %v986
        %v988 = vpop.xlane.xlu0 %987
        %v989 = vsel %vm676, %v985, 0.0
        %990 = vadd.xlane.f32.xlu0 %v989
        %v991 = vpop.xlane.xlu0 %990
        %v992 = vrcp.pop %v988
        %v993 = vrcp.pop %v991
        %v994 = vmul.f32 %v983, %v992
        %v995 = vmul.f32 %v985, %v993
        %996 = vrot.lane.b32.xlu0 %v662, 48
        %v997 = vpop.permute.xlu0 %996
        %998 = vrot.lane.b32.xlu0 %v667, 48
        %v999 = vpop.permute.xlu0 %998
        %v1003 = vsel %vm676, %v994, 0
        %v1006 = vsel %vm676, %v995, 0
        %1008 = vmatprep.subr.mxu0 0.0
        %1009 = vmatpush1.msra.mxu0 %v997
        %1010 = vmatprep.subr.mxu0 0.0
        %1011 = vmatpush1.msra.mxu0 %v999
        %1012 = vmatprep.subr.mxu0 0.0
        %1013 = vmatpush1.msra.mxu0 0.0
        %1014 = vmatprep.subr.mxu0 0.0
        %1015 = vmatpush1.msra.mxu0 0.0
        %1016 = vmatprep.subr.mxu0 0.0
        %1017 = vmatpush1.msra.mxu0 0.0
        %1018 = vmatprep.subr.mxu0 0.0
        %1019 = vmatpush1.msra.mxu0 0.0
        %1020 = vmatprep.subr.mxu0 0.0
        %1021 = vmatpush1.msra.mxu0 0.0
        %1022 = vmatprep.subr.mxu0 0.0
        %1023 = vmatpush1.msra.mxu0 0.0
        %1024 = vmatprep.subr.mxu0 0.0
        %1025 = vmatpush1.msra.mxu0 0.0
        %1026 = vmatprep.subr.mxu0 0.0
        %1027 = vmatpush1.msra.mxu0 0.0
        %1028 = vmatprep.subr.mxu0 0.0
        %1029 = vmatpush1.msra.mxu0 0.0
        %1030 = vmatprep.subr.mxu0 0.0
        %1031 = vmatpush1.msra.mxu0 0.0
        %1032 = vmatprep.subr.mxu0 0.0
        %1033 = vmatpush1.msra.mxu0 0.0
        %1034 = vmatprep.subr.mxu0 0.0
        %1035 = vmatpush1.msra.mxu0 0.0
        %1036 = vmatprep.subr.mxu0 0.0
        %1037 = vmatpush1.msra.mxu0 0.0
        %1038 = vmatprep.subr.mxu0 0.0
        %1039 = vmatpush1.msra.mxu0 0.0
        %1040 = vmatprep.subr.mxu0 0.0
        %1041 = vmatpush1.msra.mxu0 0.0
        %1042 = vmatprep.subr.mxu0 0.0
        %1043 = vmatpush1.msra.mxu0 0.0
        %1044 = vmatprep.subr.mxu0 0.0
        %1045 = vmatpush1.msra.mxu0 0.0
        %1046 = vmatprep.subr.mxu0 0.0
        %1047 = vmatpush1.msra.mxu0 0.0
        %1048 = vmatprep.subr.mxu0 0.0
        %1049 = vmatpush1.msra.mxu0 0.0
        %1050 = vmatprep.subr.mxu0 0.0
        %1051 = vmatpush1.msra.mxu0 0.0
        %1052 = vmatprep.subr.mxu0 0.0
        %1053 = vmatpush1.msra.mxu0 0.0
        %1054 = vmatprep.subr.mxu0 0.0
        %1055 = vmatpush1.msra.mxu0 0.0
        %1056 = vmatprep.subr.mxu0 0.0
        %1057 = vmatpush1.msra.mxu0 0.0
        %1058 = vmatprep.subr.mxu0 0.0
        %1059 = vmatpush1.msra.mxu0 0.0
        %1060 = vmatprep.subr.mxu0 0.0
        %1061 = vmatpush1.msra.mxu0 0.0
        %1062 = vmatprep.subr.mxu0 0.0
        %1063 = vmatpush1.msra.mxu0 0.0
        %1064 = vmatprep.subr.mxu0 0.0
        %1065 = vmatpush1.msra.mxu0 0.0
        %1066 = vmatprep.subr.mxu0 0.0
        %1067 = vmatpush1.msra.mxu0 0.0
        %1068 = vmatprep.subr.mxu0 0.0
        %1069 = vmatpush1.msra.mxu0 0.0
        %1070 = vmatprep.subr.mxu0 0.0
        %1071 = vmatpush1.msra.mxu0 0.0
        %1072 = vmatprep.mubr.f32.mxu0 0.0
        %1073 = vmatmul.mubr.f32.gmra.mrb[0].mxu0 %v1003
        %v1074 = vpop.f32.mrb[0].mxu0
        %v1075 = vadd.f32 0.0, %v1074
        %v1076 = vpop.f32.mrb[0].mxu0
        %1077 = vmatprep.mubr.f32.mxu0 0.0
        %1078 = vmatmul.mubr.f32.gmra.mrb[0].mxu0 %v1006
        %v1079 = vpop.f32.mrb[0].mxu0
        %v1080 = vadd.f32 0.0, %v1079
        %v1081 = vpop.f32.mrb[0].mxu0
        %1082 = vdwg.mxu0
        %1085 = vrot.lane.b32.xlu0 %v1075, 16
        %v1086 = vpop.permute.xlu0 %1085
        %1087 = vrot.lane.b32.xlu0 %v1080, 16
        %v1088 = vpop.permute.xlu0 %1087
        %v1091 = vsel %vm676, %v871, %v1086
        %v1092 = vsel %vm676, %v876, %v1088
        %v1093 = vld [vmem:[%s6] sm:$0xff]
        %v1094 = vld [vmem:[%s6 + $0x8] sm:$0xff]
        %v1095 = vld [vmem:[%s6 + $0x10] sm:$0xff]
        %v1096 = vld [vmem:[%s6 + $0x18] sm:$0xff]
        %v1097 = vld [vmem:[%s7] sm:$0x1]
        %v1099 = vlaneseq
        %v1100 = vshrl.u32 %v1099, 7
        %v1101 = vsub.s32 0, %v1100
        %v1102 = vrot.slane %v1097, %v1101
        %v1105 = vsel %vm588, %v1091, 0
        %v1108 = vsel %vm588, %v1092, 0
        %1110 = vmatprep.subr.mxu0 0.0
        %1111 = vmatpush1.msra.mxu0 %v1093
        %1112 = vmatprep.subr.mxu0 0.0
        %1113 = vmatpush1.msra.mxu0 %v1094
        %1114 = vmatprep.subr.mxu0 0.0
        %1115 = vmatpush1.msra.mxu0 %v1095
        %1116 = vmatprep.subr.mxu0 0.0
        %1117 = vmatpush1.msra.mxu0 %v1096
        %1118 = vmatprep.subr.mxu0 0.0
        %1119 = vmatpush1.msra.mxu0 0.0
        %1120 = vmatprep.subr.mxu0 0.0
        %1121 = vmatpush1.msra.mxu0 0.0
        %1122 = vmatprep.subr.mxu0 0.0
        %1123 = vmatpush1.msra.mxu0 0.0
        %1124 = vmatprep.subr.mxu0 0.0
        %1125 = vmatpush1.msra.mxu0 0.0
        %1126 = vmatprep.subr.mxu0 0.0
        %1127 = vmatpush1.msra.mxu0 0.0
        %1128 = vmatprep.subr.mxu0 0.0
        %1129 = vmatpush1.msra.mxu0 0.0
        %1130 = vmatprep.subr.mxu0 0.0
        %1131 = vmatpush1.msra.mxu0 0.0
        %1132 = vmatprep.subr.mxu0 0.0
        %1133 = vmatpush1.msra.mxu0 0.0
        %1134 = vmatprep.subr.mxu0 0.0
        %1135 = vmatpush1.msra.mxu0 0.0
        %1136 = vmatprep.subr.mxu0 0.0
        %1137 = vmatpush1.msra.mxu0 0.0
        %1138 = vmatprep.subr.mxu0 0.0
        %1139 = vmatpush1.msra.mxu0 0.0
        %1140 = vmatprep.subr.mxu0 0.0
        %1141 = vmatpush1.msra.mxu0 0.0
        %1142 = vmatprep.subr.mxu0 0.0
        %1143 = vmatpush1.msra.mxu0 0.0
        %1144 = vmatprep.subr.mxu0 0.0
        %1145 = vmatpush1.msra.mxu0 0.0
        %1146 = vmatprep.subr.mxu0 0.0
        %1147 = vmatpush1.msra.mxu0 0.0
        %1148 = vmatprep.subr.mxu0 0.0
        %1149 = vmatpush1.msra.mxu0 0.0
        %1150 = vmatprep.subr.mxu0 0.0
        %1151 = vmatpush1.msra.mxu0 0.0
        %1152 = vmatprep.subr.mxu0 0.0
        %1153 = vmatpush1.msra.mxu0 0.0
        %1154 = vmatprep.subr.mxu0 0.0
        %1155 = vmatpush1.msra.mxu0 0.0
        %1156 = vmatprep.subr.mxu0 0.0
        %1157 = vmatpush1.msra.mxu0 0.0
        %1158 = vmatprep.subr.mxu0 0.0
        %1159 = vmatpush1.msra.mxu0 0.0
        %1160 = vmatprep.subr.mxu0 0.0
        %1161 = vmatpush1.msra.mxu0 0.0
        %1162 = vmatprep.subr.mxu0 0.0
        %1163 = vmatpush1.msra.mxu0 0.0
        %1164 = vmatprep.subr.mxu0 0.0
        %1165 = vmatpush1.msra.mxu0 0.0
        %1166 = vmatprep.subr.mxu0 0.0
        %1167 = vmatpush1.msra.mxu0 0.0
        %1168 = vmatprep.subr.mxu0 0.0
        %1169 = vmatpush1.msra.mxu0 0.0
        %1170 = vmatprep.subr.mxu0 0.0
        %1171 = vmatpush1.msra.mxu0 0.0
        %1172 = vmatprep.subr.mxu0 0.0
        %1173 = vmatpush1.msra.mxu0 0.0
        %1174 = vmatprep.mubr.f32.mxu0 0.0
        %1175 = vmatmul.mubr.f32.gmra.mrb[0].mxu0 %v1105
        %v1176 = vpop.f32.mrb[0].mxu0
        %v1177 = vadd.f32 %v1102, %v1176
        %v1178 = vpop.f32.mrb[0].mxu0
        %1179 = vmatprep.mubr.f32.mxu0 0.0
        %1180 = vmatmul.mubr.f32.gmra.mrb[0].mxu0 %v1108
        %v1181 = vpop.f32.mrb[0].mxu0
        %v1182 = vadd.f32 %v1102, %v1181
        %v1183 = vpop.f32.mrb[0].mxu0
        %1184 = vdwg.mxu0
        %v1185 = vadd.f32 %v1177, %v571
        %v1186 = vadd.f32 %v1182, %v572
        %v1187 = vld [vmem:[%s8] sm:$0xff]
        %v1188 = vld [vmem:[%s8 + $0x8] sm:$0xff]
        %v1189 = vld [vmem:[%s8 + $0x10] sm:$0xff]
        %v1190 = vld [vmem:[%s8 + $0x18] sm:$0xff]
        %v1191 = vld [vmem:[%s8 + $0x20] sm:$0xff]
        %v1192 = vld [vmem:[%s8 + $0x28] sm:$0xff]
        %v1193 = vld [vmem:[%s8 + $0x30] sm:$0xff]
        %v1194 = vld [vmem:[%s8 + $0x38] sm:$0xff]
        %v1195 = vld [vmem:[%s8 + $0x40] sm:$0xff]
        %v1196 = vld [vmem:[%s8 + $0x48] sm:$0xff]
        %v1197 = vld [vmem:[%s8 + $0x50] sm:$0xff]
        %v1198 = vld [vmem:[%s8 + $0x58] sm:$0xff]
        %v1199 = vld [vmem:[%s8 + $0x60] sm:$0xff]
        %v1200 = vld [vmem:[%s8 + $0x68] sm:$0xff]
        %v1201 = vld [vmem:[%s8 + $0x70] sm:$0xff]
        %v1202 = vld [vmem:[%s8 + $0x78] sm:$0xff]
        %v1203 = vld [vmem:[%s8 + $0x80] sm:$0xff]
        %v1204 = vld [vmem:[%s8 + $0x88] sm:$0xff]
        %v1205 = vld [vmem:[%s8 + $0x90] sm:$0xff]
        %v1206 = vld [vmem:[%s8 + $0x98] sm:$0xff]
        %v1207 = vld [vmem:[%s8 + $0xa0] sm:$0xff]
        %v1208 = vld [vmem:[%s8 + $0xa8] sm:$0xff]
        %v1209 = vld [vmem:[%s8 + $0xb0] sm:$0xff]
        %v1210 = vld [vmem:[%s8 + $0xb8] sm:$0xff]
        %v1211 = vld [vmem:[%s8 + $0xc0] sm:$0xff]
        %v1212 = vld [vmem:[%s8 + $0xc8] sm:$0xff]
        %v1213 = vld [vmem:[%s8 + $0xd0] sm:$0xff]
        %v1214 = vld [vmem:[%s8 + $0xd8] sm:$0xff]
        %v1215 = vld [vmem:[%s8 + $0xe0] sm:$0xff]
        %v1216 = vld [vmem:[%s8 + $0xe8] sm:$0xff]
        %v1217 = vld [vmem:[%s8 + $0xf0] sm:$0xff]
        %v1218 = vld [vmem:[%s8 + $0xf8] sm:$0xff]
        %v1219 = vld [vmem:[%s9] sm:$0x1]
        %v1221 = vlaneseq
        %v1222 = vshrl.u32 %v1221, 7
        %v1223 = vsub.s32 0, %v1222
        %v1224 = vrot.slane %v576, %v1223
        %v1225 = vlaneseq
        %v1226 = vshrl.u32 %v1225, 7
        %v1227 = vsub.s32 1, %v1226
        %v1228 = vrot.slane %v576, %v1227
        %1231 = vmatprep.subr.mxu0 0.0
        %1232 = vmatpush1.msra.mxu0 %v1187
        %1233 = vmatprep.subr.mxu0 0.0
        %1234 = vmatpush1.msra.mxu0 %v1188
        %1235 = vmatprep.subr.mxu0 0.0
        %1236 = vmatpush1.msra.mxu0 %v1189
        %1237 = vmatprep.subr.mxu0 0.0
        %1238 = vmatpush1.msra.mxu0 %v1190
        %1239 = vmatprep.subr.mxu0 0.0
        %1240 = vmatpush1.msra.mxu0 %v1191
        %1241 = vmatprep.subr.mxu0 0.0
        %1242 = vmatpush1.msra.mxu0 %v1192
        %1243 = vmatprep.subr.mxu0 0.0
        %1244 = vmatpush1.msra.mxu0 %v1193
        %1245 = vmatprep.subr.mxu0 0.0
        %1246 = vmatpush1.msra.mxu0 %v1194
        %1247 = vmatprep.subr.mxu0 0.0
        %1248 = vmatpush1.msra.mxu0 %v1195
        %1249 = vmatprep.subr.mxu0 0.0
        %1250 = vmatpush1.msra.mxu0 %v1196
        %1251 = vmatprep.subr.mxu0 0.0
        %1252 = vmatpush1.msra.mxu0 %v1197
        %1253 = vmatprep.subr.mxu0 0.0
        %1254 = vmatpush1.msra.mxu0 %v1198
        %1255 = vmatprep.subr.mxu0 0.0
        %1256 = vmatpush1.msra.mxu0 %v1199
        %1257 = vmatprep.subr.mxu0 0.0
        %1258 = vmatpush1.msra.mxu0 %v1200
        %1259 = vmatprep.subr.mxu0 0.0
        %1260 = vmatpush1.msra.mxu0 %v1201
        %1261 = vmatprep.subr.mxu0 0.0
        %1262 = vmatpush1.msra.mxu0 %v1202
        %1263 = vmatprep.subr.mxu0 0.0
        %1264 = vmatpush1.msra.mxu0 %v1203
        %1265 = vmatprep.subr.mxu0 0.0
        %1266 = vmatpush1.msra.mxu0 %v1204
        %1267 = vmatprep.subr.mxu0 0.0
        %1268 = vmatpush1.msra.mxu0 %v1205
        %1269 = vmatprep.subr.mxu0 0.0
        %1270 = vmatpush1.msra.mxu0 %v1206
        %1271 = vmatprep.subr.mxu0 0.0
        %1272 = vmatpush1.msra.mxu0 %v1207
        %1273 = vmatprep.subr.mxu0 0.0
        %1274 = vmatpush1.msra.mxu0 %v1208
        %1275 = vmatprep.subr.mxu0 0.0
        %1276 = vmatpush1.msra.mxu0 %v1209
        %1277 = vmatprep.subr.mxu0 0.0
        %1278 = vmatpush1.msra.mxu0 %v1210
        %1279 = vmatprep.subr.mxu0 0.0
        %1280 = vmatpush1.msra.mxu0 %v1211
        %1281 = vmatprep.subr.mxu0 0.0
        %1282 = vmatpush1.msra.mxu0 %v1212
        %1283 = vmatprep.subr.mxu0 0.0
        %1284 = vmatpush1.msra.mxu0 %v1213
        %1285 = vmatprep.subr.mxu0 0.0
        %1286 = vmatpush1.msra.mxu0 %v1214
        %1287 = vmatprep.subr.mxu0 0.0
        %1288 = vmatpush1.msra.mxu0 %v1215
        %1289 = vmatprep.subr.mxu0 0.0
        %1290 = vmatpush1.msra.mxu0 %v1216
        %1291 = vmatprep.subr.mxu0 0.0
        %1292 = vmatpush1.msra.mxu0 %v1217
        %1293 = vmatprep.subr.mxu0 0.0
        %1294 = vmatpush1.msra.mxu0 %v1218
        %1295 = vmatprep.mubr.f32.mxu0 %v1228
        %1296 = vmatmul.mubr.f32.gmra.mrb[0].mxu0 %v1224
        %v1297 = vpop.f32.mrb[0].mxu0
        %v1298 = vadd.f32 %v1219, %v1297
        %v1299 = vpop.f32.mrb[0].mxu0
        %1300 = vdwg.mxu0
        %v1301 = vsel %vm588, %v1185, 0.0
        %1302 = vadd.xlane.f32.xlu0 %v1301
        %v1303 = vpop.xlane.xlu0 %1302
        %v1304 = vsel %vm588, %v1186, 0.0
        %1305 = vadd.xlane.f32.xlu0 %v1304
        %v1306 = vpop.xlane.xlu0 %1305
        %v1307 = vrcp.pop 32.0
        %v1308 = vmul.f32 %v1303, %v1307
        %v1309 = vmul.f32 %v1306, %v1307
        %v1310 = vsub.f32 %v1185, %v1308
        %v1311 = vsub.f32 %v1186, %v1309
        %v1312 = vmul.f32 %v1310, %v1310
        %v1313 = vmul.f32 %v1311, %v1311
        %v1314 = vsel %vm588, %v1312, 0.0
        %1315 = vadd.xlane.f32.xlu0 %v1314
        %v1316 = vpop.xlane.xlu0 %1315
        %v1317 = vsel %vm588, %v1313, 0.0
        %1318 = vadd.xlane.f32.xlu0 %v1317
        %v1319 = vpop.xlane.xlu0 %1318
        %v1320 = vmul.f32 %v1316, %v1307
        %v1321 = vmul.f32 %v1319, %v1307
        %v1322 = vadd.f32 %v1320, 1e-05
        %v1323 = vadd.f32 %v1321, 1e-05
        %v1324 = vrsqrt.pop %v1322
        %v1325 = vrsqrt.pop %v1323
        %v1326 = vmul.f32 %v1310, %v1324
        %v1327 = vmul.f32 %v1311, %v1325
        %v1328 = vlaneseq
        %v1329 = vshrl.u32 %v1328, 7
        %v1330 = vsub.s32 0, %v1329
        %v1331 = vrot.slane %v1298, %v1330
        %v1332 = vmul.f32 %v1331, %v1326
        %v1333 = vmul.f32 %v1331, %v1327
        %1335 = vrot.lane.b32.xlu0 %v1331, 96
        %v1336 = vpop.permute.xlu0 %1335
        %v1338 = vadd.f32 %v1332, %v1336
        %v1339 = vadd.f32 %v1333, %v1336
        %1341 = vset.pattern.permute.xlu0 0
        %1342 = vperm.xlu0 %1341, %v574
        %v1343 = vpop.permute.xlu0 %1342
        %1346 = vset.pattern.permute.xlu0 0
        %1347 = vperm.xlu0 %1346, %v575
        %v1348 = vpop.permute.xlu0 %1347
        %v1350 = vmul.f32 %v1338, %v1343
        %v1351 = vmul.f32 %v1339, %v1348
        %vm1354 = vcmask 1043456
        %v1355 = vrot.slane %v1350, 4
        %v1356 = vrot.slane %v1351, 4
        %v1357 = vsel %vm1354, %v1355, %v1356
        %v1361 = vsel %vm1354, 0.0, %v1355
        %v1362 = vsel %vm1354, %v1356, 0.0
        %vm1365 = vcmask 1046528
        %v1366 = vrot.slane %v1361, 1
        %v1367 = vrot.slane %v1357, 1
        %v1368 = vsel %vm1365, %v1366, %v1367
        %v1369 = vrot.slane %v1362, 1
        %v1370 = vsel %vm1365, %v1367, %v1369
        %1371 = vrot.lane.b32.xlu0 %v1368, 32
        %v1372 = vpop.permute.xlu0 %1371
        %1373 = vrot.lane.b32.xlu0 %v1370, 32
        %v1374 = vpop.permute.xlu0 %1373
        %vm1377 = vcmask 1045504
        %v1378 = vrot.slane %v1361, 2
        %v1379 = vrot.slane %v1357, 2
        %v1380 = vsel %vm1377, %v1378, %v1379
        %v1381 = vrot.slane %v1362, 2
        %v1382 = vsel %vm1377, %v1379, %v1381
        %1383 = vrot.lane.b32.xlu0 %v1380, 64
        %v1384 = vpop.permute.xlu0 %1383
        %1385 = vrot.lane.b32.xlu0 %v1382, 64
        %v1386 = vpop.permute.xlu0 %1385
        %vm1389 = vcmask 1044480
        %v1390 = vrot.slane %v1361, 3
        %v1391 = vrot.slane %v1357, 3
        %v1392 = vsel %vm1389, %v1390, %v1391
        %v1393 = vrot.slane %v1362, 3
        %v1394 = vsel %vm1389, %v1391, %v1393
        %1395 = vrot.lane.b32.xlu0 %v1392, 96
        %v1396 = vpop.permute.xlu0 %1395
        %1397 = vrot.lane.b32.xlu0 %v1394, 96
        %v1398 = vpop.permute.xlu0 %1397
        %v1401 = vrot.slane %v1361, 4
        %v1402 = vrot.slane %v1357, 4
        %v1403 = vsel %vm1354, %v1401, %v1402
        %v1404 = vrot.slane %v1362, 4
        %v1405 = vsel %vm1354, %v1402, %v1404
        %vm1408 = vcmask 1042432
        %v1409 = vrot.slane %v1361, 5
        %v1410 = vrot.slane %v1357, 5
        %v1411 = vsel %vm1408, %v1409, %v1410
        %v1412 = vrot.slane %v1362, 5
        %v1413 = vsel %vm1408, %v1410, %v1412
        %1414 = vrot.lane.b32.xlu0 %v1411, 32
        %v1415 = vpop.permute.xlu0 %1414
        %1416 = vrot.lane.b32.xlu0 %v1413, 32
        %v1417 = vpop.permute.xlu0 %1416
        %vm1420 = vcmask 1041408
        %v1421 = vrot.slane %v1361, 6
        %v1422 = vrot.slane %v1357, 6
        %v1423 = vsel %vm1420, %v1421, %v1422
        %v1424 = vrot.slane %v1362, 6
        %v1425 = vsel %vm1420, %v1422, %v1424
        %1426 = vrot.lane.b32.xlu0 %v1423, 64
        %v1427 = vpop.permute.xlu0 %1426
        %1428 = vrot.lane.b32.xlu0 %v1425, 64
        %v1429 = vpop.permute.xlu0 %1428
        %vm1432 = vcmask 1040384
        %v1433 = vrot.slane %v1361, 7
        %v1434 = vrot.slane %v1357, 7
        %v1435 = vsel %vm1432, %v1433, %v1434
        %v1436 = vrot.slane %v1362, 7
        %v1437 = vsel %vm1432, %v1434, %v1436
        %1438 = vrot.lane.b32.xlu0 %v1435, 96
        %v1439 = vpop.permute.xlu0 %1438
        %1440 = vrot.lane.b32.xlu0 %v1437, 96
        %v1441 = vpop.permute.xlu0 %1440
        %v1444 = vsel %vm588, %v1361, %v1372
        %v1445 = vsel %vm588, %v1357, %v1374
        %vm1446 = vcmask 523264
        %v1447 = vsel %vm1446, %v1444, %v1384
        %v1448 = vsel %vm1446, %v1445, %v1386
        %vm1449 = vcmask 785408
        %v1450 = vsel %vm1449, %v1447, %v1396
        %v1451 = vsel %vm1449, %v1448, %v1398
        %v1452 = vsel %vm588, %v1403, %v1415
        %v1453 = vsel %vm588, %v1405, %v1417
        %v1454 = vsel %vm1446, %v1452, %v1427
        %v1455 = vsel %vm1446, %v1453, %v1429
        %v1456 = vsel %vm1449, %v1454, %v1439
        %v1457 = vsel %vm1449, %v1455, %v1441
        %v1458 = vld [vmem:[%s10] sm:$0xff]
        %v1459 = vld [vmem:[%s10 + $0x8] sm:$0xff]
        %v1460 = vld [vmem:[%s10 + $0x10] sm:$0xff]
        %v1461 = vld [vmem:[%s10 + $0x18] sm:$0xff]
        %v1462 = vld [vmem:[%s10 + $0x20] sm:$0xff]
        %v1463 = vld [vmem:[%s10 + $0x28] sm:$0xff]
        %v1464 = vld [vmem:[%s10 + $0x30] sm:$0xff]
        %v1465 = vld [vmem:[%s10 + $0x38] sm:$0xff]
        %v1466 = vld [vmem:[%s10 + $0x40] sm:$0xff]
        %v1467 = vld [vmem:[%s10 + $0x48] sm:$0xff]
        %v1468 = vld [vmem:[%s10 + $0x50] sm:$0xff]
        %v1469 = vld [vmem:[%s10 + $0x58] sm:$0xff]
        %v1470 = vld [vmem:[%s10 + $0x60] sm:$0xff]
        %v1471 = vld [vmem:[%s10 + $0x68] sm:$0xff]
        %v1472 = vld [vmem:[%s10 + $0x70] sm:$0xff]
        %v1473 = vld [vmem:[%s10 + $0x78] sm:$0xff]
        %v1474 = vld [vmem:[%s10 + $0x80] sm:$0xff]
        %v1475 = vld [vmem:[%s10 + $0x88] sm:$0xff]
        %v1476 = vld [vmem:[%s10 + $0x90] sm:$0xff]
        %v1477 = vld [vmem:[%s10 + $0x98] sm:$0xff]
        %v1478 = vld [vmem:[%s10 + $0xa0] sm:$0xff]
        %v1479 = vld [vmem:[%s10 + $0xa8] sm:$0xff]
        %v1480 = vld [vmem:[%s10 + $0xb0] sm:$0xff]
        %v1481 = vld [vmem:[%s10 + $0xb8] sm:$0xff]
        %v1482 = vld [vmem:[%s10 + $0xc0] sm:$0xff]
        %v1483 = vld [vmem:[%s10 + $0xc8] sm:$0xff]
        %v1484 = vld [vmem:[%s10 + $0xd0] sm:$0xff]
        %v1485 = vld [vmem:[%s10 + $0xd8] sm:$0xff]
        %v1486 = vld [vmem:[%s10 + $0xe0] sm:$0xff]
        %v1487 = vld [vmem:[%s10 + $0xe8] sm:$0xff]
        %v1488 = vld [vmem:[%s10 + $0xf0] sm:$0xff]
        %v1489 = vld [vmem:[%s10 + $0xf8] sm:$0xff]
        %v1490 = vld [vmem:[%s10 + $0x100] sm:$0xff]
        %v1491 = vld [vmem:[%s10 + $0x108] sm:$0xff]
        %v1492 = vld [vmem:[%s10 + $0x110] sm:$0xff]
        %v1493 = vld [vmem:[%s10 + $0x118] sm:$0xff]
        %v1494 = vld [vmem:[%s11] sm:$0x1]
        %v1496 = vlaneseq
        %v1497 = vshrl.u32 %v1496, 7
        %v1498 = vsub.s32 0, %v1497
        %v1499 = vrot.slane %v1494, %v1498
        %v1501 = vsel %vm588, %v1357, 0
        %v1503 = vsel %vm588, %v1362, 0
        %1505 = vmatprep.subr.mxu0 0.0
        %1506 = vmatpush1.msra.mxu0 %v1458
        %1507 = vmatprep.subr.mxu0 0.0
        %1508 = vmatpush1.msra.mxu0 %v1459
        %1509 = vmatprep.subr.mxu0 0.0
        %1510 = vmatpush1.msra.mxu0 %v1460
        %1511 = vmatprep.subr.mxu0 0.0
        %1512 = vmatpush1.msra.mxu0 %v1461
        %1513 = vmatprep.subr.mxu0 0.0
        %1514 = vmatpush1.msra.mxu0 %v1462
        %1515 = vmatprep.subr.mxu0 0.0
        %1516 = vmatpush1.msra.mxu0 %v1463
        %1517 = vmatprep.subr.mxu0 0.0
        %1518 = vmatpush1.msra.mxu0 %v1464
        %1519 = vmatprep.subr.mxu0 0.0
        %1520 = vmatpush1.msra.mxu0 %v1465
        %1521 = vmatprep.subr.mxu0 0.0
        %1522 = vmatpush1.msra.mxu0 %v1466
        %1523 = vmatprep.subr.mxu0 0.0
        %1524 = vmatpush1.msra.mxu0 %v1467
        %1525 = vmatprep.subr.mxu0 0.0
        %1526 = vmatpush1.msra.mxu0 %v1468
        %1527 = vmatprep.subr.mxu0 0.0
        %1528 = vmatpush1.msra.mxu0 %v1469
        %1529 = vmatprep.subr.mxu0 0.0
        %1530 = vmatpush1.msra.mxu0 %v1470
        %1531 = vmatprep.subr.mxu0 0.0
        %1532 = vmatpush1.msra.mxu0 %v1471
        %1533 = vmatprep.subr.mxu0 0.0
        %1534 = vmatpush1.msra.mxu0 %v1472
        %1535 = vmatprep.subr.mxu0 0.0
        %1536 = vmatpush1.msra.mxu0 %v1473
        %1537 = vmatprep.subr.mxu0 0.0
        %1538 = vmatpush1.msra.mxu0 %v1474
        %1539 = vmatprep.subr.mxu0 0.0
        %1540 = vmatpush1.msra.mxu0 %v1475
        %1541 = vmatprep.subr.mxu0 0.0
        %1542 = vmatpush1.msra.mxu0 %v1476
        %1543 = vmatprep.subr.mxu0 0.0
        %1544 = vmatpush1.msra.mxu0 %v1477
        %1545 = vmatprep.subr.mxu0 0.0
        %1546 = vmatpush1.msra.mxu0 %v1478
        %1547 = vmatprep.subr.mxu0 0.0
        %1548 = vmatpush1.msra.mxu0 %v1479
        %1549 = vmatprep.subr.mxu0 0.0
        %1550 = vmatpush1.msra.mxu0 %v1480
        %1551 = vmatprep.subr.mxu0 0.0
        %1552 = vmatpush1.msra.mxu0 %v1481
        %1553 = vmatprep.subr.mxu0 0.0
        %1554 = vmatpush1.msra.mxu0 %v1482
        %1555 = vmatprep.subr.mxu0 0.0
        %1556 = vmatpush1.msra.mxu0 %v1483
        %1557 = vmatprep.subr.mxu0 0.0
        %1558 = vmatpush1.msra.mxu0 %v1484
        %1559 = vmatprep.subr.mxu0 0.0
        %1560 = vmatpush1.msra.mxu0 %v1485
        %1561 = vmatprep.subr.mxu0 0.0
        %1562 = vmatpush1.msra.mxu0 %v1486
        %1563 = vmatprep.subr.mxu0 0.0
        %1564 = vmatpush1.msra.mxu0 %v1487
        %1565 = vmatprep.subr.mxu0 0.0
        %1566 = vmatpush1.msra.mxu0 %v1488
        %1567 = vmatprep.subr.mxu0 0.0
        %1568 = vmatpush1.msra.mxu0 %v1489
        %1569 = vmatprep.mubr.f32.mxu0 %v1456
        %1570 = vmatmul.mubr.f32.gmra.mrb[0].mxu0 %v1450
        %v1571 = vpop.f32.mrb[0].mxu0
        %v1572 = vadd.f32 %v1499, %v1571
        %v1573 = vpop.f32.mrb[0].mxu0
        %1574 = vmatprep.mubr.f32.mxu0 %v1457
        %1575 = vmatmul.mubr.f32.gmra.mrb[0].mxu0 %v1451
        %v1576 = vpop.f32.mrb[0].mxu0
        %v1577 = vadd.f32 %v1499, %v1576
        %v1578 = vpop.f32.mrb[0].mxu0
        %1579 = vdwg.mxu0
        %1580 = vmatprep.subr.mxu0 0.0
        %1581 = vmatpush1.msra.mxu0 %v1490
        %1582 = vmatprep.subr.mxu0 0.0
        %1583 = vmatpush1.msra.mxu0 %v1491
        %1584 = vmatprep.subr.mxu0 0.0
        %1585 = vmatpush1.msra.mxu0 %v1492
        %1586 = vmatprep.subr.mxu0 0.0
        %1587 = vmatpush1.msra.mxu0 %v1493
        %1588 = vmatprep.subr.mxu0 0.0
        %1589 = vmatpush1.msra.mxu0 0.0
        %1590 = vmatprep.subr.mxu0 0.0
        %1591 = vmatpush1.msra.mxu0 0.0
        %1592 = vmatprep.subr.mxu0 0.0
        %1593 = vmatpush1.msra.mxu0 0.0
        %1594 = vmatprep.subr.mxu0 0.0
        %1595 = vmatpush1.msra.mxu0 0.0
        %1596 = vmatprep.subr.mxu0 0.0
        %1597 = vmatpush1.msra.mxu0 0.0
        %1598 = vmatprep.subr.mxu0 0.0
        %1599 = vmatpush1.msra.mxu0 0.0
        %1600 = vmatprep.subr.mxu0 0.0
        %1601 = vmatpush1.msra.mxu0 0.0
        %1602 = vmatprep.subr.mxu0 0.0
        %1603 = vmatpush1.msra.mxu0 0.0
        %1604 = vmatprep.subr.mxu0 0.0
        %1605 = vmatpush1.msra.mxu0 0.0
        %1606 = vmatprep.subr.mxu0 0.0
        %1607 = vmatpush1.msra.mxu0 0.0
        %1608 = vmatprep.subr.mxu0 0.0
        %1609 = vmatpush1.msra.mxu0 0.0
        %1610 = vmatprep.subr.mxu0 0.0
        %1611 = vmatpush1.msra.mxu0 0.0
        %1612 = vmatprep.subr.mxu0 0.0
        %1613 = vmatpush1.msra.mxu0 0.0
        %1614 = vmatprep.subr.mxu0 0.0
        %1615 = vmatpush1.msra.mxu0 0.0
        %1616 = vmatprep.subr.mxu0 0.0
        %1617 = vmatpush1.msra.mxu0 0.0
        %1618 = vmatprep.subr.mxu0 0.0
        %1619 = vmatpush1.msra.mxu0 0.0
        %1620 = vmatprep.subr.mxu0 0.0
        %1621 = vmatpush1.msra.mxu0 0.0
        %1622 = vmatprep.subr.mxu0 0.0
        %1623 = vmatpush1.msra.mxu0 0.0
        %1624 = vmatprep.subr.mxu0 0.0
        %1625 = vmatpush1.msra.mxu0 0.0
        %1626 = vmatprep.subr.mxu0 0.0
        %1627 = vmatpush1.msra.mxu0 0.0
        %1628 = vmatprep.subr.mxu0 0.0
        %1629 = vmatpush1.msra.mxu0 0.0
        %1630 = vmatprep.subr.mxu0 0.0
        %1631 = vmatpush1.msra.mxu0 0.0
        %1632 = vmatprep.subr.mxu0 0.0
        %1633 = vmatpush1.msra.mxu0 0.0
        %1634 = vmatprep.subr.mxu0 0.0
        %1635 = vmatpush1.msra.mxu0 0.0
        %1636 = vmatprep.subr.mxu0 0.0
        %1637 = vmatpush1.msra.mxu0 0.0
        %1638 = vmatprep.subr.mxu0 0.0
        %1639 = vmatpush1.msra.mxu0 0.0
        %1640 = vmatprep.subr.mxu0 0.0
        %1641 = vmatpush1.msra.mxu0 0.0
        %1642 = vmatprep.subr.mxu0 0.0
        %1643 = vmatpush1.msra.mxu0 0.0
        %1644 = vmatprep.mubr.f32.mxu0 0.0
        %1645 = vmatmul.mubr.f32.gmra.mrb[0].mxu0 %v1501
        %v1646 = vpop.f32.mrb[0].mxu0
        %v1647 = vadd.f32 %v1572, %v1646
        %v1648 = vpop.f32.mrb[0].mxu0
        %1649 = vmatprep.mubr.f32.mxu0 0.0
        %1650 = vmatmul.mubr.f32.gmra.mrb[0].mxu0 %v1503
        %v1651 = vpop.f32.mrb[0].mxu0
        %v1652 = vadd.f32 %v1577, %v1651
        %v1653 = vpop.f32.mrb[0].mxu0
        %1654 = vdwg.mxu0
        %v1655 = vmax.f32 %v1647, 0.0
        %v1656 = vmax.f32 %v1652, 0.0
        %v1657 = vld [vmem:[%s12] sm:$0xff]
        %v1658 = vld [vmem:[%s12 + $0x8] sm:$0xff]
        %v1659 = vld [vmem:[%s12 + $0x10] sm:$0xff]
        %v1660 = vld [vmem:[%s12 + $0x18] sm:$0xff]
        %v1661 = vld [vmem:[%s12 + $0x20] sm:$0xff]
        %v1662 = vld [vmem:[%s12 + $0x28] sm:$0xff]
        %v1663 = vld [vmem:[%s12 + $0x30] sm:$0xff]
        %v1664 = vld [vmem:[%s12 + $0x38] sm:$0xff]
        %v1665 = vld [vmem:[%s13] sm:$0x1]
        %v1667 = vlaneseq
        %v1668 = vshrl.u32 %v1667, 7
        %v1669 = vsub.s32 0, %v1668
        %v1670 = vrot.slane %v1665, %v1669
        %v1673 = vsel %vm1446, %v1655, 0
        %v1676 = vsel %vm1446, %v1656, 0
        %1678 = vmatprep.subr.mxu0 0.0
        %1679 = vmatpush1.msra.mxu0 %v1657
        %1680 = vmatprep.subr.mxu0 0.0
        %1681 = vmatpush1.msra.mxu0 %v1658
        %1682 = vmatprep.subr.mxu0 0.0
        %1683 = vmatpush1.msra.mxu0 %v1659
        %1684 = vmatprep.subr.mxu0 0.0
        %1685 = vmatpush1.msra.mxu0 %v1660
        %1686 = vmatprep.subr.mxu0 0.0
        %1687 = vmatpush1.msra.mxu0 %v1661
        %1688 = vmatprep.subr.mxu0 0.0
        %1689 = vmatpush1.msra.mxu0 %v1662
        %1690 = vmatprep.subr.mxu0 0.0
        %1691 = vmatpush1.msra.mxu0 %v1663
        %1692 = vmatprep.subr.mxu0 0.0
        %1693 = vmatpush1.msra.mxu0 %v1664
        %1694 = vmatprep.subr.mxu0 0.0
        %1695 = vmatpush1.msra.mxu0 0.0
        %1696 = vmatprep.subr.mxu0 0.0
        %1697 = vmatpush1.msra.mxu0 0.0
        %1698 = vmatprep.subr.mxu0 0.0
        %1699 = vmatpush1.msra.mxu0 0.0
        %1700 = vmatprep.subr.mxu0 0.0
        %1701 = vmatpush1.msra.mxu0 0.0
        %1702 = vmatprep.subr.mxu0 0.0
        %1703 = vmatpush1.msra.mxu0 0.0
        %1704 = vmatprep.subr.mxu0 0.0
        %1705 = vmatpush1.msra.mxu0 0.0
        %1706 = vmatprep.subr.mxu0 0.0
        %1707 = vmatpush1.msra.mxu0 0.0
        %1708 = vmatprep.subr.mxu0 0.0
        %1709 = vmatpush1.msra.mxu0 0.0
        %1710 = vmatprep.subr.mxu0 0.0
        %1711 = vmatpush1.msra.mxu0 0.0
        %1712 = vmatprep.subr.mxu0 0.0
        %1713 = vmatpush1.msra.mxu0 0.0
        %1714 = vmatprep.subr.mxu0 0.0
        %1715 = vmatpush1.msra.mxu0 0.0
        %1716 = vmatprep.subr.mxu0 0.0
        %1717 = vmatpush1.msra.mxu0 0.0
        %1718 = vmatprep.subr.mxu0 0.0
        %1719 = vmatpush1.msra.mxu0 0.0
        %1720 = vmatprep.subr.mxu0 0.0
        %1721 = vmatpush1.msra.mxu0 0.0
        %1722 = vmatprep.subr.mxu0 0.0
        %1723 = vmatpush1.msra.mxu0 0.0
        %1724 = vmatprep.subr.mxu0 0.0
        %1725 = vmatpush1.msra.mxu0 0.0
        %1726 = vmatprep.subr.mxu0 0.0
        %1727 = vmatpush1.msra.mxu0 0.0
        %1728 = vmatprep.subr.mxu0 0.0
        %1729 = vmatpush1.msra.mxu0 0.0
        %1730 = vmatprep.subr.mxu0 0.0
        %1731 = vmatpush1.msra.mxu0 0.0
        %1732 = vmatprep.subr.mxu0 0.0
        %1733 = vmatpush1.msra.mxu0 0.0
        %1734 = vmatprep.subr.mxu0 0.0
        %1735 = vmatpush1.msra.mxu0 0.0
        %1736 = vmatprep.subr.mxu0 0.0
        %1737 = vmatpush1.msra.mxu0 0.0
        %1738 = vmatprep.subr.mxu0 0.0
        %1739 = vmatpush1.msra.mxu0 0.0
        %1740 = vmatprep.subr.mxu0 0.0
        %1741 = vmatpush1.msra.mxu0 0.0
        %1742 = vmatprep.mubr.f32.mxu0 0.0
        %1743 = vmatmul.mubr.f32.gmra.mrb[0].mxu0 %v1673
        %v1744 = vpop.f32.mrb[0].mxu0
        %v1745 = vadd.f32 %v1670, %v1744
        %v1746 = vpop.f32.mrb[0].mxu0
        %1747 = vmatprep.mubr.f32.mxu0 0.0
        %1748 = vmatmul.mubr.f32.gmra.mrb[0].mxu0 %v1676
        %v1749 = vpop.f32.mrb[0].mxu0
        %v1750 = vadd.f32 %v1670, %v1749
        %v1751 = vpop.f32.mrb[0].mxu0
        %1752 = vdwg.mxu0
        %v1753 = vadd.f32 %v1745, %v1350
        %v1754 = vadd.f32 %v1750, %v1351
        %v1755 = vld [vmem:[%s14] sm:$0xff]
        %v1756 = vld [vmem:[%s14 + $0x8] sm:$0xff]
        %v1757 = vld [vmem:[%s14 + $0x10] sm:$0xff]
        %v1758 = vld [vmem:[%s14 + $0x18] sm:$0xff]
        %v1759 = vld [vmem:[%s14 + $0x20] sm:$0xff]
        %v1760 = vld [vmem:[%s14 + $0x28] sm:$0xff]
        %v1761 = vld [vmem:[%s14 + $0x30] sm:$0xff]
        %v1762 = vld [vmem:[%s14 + $0x38] sm:$0xff]
        %v1763 = vld [vmem:[%s14 + $0x40] sm:$0xff]
        %v1764 = vld [vmem:[%s14 + $0x48] sm:$0xff]
        %v1765 = vld [vmem:[%s14 + $0x50] sm:$0xff]
        %v1766 = vld [vmem:[%s14 + $0x58] sm:$0xff]
        %v1767 = vld [vmem:[%s14 + $0x60] sm:$0xff]
        %v1768 = vld [vmem:[%s14 + $0x68] sm:$0xff]
        %v1769 = vld [vmem:[%s14 + $0x70] sm:$0xff]
        %v1770 = vld [vmem:[%s14 + $0x78] sm:$0xff]
        %v1771 = vld [vmem:[%s14 + $0x80] sm:$0xff]
        %v1772 = vld [vmem:[%s14 + $0x88] sm:$0xff]
        %v1773 = vld [vmem:[%s14 + $0x90] sm:$0xff]
        %v1774 = vld [vmem:[%s14 + $0x98] sm:$0xff]
        %v1775 = vld [vmem:[%s14 + $0xa0] sm:$0xff]
        %v1776 = vld [vmem:[%s14 + $0xa8] sm:$0xff]
        %v1777 = vld [vmem:[%s14 + $0xb0] sm:$0xff]
        %v1778 = vld [vmem:[%s14 + $0xb8] sm:$0xff]
        %v1779 = vld [vmem:[%s14 + $0xc0] sm:$0xff]
        %v1780 = vld [vmem:[%s14 + $0xc8] sm:$0xff]
        %v1781 = vld [vmem:[%s14 + $0xd0] sm:$0xff]
        %v1782 = vld [vmem:[%s14 + $0xd8] sm:$0xff]
        %v1783 = vld [vmem:[%s14 + $0xe0] sm:$0xff]
        %v1784 = vld [vmem:[%s14 + $0xe8] sm:$0xff]
        %v1785 = vld [vmem:[%s14 + $0xf0] sm:$0xff]
        %v1786 = vld [vmem:[%s14 + $0xf8] sm:$0xff]
        %v1787 = vld [vmem:[%s15] sm:$0x1]
        %1788 = vmatprep.subr.mxu0 0.0
        %1789 = vmatpush1.msra.mxu0 %v1755
        %1790 = vmatprep.subr.mxu0 0.0
        %1791 = vmatpush1.msra.mxu0 %v1756
        %1792 = vmatprep.subr.mxu0 0.0
        %1793 = vmatpush1.msra.mxu0 %v1757
        %1794 = vmatprep.subr.mxu0 0.0
        %1795 = vmatpush1.msra.mxu0 %v1758
        %1796 = vmatprep.subr.mxu0 0.0
        %1797 = vmatpush1.msra.mxu0 %v1759
        %1798 = vmatprep.subr.mxu0 0.0
        %1799 = vmatpush1.msra.mxu0 %v1760
        %1800 = vmatprep.subr.mxu0 0.0
        %1801 = vmatpush1.msra.mxu0 %v1761
        %1802 = vmatprep.subr.mxu0 0.0
        %1803 = vmatpush1.msra.mxu0 %v1762
        %1804 = vmatprep.subr.mxu0 0.0
        %1805 = vmatpush1.msra.mxu0 %v1763
        %1806 = vmatprep.subr.mxu0 0.0
        %1807 = vmatpush1.msra.mxu0 %v1764
        %1808 = vmatprep.subr.mxu0 0.0
        %1809 = vmatpush1.msra.mxu0 %v1765
        %1810 = vmatprep.subr.mxu0 0.0
        %1811 = vmatpush1.msra.mxu0 %v1766
        %1812 = vmatprep.subr.mxu0 0.0
        %1813 = vmatpush1.msra.mxu0 %v1767
        %1814 = vmatprep.subr.mxu0 0.0
        %1815 = vmatpush1.msra.mxu0 %v1768
        %1816 = vmatprep.subr.mxu0 0.0
        %1817 = vmatpush1.msra.mxu0 %v1769
        %1818 = vmatprep.subr.mxu0 0.0
        %1819 = vmatpush1.msra.mxu0 %v1770
        %1820 = vmatprep.subr.mxu0 0.0
        %1821 = vmatpush1.msra.mxu0 %v1771
        %1822 = vmatprep.subr.mxu0 0.0
        %1823 = vmatpush1.msra.mxu0 %v1772
        %1824 = vmatprep.subr.mxu0 0.0
        %1825 = vmatpush1.msra.mxu0 %v1773
        %1826 = vmatprep.subr.mxu0 0.0
        %1827 = vmatpush1.msra.mxu0 %v1774
        %1828 = vmatprep.subr.mxu0 0.0
        %1829 = vmatpush1.msra.mxu0 %v1775
        %1830 = vmatprep.subr.mxu0 0.0
        %1831 = vmatpush1.msra.mxu0 %v1776
        %1832 = vmatprep.subr.mxu0 0.0
        %1833 = vmatpush1.msra.mxu0 %v1777
        %1834 = vmatprep.subr.mxu0 0.0
        %1835 = vmatpush1.msra.mxu0 %v1778
        %1836 = vmatprep.subr.mxu0 0.0
        %1837 = vmatpush1.msra.mxu0 %v1779
        %1838 = vmatprep.subr.mxu0 0.0
        %1839 = vmatpush1.msra.mxu0 %v1780
        %1840 = vmatprep.subr.mxu0 0.0
        %1841 = vmatpush1.msra.mxu0 %v1781
        %1842 = vmatprep.subr.mxu0 0.0
        %1843 = vmatpush1.msra.mxu0 %v1782
        %1844 = vmatprep.subr.mxu0 0.0
        %1845 = vmatpush1.msra.mxu0 %v1783
        %1846 = vmatprep.subr.mxu0 0.0
        %1847 = vmatpush1.msra.mxu0 %v1784
        %1848 = vmatprep.subr.mxu0 0.0
        %1849 = vmatpush1.msra.mxu0 %v1785
        %1850 = vmatprep.subr.mxu0 0.0
        %1851 = vmatpush1.msra.mxu0 %v1786
        %1852 = vmatprep.mubr.f32.mxu0 %v1228
        %1853 = vmatmul.mubr.f32.gmra.mrb[0].mxu0 %v1224
        %v1854 = vpop.f32.mrb[0].mxu0
        %v1855 = vadd.f32 %v1787, %v1854
        %v1856 = vpop.f32.mrb[0].mxu0
        %1857 = vdwg.mxu0
        %v1858 = vsel %vm588, %v1753, 0.0
        %1859 = vadd.xlane.f32.xlu0 %v1858
        %v1860 = vpop.xlane.xlu0 %1859
        %v1861 = vsel %vm588, %v1754, 0.0
        %1862 = vadd.xlane.f32.xlu0 %v1861
        %v1863 = vpop.xlane.xlu0 %1862
        %v1864 = vmul.f32 %v1860, %v1307
        %v1865 = vmul.f32 %v1863, %v1307
        %v1866 = vsub.f32 %v1753, %v1864
        %v1867 = vsub.f32 %v1754, %v1865
        %v1868 = vmul.f32 %v1866, %v1866
        %v1869 = vmul.f32 %v1867, %v1867
        %v1870 = vsel %vm588, %v1868, 0.0
        %1871 = vadd.xlane.f32.xlu0 %v1870
        %v1872 = vpop.xlane.xlu0 %1871
        %v1873 = vsel %vm588, %v1869, 0.0
        %1874 = vadd.xlane.f32.xlu0 %v1873
        %v1875 = vpop.xlane.xlu0 %1874
        %v1876 = vmul.f32 %v1872, %v1307
        %v1877 = vmul.f32 %v1875, %v1307
        %v1878 = vadd.f32 %v1876, 1e-05
        %v1879 = vadd.f32 %v1877, 1e-05
        %v1880 = vrsqrt.pop %v1878
        %v1881 = vrsqrt.pop %v1879
        %v1882 = vmul.f32 %v1866, %v1880
        %v1883 = vmul.f32 %v1867, %v1881
        %v1884 = vlaneseq
        %v1885 = vshrl.u32 %v1884, 7
        %v1886 = vsub.s32 0, %v1885
        %v1887 = vrot.slane %v1855, %v1886
        %v1888 = vmul.f32 %v1887, %v1882
        %v1889 = vmul.f32 %v1887, %v1883
        %1891 = vrot.lane.b32.xlu0 %v1887, 96
        %v1892 = vpop.permute.xlu0 %1891
        %v1894 = vadd.f32 %v1888, %v1892
        %v1895 = vadd.f32 %v1889, %v1892
        %v1896 = vmul.f32 %v1894, %v1343
        %v1897 = vmul.f32 %v1895, %v1348
        %s1898 = scalar_lea.vmem %s4, 32
        %v1899 = vld [vmem:[%s1898] sm:$0xff]
        %v1900 = vld [vmem:[%s1898 + $0x8] sm:$0xff]
        %v1901 = vld [vmem:[%s1898 + $0x10] sm:$0xff]
        %v1902 = vld [vmem:[%s1898 + $0x18] sm:$0xff]
        %s1903 = scalar_lea.vmem %s5, 1
        %v1904 = vld [vmem:[%s1903] sm:$0x1]
        %v1906 = vlaneseq
        %v1907 = vshrl.u32 %v1906, 7
        %v1908 = vsub.s32 0, %v1907
        %v1909 = vrot.slane %v1904, %v1908
        %v1912 = vsel %vm588, %v1896, 0
        %v1915 = vsel %vm588, %v1897, 0
        %1917 = vmatprep.subr.mxu0 0.0
        %1918 = vmatpush1.msra.mxu0 %v1899
        %1919 = vmatprep.subr.mxu0 0.0
        %1920 = vmatpush1.msra.mxu0 %v1900
        %1921 = vmatprep.subr.mxu0 0.0
        %1922 = vmatpush1.msra.mxu0 %v1901
        %1923 = vmatprep.subr.mxu0 0.0
        %1924 = vmatpush1.msra.mxu0 %v1902
        %1925 = vmatprep.subr.mxu0 0.0
        %1926 = vmatpush1.msra.mxu0 0.0
        %1927 = vmatprep.subr.mxu0 0.0
        %1928 = vmatpush1.msra.mxu0 0.0
        %1929 = vmatprep.subr.mxu0 0.0
        %1930 = vmatpush1.msra.mxu0 0.0
        %1931 = vmatprep.subr.mxu0 0.0
        %1932 = vmatpush1.msra.mxu0 0.0
        %1933 = vmatprep.subr.mxu0 0.0
        %1934 = vmatpush1.msra.mxu0 0.0
        %1935 = vmatprep.subr.mxu0 0.0
        %1936 = vmatpush1.msra.mxu0 0.0
        %1937 = vmatprep.subr.mxu0 0.0
        %1938 = vmatpush1.msra.mxu0 0.0
        %1939 = vmatprep.subr.mxu0 0.0
        %1940 = vmatpush1.msra.mxu0 0.0
        %1941 = vmatprep.subr.mxu0 0.0
        %1942 = vmatpush1.msra.mxu0 0.0
        %1943 = vmatprep.subr.mxu0 0.0
        %1944 = vmatpush1.msra.mxu0 0.0
        %1945 = vmatprep.subr.mxu0 0.0
        %1946 = vmatpush1.msra.mxu0 0.0
        %1947 = vmatprep.subr.mxu0 0.0
        %1948 = vmatpush1.msra.mxu0 0.0
        %1949 = vmatprep.subr.mxu0 0.0
        %1950 = vmatpush1.msra.mxu0 0.0
        %1951 = vmatprep.subr.mxu0 0.0
        %1952 = vmatpush1.msra.mxu0 0.0
        %1953 = vmatprep.subr.mxu0 0.0
        %1954 = vmatpush1.msra.mxu0 0.0
        %1955 = vmatprep.subr.mxu0 0.0
        %1956 = vmatpush1.msra.mxu0 0.0
        %1957 = vmatprep.subr.mxu0 0.0
        %1958 = vmatpush1.msra.mxu0 0.0
        %1959 = vmatprep.subr.mxu0 0.0
        %1960 = vmatpush1.msra.mxu0 0.0
        %1961 = vmatprep.subr.mxu0 0.0
        %1962 = vmatpush1.msra.mxu0 0.0
        %1963 = vmatprep.subr.mxu0 0.0
        %1964 = vmatpush1.msra.mxu0 0.0
        %1965 = vmatprep.subr.mxu0 0.0
        %1966 = vmatpush1.msra.mxu0 0.0
        %1967 = vmatprep.subr.mxu0 0.0
        %1968 = vmatpush1.msra.mxu0 0.0
        %1969 = vmatprep.subr.mxu0 0.0
        %1970 = vmatpush1.msra.mxu0 0.0
        %1971 = vmatprep.subr.mxu0 0.0
        %1972 = vmatpush1.msra.mxu0 0.0
        %1973 = vmatprep.subr.mxu0 0.0
        %1974 = vmatpush1.msra.mxu0 0.0
        %1975 = vmatprep.subr.mxu0 0.0
        %1976 = vmatpush1.msra.mxu0 0.0
        %1977 = vmatprep.subr.mxu0 0.0
        %1978 = vmatpush1.msra.mxu0 0.0
        %1979 = vmatprep.subr.mxu0 0.0
        %1980 = vmatpush1.msra.mxu0 0.0
        %1981 = vmatprep.mubr.f32.mxu0 0.0
        %1982 = vmatmul.mubr.f32.gmra.mrb[0].mxu0 %v1912
        %v1983 = vpop.f32.mrb[0].mxu0
        %v1984 = vadd.f32 %v1909, %v1983
        %v1985 = vpop.f32.mrb[0].mxu0
        %1986 = vmatprep.mubr.f32.mxu0 0.0
        %1987 = vmatmul.mubr.f32.gmra.mrb[0].mxu0 %v1915
        %v1988 = vpop.f32.mrb[0].mxu0
        %v1989 = vadd.f32 %v1909, %v1988
        %v1990 = vpop.f32.mrb[0].mxu0
        %1991 = vdwg.mxu0
        %1994 = vrot.lane.b32.xlu0 %v1984, 96
        %v1995 = vpop.permute.xlu0 %1994
        %1996 = vrot.lane.b32.xlu0 %v1989, 96
        %v1997 = vpop.permute.xlu0 %1996
        %v1998 = vsel %vm676, %v1984, 0
        %v2000 = vsel %vm676, %v1989, 0
        %v2002 = vsel %vm676, %v1995, 0
        %v2004 = vsel %vm676, %v1997, 0
        %2006 = vmatprep.subr.mxu0 0.0
        %2007 = vmatpush1.xpose.msra.mxu0 %v2002
        %2008 = vmatprep.subr.mxu0 0.0
        %2009 = vmatpush1.xpose.msra.mxu0 %v2004
        %2010 = vmatprep.subr.mxu0 0.0
        %2011 = vmatpush1.xpose.msra.mxu0 0.0
        %2012 = vmatprep.subr.mxu0 0.0
        %2013 = vmatpush1.xpose.msra.mxu0 0.0
        %2014 = vmatprep.subr.mxu0 0.0
        %2015 = vmatpush1.xpose.msra.mxu0 0.0
        %2016 = vmatprep.subr.mxu0 0.0
        %2017 = vmatpush1.xpose.msra.mxu0 0.0
        %2018 = vmatprep.subr.mxu0 0.0
        %2019 = vmatpush1.xpose.msra.mxu0 0.0
        %2020 = vmatprep.subr.mxu0 0.0
        %2021 = vmatpush1.xpose.msra.mxu0 0.0
        %2022 = vmatprep.subr.mxu0 0.0
        %2023 = vmatpush1.xpose.msra.mxu0 0.0
        %2024 = vmatprep.subr.mxu0 0.0
        %2025 = vmatpush1.xpose.msra.mxu0 0.0
        %2026 = vmatprep.subr.mxu0 0.0
        %2027 = vmatpush1.xpose.msra.mxu0 0.0
        %2028 = vmatprep.subr.mxu0 0.0
        %2029 = vmatpush1.xpose.msra.mxu0 0.0
        %2030 = vmatprep.subr.mxu0 0.0
        %2031 = vmatpush1.xpose.msra.mxu0 0.0
        %2032 = vmatprep.subr.mxu0 0.0
        %2033 = vmatpush1.xpose.msra.mxu0 0.0
        %2034 = vmatprep.subr.mxu0 0.0
        %2035 = vmatpush1.xpose.msra.mxu0 0.0
        %2036 = vmatprep.subr.mxu0 0.0
        %2037 = vmatpush1.xpose.msra.mxu0 0.0
        %2038 = vmatprep.subr.mxu0 0.0
        %2039 = vmatpush1.xpose.msra.mxu0 0.0
        %2040 = vmatprep.subr.mxu0 0.0
        %2041 = vmatpush1.xpose.msra.mxu0 0.0
        %2042 = vmatprep.subr.mxu0 0.0
        %2043 = vmatpush1.xpose.msra.mxu0 0.0
        %2044 = vmatprep.subr.mxu0 0.0
        %2045 = vmatpush1.xpose.msra.mxu0 0.0
        %2046 = vmatprep.subr.mxu0 0.0
        %2047 = vmatpush1.xpose.msra.mxu0 0.0
        %2048 = vmatprep.subr.mxu0 0.0
        %2049 = vmatpush1.xpose.msra.mxu0 0.0
        %2050 = vmatprep.subr.mxu0 0.0
        %2051 = vmatpush1.xpose.msra.mxu0 0.0
        %2052 = vmatprep.subr.mxu0 0.0
        %2053 = vmatpush1.xpose.msra.mxu0 0.0
        %2054 = vmatprep.subr.mxu0 0.0
        %2055 = vmatpush1.xpose.msra.mxu0 0.0
        %2056 = vmatprep.subr.mxu0 0.0
        %2057 = vmatpush1.xpose.msra.mxu0 0.0
        %2058 = vmatprep.subr.mxu0 0.0
        %2059 = vmatpush1.xpose.msra.mxu0 0.0
        %2060 = vmatprep.subr.mxu0 0.0
        %2061 = vmatpush1.xpose.msra.mxu0 0.0
        %2062 = vmatprep.subr.mxu0 0.0
        %2063 = vmatpush1.xpose.msra.mxu0 0.0
        %2064 = vmatprep.subr.mxu0 0.0
        %2065 = vmatpush1.xpose.msra.mxu0 0.0
        %2066 = vmatprep.subr.mxu0 0.0
        %2067 = vmatpush1.xpose.msra.mxu0 0.0
        %2068 = vmatprep.subr.mxu0 0.0
        %2069 = vmatpush1.xpose.msra.mxu0 0.0
        %2070 = vmatprep.mubr.f32.mxu0 0.0
        %2071 = vmatmul.mubr.f32.gmra.mrb[0].mxu0 %v1998
        %v2072 = vpop.f32.mrb[0].mxu0
        %v2073 = vadd.f32 0.0, %v2072
        %v2074 = vpop.f32.mrb[0].mxu0
        %2075 = vmatprep.mubr.f32.mxu0 0.0
        %2076 = vmatmul.mubr.f32.gmra.mrb[0].mxu0 %v2000
        %v2077 = vpop.f32.mrb[0].mxu0
        %v2078 = vadd.f32 0.0, %v2077
        %v2079 = vpop.f32.mrb[0].mxu0
        %2080 = vdwg.mxu0
        %v2081 = vmul.f32 %v2073, 0.25
        %v2082 = vmul.f32 %v2078, 0.25
        %v2083 = vadd.f32 %v2081, %v766
        %v2084 = vadd.f32 %v2082, %v766
        %v2085 = vsel %vm676, %v2083, -inf
        %2086 = vmax.xlane.f32.xlu0 %v2085
        %v2087 = vpop.xlane.xlu0 %2086
        %v2088 = vsel %vm676, %v2084, -inf
        %2089 = vmax.xlane.f32.xlu0 %v2088
        %v2090 = vpop.xlane.xlu0 %2089
        %v2091 = vsub.f32 %v2083, %v2087
        %v2092 = vsub.f32 %v2084, %v2090
        %v2093 = vmul.f32 %v2091, 1.442695
        %v2094 = vpow.pop %v2093
        %v2095 = vmul.f32 %v2092, 1.442695
        %v2096 = vpow.pop %v2095
        %v2097 = vsel %vm676, %v2094, 0.0
        %2098 = vadd.xlane.f32.xlu0 %v2097
        %v2099 = vpop.xlane.xlu0 %2098
        %v2100 = vsel %vm676, %v2096, 0.0
        %2101 = vadd.xlane.f32.xlu0 %v2100
        %v2102 = vpop.xlane.xlu0 %2101
        %v2103 = vrcp.pop %v2099
        %v2104 = vrcp.pop %v2102
        %v2105 = vmul.f32 %v2094, %v2103
        %v2106 = vmul.f32 %v2096, %v2104
        %2107 = vrot.lane.b32.xlu0 %v1984, 64
        %v2108 = vpop.permute.xlu0 %2107
        %2109 = vrot.lane.b32.xlu0 %v1989, 64
        %v2110 = vpop.permute.xlu0 %2109
        %v2114 = vsel %vm676, %v2105, 0
        %v2117 = vsel %vm676, %v2106, 0
        %2119 = vmatprep.subr.mxu0 0.0
        %2120 = vmatpush1.msra.mxu0 %v2108
        %2121 = vmatprep.subr.mxu0 0.0
        %2122 = vmatpush1.msra.mxu0 %v2110
        %2123 = vmatprep.subr.mxu0 0.0
        %2124 = vmatpush1.msra.mxu0 0.0
        %2125 = vmatprep.subr.mxu0 0.0
        %2126 = vmatpush1.msra.mxu0 0.0
        %2127 = vmatprep.subr.mxu0 0.0
        %2128 = vmatpush1.msra.mxu0 0.0
        %2129 = vmatprep.subr.mxu0 0.0
        %2130 = vmatpush1.msra.mxu0 0.0
        %2131 = vmatprep.subr.mxu0 0.0
        %2132 = vmatpush1.msra.mxu0 0.0
        %2133 = vmatprep.subr.mxu0 0.0
        %2134 = vmatpush1.msra.mxu0 0.0
        %2135 = vmatprep.subr.mxu0 0.0
        %2136 = vmatpush1.msra.mxu0 0.0
        %2137 = vmatprep.subr.mxu0 0.0
        %2138 = vmatpush1.msra.mxu0 0.0
        %2139 = vmatprep.subr.mxu0 0.0
        %2140 = vmatpush1.msra.mxu0 0.0
        %2141 = vmatprep.subr.mxu0 0.0
        %2142 = vmatpush1.msra.mxu0 0.0
        %2143 = vmatprep.subr.mxu0 0.0
        %2144 = vmatpush1.msra.mxu0 0.0
        %2145 = vmatprep.subr.mxu0 0.0
        %2146 = vmatpush1.msra.mxu0 0.0
        %2147 = vmatprep.subr.mxu0 0.0
        %2148 = vmatpush1.msra.mxu0 0.0
        %2149 = vmatprep.subr.mxu0 0.0
        %2150 = vmatpush1.msra.mxu0 0.0
        %2151 = vmatprep.subr.mxu0 0.0
        %2152 = vmatpush1.msra.mxu0 0.0
        %2153 = vmatprep.subr.mxu0 0.0
        %2154 = vmatpush1.msra.mxu0 0.0
        %2155 = vmatprep.subr.mxu0 0.0
        %2156 = vmatpush1.msra.mxu0 0.0
        %2157 = vmatprep.subr.mxu0 0.0
        %2158 = vmatpush1.msra.mxu0 0.0
        %2159 = vmatprep.subr.mxu0 0.0
        %2160 = vmatpush1.msra.mxu0 0.0
        %2161 = vmatprep.subr.mxu0 0.0
        %2162 = vmatpush1.msra.mxu0 0.0
        %2163 = vmatprep.subr.mxu0 0.0
        %2164 = vmatpush1.msra.mxu0 0.0
        %2165 = vmatprep.subr.mxu0 0.0
        %2166 = vmatpush1.msra.mxu0 0.0
        %2167 = vmatprep.subr.mxu0 0.0
        %2168 = vmatpush1.msra.mxu0 0.0
        %2169 = vmatprep.subr.mxu0 0.0
        %2170 = vmatpush1.msra.mxu0 0.0
        %2171 = vmatprep.subr.mxu0 0.0
        %2172 = vmatpush1.msra.mxu0 0.0
        %2173 = vmatprep.subr.mxu0 0.0
        %2174 = vmatpush1.msra.mxu0 0.0
        %2175 = vmatprep.subr.mxu0 0.0
        %2176 = vmatpush1.msra.mxu0 0.0
        %2177 = vmatprep.subr.mxu0 0.0
        %2178 = vmatpush1.msra.mxu0 0.0
        %2179 = vmatprep.subr.mxu0 0.0
        %2180 = vmatpush1.msra.mxu0 0.0
        %2181 = vmatprep.subr.mxu0 0.0
        %2182 = vmatpush1.msra.mxu0 0.0
        %2183 = vmatprep.mubr.f32.mxu0 0.0
        %2184 = vmatmul.mubr.f32.gmra.mrb[0].mxu0 %v2114
        %v2185 = vpop.f32.mrb[0].mxu0
        %v2186 = vadd.f32 0.0, %v2185
        %v2187 = vpop.f32.mrb[0].mxu0
        %2188 = vmatprep.mubr.f32.mxu0 0.0
        %2189 = vmatmul.mubr.f32.gmra.mrb[0].mxu0 %v2117
        %v2190 = vpop.f32.mrb[0].mxu0
        %v2191 = vadd.f32 0.0, %v2190
        %v2192 = vpop.f32.mrb[0].mxu0
        %2193 = vdwg.mxu0
        %2194 = vrot.lane.b32.xlu0 %v1984, 112
        %v2195 = vpop.permute.xlu0 %2194
        %2196 = vrot.lane.b32.xlu0 %v1989, 112
        %v2197 = vpop.permute.xlu0 %2196
        %2198 = vrot.lane.b32.xlu0 %v1984, 80
        %v2199 = vpop.permute.xlu0 %2198
        %2200 = vrot.lane.b32.xlu0 %v1989, 80
        %v2201 = vpop.permute.xlu0 %2200
        %v2202 = vsel %vm676, %v2195, 0
        %v2204 = vsel %vm676, %v2197, 0
        %v2206 = vsel %vm676, %v2199, 0
        %v2208 = vsel %vm676, %v2201, 0
        %2210 = vmatprep.subr.mxu0 0.0
        %2211 = vmatpush1.xpose.msra.mxu0 %v2206
        %2212 = vmatprep.subr.mxu0 0.0
        %2213 = vmatpush1.xpose.msra.mxu0 %v2208
        %2214 = vmatprep.subr.mxu0 0.0
        %2215 = vmatpush1.xpose.msra.mxu0 0.0
        %2216 = vmatprep.subr.mxu0 0.0
        %2217 = vmatpush1.xpose.msra.mxu0 0.0
        %2218 = vmatprep.subr.mxu0 0.0
        %2219 = vmatpush1.xpose.msra.mxu0 0.0
        %2220 = vmatprep.subr.mxu0 0.0
        %2221 = vmatpush1.xpose.msra.mxu0 0.0
        %2222 = vmatprep.subr.mxu0 0.0
        %2223 = vmatpush1.xpose.msra.mxu0 0.0
        %2224 = vmatprep.subr.mxu0 0.0
        %2225 = vmatpush1.xpose.msra.mxu0 0.0
        %2226 = vmatprep.subr.mxu0 0.0
        %2227 = vmatpush1.xpose.msra.mxu0 0.0
        %2228 = vmatprep.subr.mxu0 0.0
        %2229 = vmatpush1.xpose.msra.mxu0 0.0
        %2230 = vmatprep.subr.mxu0 0.0
        %2231 = vmatpush1.xpose.msra.mxu0 0.0
        %2232 = vmatprep.subr.mxu0 0.0
        %2233 = vmatpush1.xpose.msra.mxu0 0.0
        %2234 = vmatprep.subr.mxu0 0.0
        %2235 = vmatpush1.xpose.msra.mxu0 0.0
        %2236 = vmatprep.subr.mxu0 0.0
        %2237 = vmatpush1.xpose.msra.mxu0 0.0
        %2238 = vmatprep.subr.mxu0 0.0
        %2239 = vmatpush1.xpose.msra.mxu0 0.0
        %2240 = vmatprep.subr.mxu0 0.0
        %2241 = vmatpush1.xpose.msra.mxu0 0.0
        %2242 = vmatprep.subr.mxu0 0.0
        %2243 = vmatpush1.xpose.msra.mxu0 0.0
        %2244 = vmatprep.subr.mxu0 0.0
        %2245 = vmatpush1.xpose.msra.mxu0 0.0
        %2246 = vmatprep.subr.mxu0 0.0
        %2247 = vmatpush1.xpose.msra.mxu0 0.0
        %2248 = vmatprep.subr.mxu0 0.0
        %2249 = vmatpush1.xpose.msra.mxu0 0.0
        %2250 = vmatprep.subr.mxu0 0.0
        %2251 = vmatpush1.xpose.msra.mxu0 0.0
        %2252 = vmatprep.subr.mxu0 0.0
        %2253 = vmatpush1.xpose.msra.mxu0 0.0
        %2254 = vmatprep.subr.mxu0 0.0
        %2255 = vmatpush1.xpose.msra.mxu0 0.0
        %2256 = vmatprep.subr.mxu0 0.0
        %2257 = vmatpush1.xpose.msra.mxu0 0.0
        %2258 = vmatprep.subr.mxu0 0.0
        %2259 = vmatpush1.xpose.msra.mxu0 0.0
        %2260 = vmatprep.subr.mxu0 0.0
        %2261 = vmatpush1.xpose.msra.mxu0 0.0
        %2262 = vmatprep.subr.mxu0 0.0
        %2263 = vmatpush1.xpose.msra.mxu0 0.0
        %2264 = vmatprep.subr.mxu0 0.0
        %2265 = vmatpush1.xpose.msra.mxu0 0.0
        %2266 = vmatprep.subr.mxu0 0.0
        %2267 = vmatpush1.xpose.msra.mxu0 0.0
        %2268 = vmatprep.subr.mxu0 0.0
        %2269 = vmatpush1.xpose.msra.mxu0 0.0
        %2270 = vmatprep.subr.mxu0 0.0
        %2271 = vmatpush1.xpose.msra.mxu0 0.0
        %2272 = vmatprep.subr.mxu0 0.0
        %2273 = vmatpush1.xpose.msra.mxu0 0.0
        %2274 = vmatprep.mubr.f32.mxu0 0.0
        %2275 = vmatmul.mubr.f32.gmra.mrb[0].mxu0 %v2202
        %v2276 = vpop.f32.mrb[0].mxu0
        %v2277 = vadd.f32 0.0, %v2276
        %v2278 = vpop.f32.mrb[0].mxu0
        %2279 = vmatprep.mubr.f32.mxu0 0.0
        %2280 = vmatmul.mubr.f32.gmra.mrb[0].mxu0 %v2204
        %v2281 = vpop.f32.mrb[0].mxu0
        %v2282 = vadd.f32 0.0, %v2281
        %v2283 = vpop.f32.mrb[0].mxu0
        %2284 = vdwg.mxu0
        %v2285 = vmul.f32 %v2277, 0.25
        %v2286 = vmul.f32 %v2282, 0.25
        %v2287 = vadd.f32 %v2285, %v766
        %v2288 = vadd.f32 %v2286, %v766
        %v2289 = vsel %vm676, %v2287, -inf
        %2290 = vmax.xlane.f32.xlu0 %v2289
        %v2291 = vpop.xlane.xlu0 %2290
        %v2292 = vsel %vm676, %v2288, -inf
        %2293 = vmax.xlane.f32.xlu0 %v2292
        %v2294 = vpop.xlane.xlu0 %2293
        %v2295 = vsub.f32 %v2287, %v2291
        %v2296 = vsub.f32 %v2288, %v2294
        %v2297 = vmul.f32 %v2295, 1.442695
        %v2298 = vpow.pop %v2297
        %v2299 = vmul.f32 %v2296, 1.442695
        %v2300 = vpow.pop %v2299
        %v2301 = vsel %vm676, %v2298, 0.0
        %2302 = vadd.xlane.f32.xlu0 %v2301
        %v2303 = vpop.xlane.xlu0 %2302
        %v2304 = vsel %vm676, %v2300, 0.0
        %2305 = vadd.xlane.f32.xlu0 %v2304
        %v2306 = vpop.xlane.xlu0 %2305
        %v2307 = vrcp.pop %v2303
        %v2308 = vrcp.pop %v2306
        %v2309 = vmul.f32 %v2298, %v2307
        %v2310 = vmul.f32 %v2300, %v2308
        %2311 = vrot.lane.b32.xlu0 %v1984, 48
        %v2312 = vpop.permute.xlu0 %2311
        %2313 = vrot.lane.b32.xlu0 %v1989, 48
        %v2314 = vpop.permute.xlu0 %2313
        %v2318 = vsel %vm676, %v2309, 0
        %v2321 = vsel %vm676, %v2310, 0
        %2323 = vmatprep.subr.mxu0 0.0
        %2324 = vmatpush1.msra.mxu0 %v2312
        %2325 = vmatprep.subr.mxu0 0.0
        %2326 = vmatpush1.msra.mxu0 %v2314
        %2327 = vmatprep.subr.mxu0 0.0
        %2328 = vmatpush1.msra.mxu0 0.0
        %2329 = vmatprep.subr.mxu0 0.0
        %2330 = vmatpush1.msra.mxu0 0.0
        %2331 = vmatprep.subr.mxu0 0.0
        %2332 = vmatpush1.msra.mxu0 0.0
        %2333 = vmatprep.subr.mxu0 0.0
        %2334 = vmatpush1.msra.mxu0 0.0
        %2335 = vmatprep.subr.mxu0 0.0
        %2336 = vmatpush1.msra.mxu0 0.0
        %2337 = vmatprep.subr.mxu0 0.0
        %2338 = vmatpush1.msra.mxu0 0.0
        %2339 = vmatprep.subr.mxu0 0.0
        %2340 = vmatpush1.msra.mxu0 0.0
        %2341 = vmatprep.subr.mxu0 0.0
        %2342 = vmatpush1.msra.mxu0 0.0
        %2343 = vmatprep.subr.mxu0 0.0
        %2344 = vmatpush1.msra.mxu0 0.0
        %2345 = vmatprep.subr.mxu0 0.0
        %2346 = vmatpush1.msra.mxu0 0.0
        %2347 = vmatprep.subr.mxu0 0.0
        %2348 = vmatpush1.msra.mxu0 0.0
        %2349 = vmatprep.subr.mxu0 0.0
        %2350 = vmatpush1.msra.mxu0 0.0
        %2351 = vmatprep.subr.mxu0 0.0
        %2352 = vmatpush1.msra.mxu0 0.0
        %2353 = vmatprep.subr.mxu0 0.0
        %2354 = vmatpush1.msra.mxu0 0.0
        %2355 = vmatprep.subr.mxu0 0.0
        %2356 = vmatpush1.msra.mxu0 0.0
        %2357 = vmatprep.subr.mxu0 0.0
        %2358 = vmatpush1.msra.mxu0 0.0
        %2359 = vmatprep.subr.mxu0 0.0
        %2360 = vmatpush1.msra.mxu0 0.0
        %2361 = vmatprep.subr.mxu0 0.0
        %2362 = vmatpush1.msra.mxu0 0.0
        %2363 = vmatprep.subr.mxu0 0.0
        %2364 = vmatpush1.msra.mxu0 0.0
        %2365 = vmatprep.subr.mxu0 0.0
        %2366 = vmatpush1.msra.mxu0 0.0
        %2367 = vmatprep.subr.mxu0 0.0
        %2368 = vmatpush1.msra.mxu0 0.0
        %2369 = vmatprep.subr.mxu0 0.0
        %2370 = vmatpush1.msra.mxu0 0.0
        %2371 = vmatprep.subr.mxu0 0.0
        %2372 = vmatpush1.msra.mxu0 0.0
        %2373 = vmatprep.subr.mxu0 0.0
        %2374 = vmatpush1.msra.mxu0 0.0
        %2375 = vmatprep.subr.mxu0 0.0
        %2376 = vmatpush1.msra.mxu0 0.0
        %2377 = vmatprep.subr.mxu0 0.0
        %2378 = vmatpush1.msra.mxu0 0.0
        %2379 = vmatprep.subr.mxu0 0.0
        %2380 = vmatpush1.msra.mxu0 0.0
        %2381 = vmatprep.subr.mxu0 0.0
        %2382 = vmatpush1.msra.mxu0 0.0
        %2383 = vmatprep.subr.mxu0 0.0
        %2384 = vmatpush1.msra.mxu0 0.0
        %2385 = vmatprep.subr.mxu0 0.0
        %2386 = vmatpush1.msra.mxu0 0.0
        %2387 = vmatprep.mubr.f32.mxu0 0.0
        %2388 = vmatmul.mubr.f32.gmra.mrb[0].mxu0 %v2318
        %v2389 = vpop.f32.mrb[0].mxu0
        %v2390 = vadd.f32 0.0, %v2389
        %v2391 = vpop.f32.mrb[0].mxu0
        %2392 = vmatprep.mubr.f32.mxu0 0.0
        %2393 = vmatmul.mubr.f32.gmra.mrb[0].mxu0 %v2321
        %v2394 = vpop.f32.mrb[0].mxu0
        %v2395 = vadd.f32 0.0, %v2394
        %v2396 = vpop.f32.mrb[0].mxu0
        %2397 = vdwg.mxu0
        %2400 = vrot.lane.b32.xlu0 %v2390, 16
        %v2401 = vpop.permute.xlu0 %2400
        %2402 = vrot.lane.b32.xlu0 %v2395, 16
        %v2403 = vpop.permute.xlu0 %2402
        %v2406 = vsel %vm676, %v2186, %v2401
        %v2407 = vsel %vm676, %v2191, %v2403
        %s2408 = scalar_lea.vmem %s6, 32
        %v2409 = vld [vmem:[%s2408] sm:$0xff]
        %v2410 = vld [vmem:[%s2408 + $0x8] sm:$0xff]
        %v2411 = vld [vmem:[%s2408 + $0x10] sm:$0xff]
        %v2412 = vld [vmem:[%s2408 + $0x18] sm:$0xff]
        %s2413 = scalar_lea.vmem %s7, 1
        %v2414 = vld [vmem:[%s2413] sm:$0x1]
        %v2416 = vlaneseq
        %v2417 = vshrl.u32 %v2416, 7
        %v2418 = vsub.s32 0, %v2417
        %v2419 = vrot.slane %v2414, %v2418
        %v2422 = vsel %vm588, %v2406, 0
        %v2425 = vsel %vm588, %v2407, 0
        %2427 = vmatprep.subr.mxu0 0.0
        %2428 = vmatpush1.msra.mxu0 %v2409
        %2429 = vmatprep.subr.mxu0 0.0
        %2430 = vmatpush1.msra.mxu0 %v2410
        %2431 = vmatprep.subr.mxu0 0.0
        %2432 = vmatpush1.msra.mxu0 %v2411
        %2433 = vmatprep.subr.mxu0 0.0
        %2434 = vmatpush1.msra.mxu0 %v2412
        %2435 = vmatprep.subr.mxu0 0.0
        %2436 = vmatpush1.msra.mxu0 0.0
        %2437 = vmatprep.subr.mxu0 0.0
        %2438 = vmatpush1.msra.mxu0 0.0
        %2439 = vmatprep.subr.mxu0 0.0
        %2440 = vmatpush1.msra.mxu0 0.0
        %2441 = vmatprep.subr.mxu0 0.0
        %2442 = vmatpush1.msra.mxu0 0.0
        %2443 = vmatprep.subr.mxu0 0.0
        %2444 = vmatpush1.msra.mxu0 0.0
        %2445 = vmatprep.subr.mxu0 0.0
        %2446 = vmatpush1.msra.mxu0 0.0
        %2447 = vmatprep.subr.mxu0 0.0
        %2448 = vmatpush1.msra.mxu0 0.0
        %2449 = vmatprep.subr.mxu0 0.0
        %2450 = vmatpush1.msra.mxu0 0.0
        %2451 = vmatprep.subr.mxu0 0.0
        %2452 = vmatpush1.msra.mxu0 0.0
        %2453 = vmatprep.subr.mxu0 0.0
        %2454 = vmatpush1.msra.mxu0 0.0
        %2455 = vmatprep.subr.mxu0 0.0
        %2456 = vmatpush1.msra.mxu0 0.0
        %2457 = vmatprep.subr.mxu0 0.0
        %2458 = vmatpush1.msra.mxu0 0.0
        %2459 = vmatprep.subr.mxu0 0.0
        %2460 = vmatpush1.msra.mxu0 0.0
        %2461 = vmatprep.subr.mxu0 0.0
        %2462 = vmatpush1.msra.mxu0 0.0
        %2463 = vmatprep.subr.mxu0 0.0
        %2464 = vmatpush1.msra.mxu0 0.0
        %2465 = vmatprep.subr.mxu0 0.0
        %2466 = vmatpush1.msra.mxu0 0.0
        %2467 = vmatprep.subr.mxu0 0.0
        %2468 = vmatpush1.msra.mxu0 0.0
        %2469 = vmatprep.subr.mxu0 0.0
        %2470 = vmatpush1.msra.mxu0 0.0
        %2471 = vmatprep.subr.mxu0 0.0
        %2472 = vmatpush1.msra.mxu0 0.0
        %2473 = vmatprep.subr.mxu0 0.0
        %2474 = vmatpush1.msra.mxu0 0.0
        %2475 = vmatprep.subr.mxu0 0.0
        %2476 = vmatpush1.msra.mxu0 0.0
        %2477 = vmatprep.subr.mxu0 0.0
        %2478 = vmatpush1.msra.mxu0 0.0
        %2479 = vmatprep.subr.mxu0 0.0
        %2480 = vmatpush1.msra.mxu0 0.0
        %2481 = vmatprep.subr.mxu0 0.0
        %2482 = vmatpush1.msra.mxu0 0.0
        %2483 = vmatprep.subr.mxu0 0.0
        %2484 = vmatpush1.msra.mxu0 0.0
        %2485 = vmatprep.subr.mxu0 0.0
        %2486 = vmatpush1.msra.mxu0 0.0
        %2487 = vmatprep.subr.mxu0 0.0
        %2488 = vmatpush1.msra.mxu0 0.0
        %2489 = vmatprep.subr.mxu0 0.0
        %2490 = vmatpush1.msra.mxu0 0.0
        %2491 = vmatprep.mubr.f32.mxu0 0.0
        %2492 = vmatmul.mubr.f32.gmra.mrb[0].mxu0 %v2422
        %v2493 = vpop.f32.mrb[0].mxu0
        %v2494 = vadd.f32 %v2419, %v2493
        %v2495 = vpop.f32.mrb[0].mxu0
        %2496 = vmatprep.mubr.f32.mxu0 0.0
        %2497 = vmatmul.mubr.f32.gmra.mrb[0].mxu0 %v2425
        %v2498 = vpop.f32.mrb[0].mxu0
        %v2499 = vadd.f32 %v2419, %v2498
        %v2500 = vpop.f32.mrb[0].mxu0
        %2501 = vdwg.mxu0
        %v2502 = vadd.f32 %v2494, %v1896
        %v2503 = vadd.f32 %v2499, %v1897
        %s2504 = scalar_lea.vmem %s8, 256
        %v2505 = vld [vmem:[%s2504] sm:$0xff]
        %v2506 = vld [vmem:[%s2504 + $0x8] sm:$0xff]
        %v2507 = vld [vmem:[%s2504 + $0x10] sm:$0xff]
        %v2508 = vld [vmem:[%s2504 + $0x18] sm:$0xff]
        %v2509 = vld [vmem:[%s2504 + $0x20] sm:$0xff]
        %v2510 = vld [vmem:[%s2504 + $0x28] sm:$0xff]
        %v2511 = vld [vmem:[%s2504 + $0x30] sm:$0xff]
        %v2512 = vld [vmem:[%s2504 + $0x38] sm:$0xff]
        %v2513 = vld [vmem:[%s2504 + $0x40] sm:$0xff]
        %v2514 = vld [vmem:[%s2504 + $0x48] sm:$0xff]
        %v2515 = vld [vmem:[%s2504 + $0x50] sm:$0xff]
        %v2516 = vld [vmem:[%s2504 + $0x58] sm:$0xff]
        %v2517 = vld [vmem:[%s2504 + $0x60] sm:$0xff]
        %v2518 = vld [vmem:[%s2504 + $0x68] sm:$0xff]
        %v2519 = vld [vmem:[%s2504 + $0x70] sm:$0xff]
        %v2520 = vld [vmem:[%s2504 + $0x78] sm:$0xff]
        %v2521 = vld [vmem:[%s2504 + $0x80] sm:$0xff]
        %v2522 = vld [vmem:[%s2504 + $0x88] sm:$0xff]
        %v2523 = vld [vmem:[%s2504 + $0x90] sm:$0xff]
        %v2524 = vld [vmem:[%s2504 + $0x98] sm:$0xff]
        %v2525 = vld [vmem:[%s2504 + $0xa0] sm:$0xff]
        %v2526 = vld [vmem:[%s2504 + $0xa8] sm:$0xff]
        %v2527 = vld [vmem:[%s2504 + $0xb0] sm:$0xff]
        %v2528 = vld [vmem:[%s2504 + $0xb8] sm:$0xff]
        %v2529 = vld [vmem:[%s2504 + $0xc0] sm:$0xff]
        %v2530 = vld [vmem:[%s2504 + $0xc8] sm:$0xff]
        %v2531 = vld [vmem:[%s2504 + $0xd0] sm:$0xff]
        %v2532 = vld [vmem:[%s2504 + $0xd8] sm:$0xff]
        %v2533 = vld [vmem:[%s2504 + $0xe0] sm:$0xff]
        %v2534 = vld [vmem:[%s2504 + $0xe8] sm:$0xff]
        %v2535 = vld [vmem:[%s2504 + $0xf0] sm:$0xff]
        %v2536 = vld [vmem:[%s2504 + $0xf8] sm:$0xff]
        %s2537 = scalar_lea.vmem %s9, 1
        %v2538 = vld [vmem:[%s2537] sm:$0x1]
        %2539 = vmatprep.subr.mxu0 0.0
        %2540 = vmatpush1.msra.mxu0 %v2505
        %2541 = vmatprep.subr.mxu0 0.0
        %2542 = vmatpush1.msra.mxu0 %v2506
        %2543 = vmatprep.subr.mxu0 0.0
        %2544 = vmatpush1.msra.mxu0 %v2507
        %2545 = vmatprep.subr.mxu0 0.0
        %2546 = vmatpush1.msra.mxu0 %v2508
        %2547 = vmatprep.subr.mxu0 0.0
        %2548 = vmatpush1.msra.mxu0 %v2509
        %2549 = vmatprep.subr.mxu0 0.0
        %2550 = vmatpush1.msra.mxu0 %v2510
        %2551 = vmatprep.subr.mxu0 0.0
        %2552 = vmatpush1.msra.mxu0 %v2511
        %2553 = vmatprep.subr.mxu0 0.0
        %2554 = vmatpush1.msra.mxu0 %v2512
        %2555 = vmatprep.subr.mxu0 0.0
        %2556 = vmatpush1.msra.mxu0 %v2513
        %2557 = vmatprep.subr.mxu0 0.0
        %2558 = vmatpush1.msra.mxu0 %v2514
        %2559 = vmatprep.subr.mxu0 0.0
        %2560 = vmatpush1.msra.mxu0 %v2515
        %2561 = vmatprep.subr.mxu0 0.0
        %2562 = vmatpush1.msra.mxu0 %v2516
        %2563 = vmatprep.subr.mxu0 0.0
        %2564 = vmatpush1.msra.mxu0 %v2517
        %2565 = vmatprep.subr.mxu0 0.0
        %2566 = vmatpush1.msra.mxu0 %v2518
        %2567 = vmatprep.subr.mxu0 0.0
        %2568 = vmatpush1.msra.mxu0 %v2519
        %2569 = vmatprep.subr.mxu0 0.0
        %2570 = vmatpush1.msra.mxu0 %v2520
        %2571 = vmatprep.subr.mxu0 0.0
        %2572 = vmatpush1.msra.mxu0 %v2521
        %2573 = vmatprep.subr.mxu0 0.0
        %2574 = vmatpush1.msra.mxu0 %v2522
        %2575 = vmatprep.subr.mxu0 0.0
        %2576 = vmatpush1.msra.mxu0 %v2523
        %2577 = vmatprep.subr.mxu0 0.0
        %2578 = vmatpush1.msra.mxu0 %v2524
        %2579 = vmatprep.subr.mxu0 0.0
        %2580 = vmatpush1.msra.mxu0 %v2525
        %2581 = vmatprep.subr.mxu0 0.0
        %2582 = vmatpush1.msra.mxu0 %v2526
        %2583 = vmatprep.subr.mxu0 0.0
        %2584 = vmatpush1.msra.mxu0 %v2527
        %2585 = vmatprep.subr.mxu0 0.0
        %2586 = vmatpush1.msra.mxu0 %v2528
        %2587 = vmatprep.subr.mxu0 0.0
        %2588 = vmatpush1.msra.mxu0 %v2529
        %2589 = vmatprep.subr.mxu0 0.0
        %2590 = vmatpush1.msra.mxu0 %v2530
        %2591 = vmatprep.subr.mxu0 0.0
        %2592 = vmatpush1.msra.mxu0 %v2531
        %2593 = vmatprep.subr.mxu0 0.0
        %2594 = vmatpush1.msra.mxu0 %v2532
        %2595 = vmatprep.subr.mxu0 0.0
        %2596 = vmatpush1.msra.mxu0 %v2533
        %2597 = vmatprep.subr.mxu0 0.0
        %2598 = vmatpush1.msra.mxu0 %v2534
        %2599 = vmatprep.subr.mxu0 0.0
        %2600 = vmatpush1.msra.mxu0 %v2535
        %2601 = vmatprep.subr.mxu0 0.0
        %2602 = vmatpush1.msra.mxu0 %v2536
        %2603 = vmatprep.mubr.f32.mxu0 %v1228
        %2604 = vmatmul.mubr.f32.gmra.mrb[0].mxu0 %v1224
        %v2605 = vpop.f32.mrb[0].mxu0
        %v2606 = vadd.f32 %v2538, %v2605
        %v2607 = vpop.f32.mrb[0].mxu0
        %2608 = vdwg.mxu0
        %v2609 = vsel %vm588, %v2502, 0.0
        %2610 = vadd.xlane.f32.xlu0 %v2609
        %v2611 = vpop.xlane.xlu0 %2610
        %v2612 = vsel %vm588, %v2503, 0.0
        %2613 = vadd.xlane.f32.xlu0 %v2612
        %v2614 = vpop.xlane.xlu0 %2613
        %v2615 = vmul.f32 %v2611, %v1307
        %v2616 = vmul.f32 %v2614, %v1307
        %v2617 = vsub.f32 %v2502, %v2615
        %v2618 = vsub.f32 %v2503, %v2616
        %v2619 = vmul.f32 %v2617, %v2617
        %v2620 = vmul.f32 %v2618, %v2618
        %v2621 = vsel %vm588, %v2619, 0.0
        %2622 = vadd.xlane.f32.xlu0 %v2621
        %v2623 = vpop.xlane.xlu0 %2622
        %v2624 = vsel %vm588, %v2620, 0.0
        %2625 = vadd.xlane.f32.xlu0 %v2624
        %v2626 = vpop.xlane.xlu0 %2625
        %v2627 = vmul.f32 %v2623, %v1307
        %v2628 = vmul.f32 %v2626, %v1307
        %v2629 = vadd.f32 %v2627, 1e-05
        %v2630 = vadd.f32 %v2628, 1e-05
        %v2631 = vrsqrt.pop %v2629
        %v2632 = vrsqrt.pop %v2630
        %v2633 = vmul.f32 %v2617, %v2631
        %v2634 = vmul.f32 %v2618, %v2632
        %v2635 = vlaneseq
        %v2636 = vshrl.u32 %v2635, 7
        %v2637 = vsub.s32 0, %v2636
        %v2638 = vrot.slane %v2606, %v2637
        %v2639 = vmul.f32 %v2638, %v2633
        %v2640 = vmul.f32 %v2638, %v2634
        %2642 = vrot.lane.b32.xlu0 %v2638, 96
        %v2643 = vpop.permute.xlu0 %2642
        %v2645 = vadd.f32 %v2639, %v2643
        %v2646 = vadd.f32 %v2640, %v2643
        %v2647 = vmul.f32 %v2645, %v1343
        %v2648 = vmul.f32 %v2646, %v1348
        %v2651 = vrot.slane %v2647, 4
        %v2652 = vrot.slane %v2648, 4
        %v2653 = vsel %vm1354, %v2651, %v2652
        %v2657 = vsel %vm1354, 0.0, %v2651
        %v2658 = vsel %vm1354, %v2652, 0.0
        %v2661 = vrot.slane %v2657, 1
        %v2662 = vrot.slane %v2653, 1
        %v2663 = vsel %vm1365, %v2661, %v2662
        %v2664 = vrot.slane %v2658, 1
        %v2665 = vsel %vm1365, %v2662, %v2664
        %2666 = vrot.lane.b32.xlu0 %v2663, 32
        %v2667 = vpop.permute.xlu0 %2666
        %2668 = vrot.lane.b32.xlu0 %v2665, 32
        %v2669 = vpop.permute.xlu0 %2668
        %v2672 = vrot.slane %v2657, 2
        %v2673 = vrot.slane %v2653, 2
        %v2674 = vsel %vm1377, %v2672, %v2673
        %v2675 = vrot.slane %v2658, 2
        %v2676 = vsel %vm1377, %v2673, %v2675
        %2677 = vrot.lane.b32.xlu0 %v2674, 64
        %v2678 = vpop.permute.xlu0 %2677
        %2679 = vrot.lane.b32.xlu0 %v2676, 64
        %v2680 = vpop.permute.xlu0 %2679
        %v2683 = vrot.slane %v2657, 3
        %v2684 = vrot.slane %v2653, 3
        %v2685 = vsel %vm1389, %v2683, %v2684
        %v2686 = vrot.slane %v2658, 3
        %v2687 = vsel %vm1389, %v2684, %v2686
        %2688 = vrot.lane.b32.xlu0 %v2685, 96
        %v2689 = vpop.permute.xlu0 %2688
        %2690 = vrot.lane.b32.xlu0 %v2687, 96
        %v2691 = vpop.permute.xlu0 %2690
        %v2694 = vrot.slane %v2657, 4
        %v2695 = vrot.slane %v2653, 4
        %v2696 = vsel %vm1354, %v2694, %v2695
        %v2697 = vrot.slane %v2658, 4
        %v2698 = vsel %vm1354, %v2695, %v2697
        %v2701 = vrot.slane %v2657, 5
        %v2702 = vrot.slane %v2653, 5
        %v2703 = vsel %vm1408, %v2701, %v2702
        %v2704 = vrot.slane %v2658, 5
        %v2705 = vsel %vm1408, %v2702, %v2704
        %2706 = vrot.lane.b32.xlu0 %v2703, 32
        %v2707 = vpop.permute.xlu0 %2706
        %2708 = vrot.lane.b32.xlu0 %v2705, 32
        %v2709 = vpop.permute.xlu0 %2708
        %v2712 = vrot.slane %v2657, 6
        %v2713 = vrot.slane %v2653, 6
        %v2714 = vsel %vm1420, %v2712, %v2713
        %v2715 = vrot.slane %v2658, 6
        %v2716 = vsel %vm1420, %v2713, %v2715
        %2717 = vrot.lane.b32.xlu0 %v2714, 64
        %v2718 = vpop.permute.xlu0 %2717
        %2719 = vrot.lane.b32.xlu0 %v2716, 64
        %v2720 = vpop.permute.xlu0 %2719
        %v2723 = vrot.slane %v2657, 7
        %v2724 = vrot.slane %v2653, 7
        %v2725 = vsel %vm1432, %v2723, %v2724
        %v2726 = vrot.slane %v2658, 7
        %v2727 = vsel %vm1432, %v2724, %v2726
        %2728 = vrot.lane.b32.xlu0 %v2725, 96
        %v2729 = vpop.permute.xlu0 %2728
        %2730 = vrot.lane.b32.xlu0 %v2727, 96
        %v2731 = vpop.permute.xlu0 %2730
        %v2734 = vsel %vm588, %v2657, %v2667
        %v2735 = vsel %vm588, %v2653, %v2669
        %v2736 = vsel %vm1446, %v2734, %v2678
        %v2737 = vsel %vm1446, %v2735, %v2680
        %v2738 = vsel %vm1449, %v2736, %v2689
        %v2739 = vsel %vm1449, %v2737, %v2691
        %v2740 = vsel %vm588, %v2696, %v2707
        %v2741 = vsel %vm588, %v2698, %v2709
        %v2742 = vsel %vm1446, %v2740, %v2718
        %v2743 = vsel %vm1446, %v2741, %v2720
        %v2744 = vsel %vm1449, %v2742, %v2729
        %v2745 = vsel %vm1449, %v2743, %v2731
        %s2746 = scalar_lea.vmem %s10, 288
        %v2747 = vld [vmem:[%s2746] sm:$0xff]
        %v2748 = vld [vmem:[%s2746 + $0x8] sm:$0xff]
        %v2749 = vld [vmem:[%s2746 + $0x10] sm:$0xff]
        %v2750 = vld [vmem:[%s2746 + $0x18] sm:$0xff]
        %v2751 = vld [vmem:[%s2746 + $0x20] sm:$0xff]
        %v2752 = vld [vmem:[%s2746 + $0x28] sm:$0xff]
        %v2753 = vld [vmem:[%s2746 + $0x30] sm:$0xff]
        %v2754 = vld [vmem:[%s2746 + $0x38] sm:$0xff]
        %v2755 = vld [vmem:[%s2746 + $0x40] sm:$0xff]
        %v2756 = vld [vmem:[%s2746 + $0x48] sm:$0xff]
        %v2757 = vld [vmem:[%s2746 + $0x50] sm:$0xff]
        %v2758 = vld [vmem:[%s2746 + $0x58] sm:$0xff]
        %v2759 = vld [vmem:[%s2746 + $0x60] sm:$0xff]
        %v2760 = vld [vmem:[%s2746 + $0x68] sm:$0xff]
        %v2761 = vld [vmem:[%s2746 + $0x70] sm:$0xff]
        %v2762 = vld [vmem:[%s2746 + $0x78] sm:$0xff]
        %v2763 = vld [vmem:[%s2746 + $0x80] sm:$0xff]
        %v2764 = vld [vmem:[%s2746 + $0x88] sm:$0xff]
        %v2765 = vld [vmem:[%s2746 + $0x90] sm:$0xff]
        %v2766 = vld [vmem:[%s2746 + $0x98] sm:$0xff]
        %v2767 = vld [vmem:[%s2746 + $0xa0] sm:$0xff]
        %v2768 = vld [vmem:[%s2746 + $0xa8] sm:$0xff]
        %v2769 = vld [vmem:[%s2746 + $0xb0] sm:$0xff]
        %v2770 = vld [vmem:[%s2746 + $0xb8] sm:$0xff]
        %v2771 = vld [vmem:[%s2746 + $0xc0] sm:$0xff]
        %v2772 = vld [vmem:[%s2746 + $0xc8] sm:$0xff]
        %v2773 = vld [vmem:[%s2746 + $0xd0] sm:$0xff]
        %v2774 = vld [vmem:[%s2746 + $0xd8] sm:$0xff]
        %v2775 = vld [vmem:[%s2746 + $0xe0] sm:$0xff]
        %v2776 = vld [vmem:[%s2746 + $0xe8] sm:$0xff]
        %v2777 = vld [vmem:[%s2746 + $0xf0] sm:$0xff]
        %v2778 = vld [vmem:[%s2746 + $0xf8] sm:$0xff]
        %v2779 = vld [vmem:[%s2746 + $0x100] sm:$0xff]
        %v2780 = vld [vmem:[%s2746 + $0x108] sm:$0xff]
        %v2781 = vld [vmem:[%s2746 + $0x110] sm:$0xff]
        %v2782 = vld [vmem:[%s2746 + $0x118] sm:$0xff]
        %s2783 = scalar_lea.vmem %s11, 1
        %v2784 = vld [vmem:[%s2783] sm:$0x1]
        %v2786 = vlaneseq
        %v2787 = vshrl.u32 %v2786, 7
        %v2788 = vsub.s32 0, %v2787
        %v2789 = vrot.slane %v2784, %v2788
        %v2791 = vsel %vm588, %v2653, 0
        %v2793 = vsel %vm588, %v2658, 0
        %2795 = vmatprep.subr.mxu0 0.0
        %2796 = vmatpush1.msra.mxu0 %v2747
        %2797 = vmatprep.subr.mxu0 0.0
        %2798 = vmatpush1.msra.mxu0 %v2748
        %2799 = vmatprep.subr.mxu0 0.0
        %2800 = vmatpush1.msra.mxu0 %v2749
        %2801 = vmatprep.subr.mxu0 0.0
        %2802 = vmatpush1.msra.mxu0 %v2750
        %2803 = vmatprep.subr.mxu0 0.0
        %2804 = vmatpush1.msra.mxu0 %v2751
        %2805 = vmatprep.subr.mxu0 0.0
        %2806 = vmatpush1.msra.mxu0 %v2752
        %2807 = vmatprep.subr.mxu0 0.0
        %2808 = vmatpush1.msra.mxu0 %v2753
        %2809 = vmatprep.subr.mxu0 0.0
        %2810 = vmatpush1.msra.mxu0 %v2754
        %2811 = vmatprep.subr.mxu0 0.0
        %2812 = vmatpush1.msra.mxu0 %v2755
        %2813 = vmatprep.subr.mxu0 0.0
        %2814 = vmatpush1.msra.mxu0 %v2756
        %2815 = vmatprep.subr.mxu0 0.0
        %2816 = vmatpush1.msra.mxu0 %v2757
        %2817 = vmatprep.subr.mxu0 0.0
        %2818 = vmatpush1.msra.mxu0 %v2758
        %2819 = vmatprep.subr.mxu0 0.0
        %2820 = vmatpush1.msra.mxu0 %v2759
        %2821 = vmatprep.subr.mxu0 0.0
        %2822 = vmatpush1.msra.mxu0 %v2760
        %2823 = vmatprep.subr.mxu0 0.0
        %2824 = vmatpush1.msra.mxu0 %v2761
        %2825 = vmatprep.subr.mxu0 0.0
        %2826 = vmatpush1.msra.mxu0 %v2762
        %2827 = vmatprep.subr.mxu0 0.0
        %2828 = vmatpush1.msra.mxu0 %v2763
        %2829 = vmatprep.subr.mxu0 0.0
        %2830 = vmatpush1.msra.mxu0 %v2764
        %2831 = vmatprep.subr.mxu0 0.0
        %2832 = vmatpush1.msra.mxu0 %v2765
        %2833 = vmatprep.subr.mxu0 0.0
        %2834 = vmatpush1.msra.mxu0 %v2766
        %2835 = vmatprep.subr.mxu0 0.0
        %2836 = vmatpush1.msra.mxu0 %v2767
        %2837 = vmatprep.subr.mxu0 0.0
        %2838 = vmatpush1.msra.mxu0 %v2768
        %2839 = vmatprep.subr.mxu0 0.0
        %2840 = vmatpush1.msra.mxu0 %v2769
        %2841 = vmatprep.subr.mxu0 0.0
        %2842 = vmatpush1.msra.mxu0 %v2770
        %2843 = vmatprep.subr.mxu0 0.0
        %2844 = vmatpush1.msra.mxu0 %v2771
        %2845 = vmatprep.subr.mxu0 0.0
        %2846 = vmatpush1.msra.mxu0 %v2772
        %2847 = vmatprep.subr.mxu0 0.0
        %2848 = vmatpush1.msra.mxu0 %v2773
        %2849 = vmatprep.subr.mxu0 0.0
        %2850 = vmatpush1.msra.mxu0 %v2774
        %2851 = vmatprep.subr.mxu0 0.0
        %2852 = vmatpush1.msra.mxu0 %v2775
        %2853 = vmatprep.subr.mxu0 0.0
        %2854 = vmatpush1.msra.mxu0 %v2776
        %2855 = vmatprep.subr.mxu0 0.0
        %2856 = vmatpush1.msra.mxu0 %v2777
        %2857 = vmatprep.subr.mxu0 0.0
        %2858 = vmatpush1.msra.mxu0 %v2778
        %2859 = vmatprep.mubr.f32.mxu0 %v2744
        %2860 = vmatmul.mubr.f32.gmra.mrb[0].mxu0 %v2738
        %v2861 = vpop.f32.mrb[0].mxu0
        %v2862 = vadd.f32 %v2789, %v2861
        %v2863 = vpop.f32.mrb[0].mxu0
        %2864 = vmatprep.mubr.f32.mxu0 %v2745
        %2865 = vmatmul.mubr.f32.gmra.mrb[0].mxu0 %v2739
        %v2866 = vpop.f32.mrb[0].mxu0
        %v2867 = vadd.f32 %v2789, %v2866
        %v2868 = vpop.f32.mrb[0].mxu0
        %2869 = vdwg.mxu0
        %2870 = vmatprep.subr.mxu0 0.0
        %2871 = vmatpush1.msra.mxu0 %v2779
        %2872 = vmatprep.subr.mxu0 0.0
        %2873 = vmatpush1.msra.mxu0 %v2780
        %2874 = vmatprep.subr.mxu0 0.0
        %2875 = vmatpush1.msra.mxu0 %v2781
        %2876 = vmatprep.subr.mxu0 0.0
        %2877 = vmatpush1.msra.mxu0 %v2782
        %2878 = vmatprep.subr.mxu0 0.0
        %2879 = vmatpush1.msra.mxu0 0.0
        %2880 = vmatprep.subr.mxu0 0.0
        %2881 = vmatpush1.msra.mxu0 0.0
        %2882 = vmatprep.subr.mxu0 0.0
        %2883 = vmatpush1.msra.mxu0 0.0
        %2884 = vmatprep.subr.mxu0 0.0
        %2885 = vmatpush1.msra.mxu0 0.0
        %2886 = vmatprep.subr.mxu0 0.0
        %2887 = vmatpush1.msra.mxu0 0.0
        %2888 = vmatprep.subr.mxu0 0.0
        %2889 = vmatpush1.msra.mxu0 0.0
        %2890 = vmatprep.subr.mxu0 0.0
        %2891 = vmatpush1.msra.mxu0 0.0
        %2892 = vmatprep.subr.mxu0 0.0
        %2893 = vmatpush1.msra.mxu0 0.0
        %2894 = vmatprep.subr.mxu0 0.0
        %2895 = vmatpush1.msra.mxu0 0.0
        %2896 = vmatprep.subr.mxu0 0.0
        %2897 = vmatpush1.msra.mxu0 0.0
        %2898 = vmatprep.subr.mxu0 0.0
        %2899 = vmatpush1.msra.mxu0 0.0
        %2900 = vmatprep.subr.mxu0 0.0
        %2901 = vmatpush1.msra.mxu0 0.0
        %2902 = vmatprep.subr.mxu0 0.0
        %2903 = vmatpush1.msra.mxu0 0.0
        %2904 = vmatprep.subr.mxu0 0.0
        %2905 = vmatpush1.msra.mxu0 0.0
        %2906 = vmatprep.subr.mxu0 0.0
        %2907 = vmatpush1.msra.mxu0 0.0
        %2908 = vmatprep.subr.mxu0 0.0
        %2909 = vmatpush1.msra.mxu0 0.0
        %2910 = vmatprep.subr.mxu0 0.0
        %2911 = vmatpush1.msra.mxu0 0.0
        %2912 = vmatprep.subr.mxu0 0.0
        %2913 = vmatpush1.msra.mxu0 0.0
        %2914 = vmatprep.subr.mxu0 0.0
        %2915 = vmatpush1.msra.mxu0 0.0
        %2916 = vmatprep.subr.mxu0 0.0
        %2917 = vmatpush1.msra.mxu0 0.0
        %2918 = vmatprep.subr.mxu0 0.0
        %2919 = vmatpush1.msra.mxu0 0.0
        %2920 = vmatprep.subr.mxu0 0.0
        %2921 = vmatpush1.msra.mxu0 0.0
        %2922 = vmatprep.subr.mxu0 0.0
        %2923 = vmatpush1.msra.mxu0 0.0
        %2924 = vmatprep.subr.mxu0 0.0
        %2925 = vmatpush1.msra.mxu0 0.0
        %2926 = vmatprep.subr.mxu0 0.0
        %2927 = vmatpush1.msra.mxu0 0.0
        %2928 = vmatprep.subr.mxu0 0.0
        %2929 = vmatpush1.msra.mxu0 0.0
        %2930 = vmatprep.subr.mxu0 0.0
        %2931 = vmatpush1.msra.mxu0 0.0
        %2932 = vmatprep.subr.mxu0 0.0
        %2933 = vmatpush1.msra.mxu0 0.0
        %2934 = vmatprep.mubr.f32.mxu0 0.0
        %2935 = vmatmul.mubr.f32.gmra.mrb[0].mxu0 %v2791
        %v2936 = vpop.f32.mrb[0].mxu0
        %v2937 = vadd.f32 %v2862, %v2936
        %v2938 = vpop.f32.mrb[0].mxu0
        %2939 = vmatprep.mubr.f32.mxu0 0.0
        %2940 = vmatmul.mubr.f32.gmra.mrb[0].mxu0 %v2793
        %v2941 = vpop.f32.mrb[0].mxu0
        %v2942 = vadd.f32 %v2867, %v2941
        %v2943 = vpop.f32.mrb[0].mxu0
        %2944 = vdwg.mxu0
        %v2945 = vmax.f32 %v2937, 0.0
        %v2946 = vmax.f32 %v2942, 0.0
        %s2947 = scalar_lea.vmem %s12, 64
        %v2948 = vld [vmem:[%s2947] sm:$0xff]
        %v2949 = vld [vmem:[%s2947 + $0x8] sm:$0xff]
        %v2950 = vld [vmem:[%s2947 + $0x10] sm:$0xff]
        %v2951 = vld [vmem:[%s2947 + $0x18] sm:$0xff]
        %v2952 = vld [vmem:[%s2947 + $0x20] sm:$0xff]
        %v2953 = vld [vmem:[%s2947 + $0x28] sm:$0xff]
        %v2954 = vld [vmem:[%s2947 + $0x30] sm:$0xff]
        %v2955 = vld [vmem:[%s2947 + $0x38] sm:$0xff]
        %s2956 = scalar_lea.vmem %s13, 1
        %v2957 = vld [vmem:[%s2956] sm:$0x1]
        %v2959 = vlaneseq
        %v2960 = vshrl.u32 %v2959, 7
        %v2961 = vsub.s32 0, %v2960
        %v2962 = vrot.slane %v2957, %v2961
        %v2965 = vsel %vm1446, %v2945, 0
        %v2968 = vsel %vm1446, %v2946, 0
        %2970 = vmatprep.subr.mxu0 0.0
        %2971 = vmatpush1.msra.mxu0 %v2948
        %2972 = vmatprep.subr.mxu0 0.0
        %2973 = vmatpush1.msra.mxu0 %v2949
        %2974 = vmatprep.subr.mxu0 0.0
        %2975 = vmatpush1.msra.mxu0 %v2950
        %2976 = vmatprep.subr.mxu0 0.0
        %2977 = vmatpush1.msra.mxu0 %v2951
        %2978 = vmatprep.subr.mxu0 0.0
        %2979 = vmatpush1.msra.mxu0 %v2952
        %2980 = vmatprep.subr.mxu0 0.0
        %2981 = vmatpush1.msra.mxu0 %v2953
        %2982 = vmatprep.subr.mxu0 0.0
        %2983 = vmatpush1.msra.mxu0 %v2954
        %2984 = vmatprep.subr.mxu0 0.0
        %2985 = vmatpush1.msra.mxu0 %v2955
        %2986 = vmatprep.subr.mxu0 0.0
        %2987 = vmatpush1.msra.mxu0 0.0
        %2988 = vmatprep.subr.mxu0 0.0
        %2989 = vmatpush1.msra.mxu0 0.0
        %2990 = vmatprep.subr.mxu0 0.0
        %2991 = vmatpush1.msra.mxu0 0.0
        %2992 = vmatprep.subr.mxu0 0.0
        %2993 = vmatpush1.msra.mxu0 0.0
        %2994 = vmatprep.subr.mxu0 0.0
        %2995 = vmatpush1.msra.mxu0 0.0
        %2996 = vmatprep.subr.mxu0 0.0
        %2997 = vmatpush1.msra.mxu0 0.0
        %2998 = vmatprep.subr.mxu0 0.0
        %2999 = vmatpush1.msra.mxu0 0.0
        %3000 = vmatprep.subr.mxu0 0.0
        %3001 = vmatpush1.msra.mxu0 0.0
        %3002 = vmatprep.subr.mxu0 0.0
        %3003 = vmatpush1.msra.mxu0 0.0
        %3004 = vmatprep.subr.mxu0 0.0
        %3005 = vmatpush1.msra.mxu0 0.0
        %3006 = vmatprep.subr.mxu0 0.0
        %3007 = vmatpush1.msra.mxu0 0.0
        %3008 = vmatprep.subr.mxu0 0.0
        %3009 = vmatpush1.msra.mxu0 0.0
        %3010 = vmatprep.subr.mxu0 0.0
        %3011 = vmatpush1.msra.mxu0 0.0
        %3012 = vmatprep.subr.mxu0 0.0
        %3013 = vmatpush1.msra.mxu0 0.0
        %3014 = vmatprep.subr.mxu0 0.0
        %3015 = vmatpush1.msra.mxu0 0.0
        %3016 = vmatprep.subr.mxu0 0.0
        %3017 = vmatpush1.msra.mxu0 0.0
        %3018 = vmatprep.subr.mxu0 0.0
        %3019 = vmatpush1.msra.mxu0 0.0
        %3020 = vmatprep.subr.mxu0 0.0
        %3021 = vmatpush1.msra.mxu0 0.0
        %3022 = vmatprep.subr.mxu0 0.0
        %3023 = vmatpush1.msra.mxu0 0.0
        %3024 = vmatprep.subr.mxu0 0.0
        %3025 = vmatpush1.msra.mxu0 0.0
        %3026 = vmatprep.subr.mxu0 0.0
        %3027 = vmatpush1.msra.mxu0 0.0
        %3028 = vmatprep.subr.mxu0 0.0
        %3029 = vmatpush1.msra.mxu0 0.0
        %3030 = vmatprep.subr.mxu0 0.0
        %3031 = vmatpush1.msra.mxu0 0.0
        %3032 = vmatprep.subr.mxu0 0.0
        %3033 = vmatpush1.msra.mxu0 0.0
        %3034 = vmatprep.mubr.f32.mxu0 0.0
        %3035 = vmatmul.mubr.f32.gmra.mrb[0].mxu0 %v2965
        %v3036 = vpop.f32.mrb[0].mxu0
        %v3037 = vadd.f32 %v2962, %v3036
        %v3038 = vpop.f32.mrb[0].mxu0
        %3039 = vmatprep.mubr.f32.mxu0 0.0
        %3040 = vmatmul.mubr.f32.gmra.mrb[0].mxu0 %v2968
        %v3041 = vpop.f32.mrb[0].mxu0
        %v3042 = vadd.f32 %v2962, %v3041
        %v3043 = vpop.f32.mrb[0].mxu0
        %3044 = vdwg.mxu0
        %v3045 = vadd.f32 %v3037, %v2647
        %v3046 = vadd.f32 %v3042, %v2648
        %s3047 = scalar_lea.vmem %s14, 256
        %v3048 = vld [vmem:[%s3047] sm:$0xff]
        %v3049 = vld [vmem:[%s3047 + $0x8] sm:$0xff]
        %v3050 = vld [vmem:[%s3047 + $0x10] sm:$0xff]
        %v3051 = vld [vmem:[%s3047 + $0x18] sm:$0xff]
        %v3052 = vld [vmem:[%s3047 + $0x20] sm:$0xff]
        %v3053 = vld [vmem:[%s3047 + $0x28] sm:$0xff]
        %v3054 = vld [vmem:[%s3047 + $0x30] sm:$0xff]
        %v3055 = vld [vmem:[%s3047 + $0x38] sm:$0xff]
        %v3056 = vld [vmem:[%s3047 + $0x40] sm:$0xff]
        %v3057 = vld [vmem:[%s3047 + $0x48] sm:$0xff]
        %v3058 = vld [vmem:[%s3047 + $0x50] sm:$0xff]
        %v3059 = vld [vmem:[%s3047 + $0x58] sm:$0xff]
        %v3060 = vld [vmem:[%s3047 + $0x60] sm:$0xff]
        %v3061 = vld [vmem:[%s3047 + $0x68] sm:$0xff]
        %v3062 = vld [vmem:[%s3047 + $0x70] sm:$0xff]
        %v3063 = vld [vmem:[%s3047 + $0x78] sm:$0xff]
        %v3064 = vld [vmem:[%s3047 + $0x80] sm:$0xff]
        %v3065 = vld [vmem:[%s3047 + $0x88] sm:$0xff]
        %v3066 = vld [vmem:[%s3047 + $0x90] sm:$0xff]
        %v3067 = vld [vmem:[%s3047 + $0x98] sm:$0xff]
        %v3068 = vld [vmem:[%s3047 + $0xa0] sm:$0xff]
        %v3069 = vld [vmem:[%s3047 + $0xa8] sm:$0xff]
        %v3070 = vld [vmem:[%s3047 + $0xb0] sm:$0xff]
        %v3071 = vld [vmem:[%s3047 + $0xb8] sm:$0xff]
        %v3072 = vld [vmem:[%s3047 + $0xc0] sm:$0xff]
        %v3073 = vld [vmem:[%s3047 + $0xc8] sm:$0xff]
        %v3074 = vld [vmem:[%s3047 + $0xd0] sm:$0xff]
        %v3075 = vld [vmem:[%s3047 + $0xd8] sm:$0xff]
        %v3076 = vld [vmem:[%s3047 + $0xe0] sm:$0xff]
        %v3077 = vld [vmem:[%s3047 + $0xe8] sm:$0xff]
        %v3078 = vld [vmem:[%s3047 + $0xf0] sm:$0xff]
        %v3079 = vld [vmem:[%s3047 + $0xf8] sm:$0xff]
        %s3080 = scalar_lea.vmem %s15, 1
        %v3081 = vld [vmem:[%s3080] sm:$0x1]
        %3082 = vmatprep.subr.mxu0 0.0
        %3083 = vmatpush1.msra.mxu0 %v3048
        %3084 = vmatprep.subr.mxu0 0.0
        %3085 = vmatpush1.msra.mxu0 %v3049
        %3086 = vmatprep.subr.mxu0 0.0
        %3087 = vmatpush1.msra.mxu0 %v3050
        %3088 = vmatprep.subr.mxu0 0.0
        %3089 = vmatpush1.msra.mxu0 %v3051
        %3090 = vmatprep.subr.mxu0 0.0
        %3091 = vmatpush1.msra.mxu0 %v3052
        %3092 = vmatprep.subr.mxu0 0.0
        %3093 = vmatpush1.msra.mxu0 %v3053
        %3094 = vmatprep.subr.mxu0 0.0
        %3095 = vmatpush1.msra.mxu0 %v3054
        %3096 = vmatprep.subr.mxu0 0.0
        %3097 = vmatpush1.msra.mxu0 %v3055
        %3098 = vmatprep.subr.mxu0 0.0
        %3099 = vmatpush1.msra.mxu0 %v3056
        %3100 = vmatprep.subr.mxu0 0.0
        %3101 = vmatpush1.msra.mxu0 %v3057
        %3102 = vmatprep.subr.mxu0 0.0
        %3103 = vmatpush1.msra.mxu0 %v3058
        %3104 = vmatprep.subr.mxu0 0.0
        %3105 = vmatpush1.msra.mxu0 %v3059
        %3106 = vmatprep.subr.mxu0 0.0
        %3107 = vmatpush1.msra.mxu0 %v3060
        %3108 = vmatprep.subr.mxu0 0.0
        %3109 = vmatpush1.msra.mxu0 %v3061
        %3110 = vmatprep.subr.mxu0 0.0
        %3111 = vmatpush1.msra.mxu0 %v3062
        %3112 = vmatprep.subr.mxu0 0.0
        %3113 = vmatpush1.msra.mxu0 %v3063
        %3114 = vmatprep.subr.mxu0 0.0
        %3115 = vmatpush1.msra.mxu0 %v3064
        %3116 = vmatprep.subr.mxu0 0.0
        %3117 = vmatpush1.msra.mxu0 %v3065
        %3118 = vmatprep.subr.mxu0 0.0
        %3119 = vmatpush1.msra.mxu0 %v3066
        %3120 = vmatprep.subr.mxu0 0.0
        %3121 = vmatpush1.msra.mxu0 %v3067
        %3122 = vmatprep.subr.mxu0 0.0
        %3123 = vmatpush1.msra.mxu0 %v3068
        %3124 = vmatprep.subr.mxu0 0.0
        %3125 = vmatpush1.msra.mxu0 %v3069
        %3126 = vmatprep.subr.mxu0 0.0
        %3127 = vmatpush1.msra.mxu0 %v3070
        %3128 = vmatprep.subr.mxu0 0.0
        %3129 = vmatpush1.msra.mxu0 %v3071
        %3130 = vmatprep.subr.mxu0 0.0
        %3131 = vmatpush1.msra.mxu0 %v3072
        %3132 = vmatprep.subr.mxu0 0.0
        %3133 = vmatpush1.msra.mxu0 %v3073
        %3134 = vmatprep.subr.mxu0 0.0
        %3135 = vmatpush1.msra.mxu0 %v3074
        %3136 = vmatprep.subr.mxu0 0.0
        %3137 = vmatpush1.msra.mxu0 %v3075
        %3138 = vmatprep.subr.mxu0 0.0
        %3139 = vmatpush1.msra.mxu0 %v3076
        %3140 = vmatprep.subr.mxu0 0.0
        %3141 = vmatpush1.msra.mxu0 %v3077
        %3142 = vmatprep.subr.mxu0 0.0
        %3143 = vmatpush1.msra.mxu0 %v3078
        %3144 = vmatprep.subr.mxu0 0.0
        %3145 = vmatpush1.msra.mxu0 %v3079
        %3146 = vmatprep.mubr.f32.mxu0 %v1228
        %3147 = vmatmul.mubr.f32.gmra.mrb[0].mxu0 %v1224
        %v3148 = vpop.f32.mrb[0].mxu0
        %v3149 = vadd.f32 %v3081, %v3148
        %v3150 = vpop.f32.mrb[0].mxu0
        %3151 = vdwg.mxu0
        %v3152 = vsel %vm588, %v3045, 0.0
        %3153 = vadd.xlane.f32.xlu0 %v3152
        %v3154 = vpop.xlane.xlu0 %3153
        %v3155 = vsel %vm588, %v3046, 0.0
        %3156 = vadd.xlane.f32.xlu0 %v3155
        %v3157 = vpop.xlane.xlu0 %3156
        %v3158 = vmul.f32 %v3154, %v1307
        %v3159 = vmul.f32 %v3157, %v1307
        %v3160 = vsub.f32 %v3045, %v3158
        %v3161 = vsub.f32 %v3046, %v3159
        %v3162 = vmul.f32 %v3160, %v3160
        %v3163 = vmul.f32 %v3161, %v3161
        %v3164 = vsel %vm588, %v3162, 0.0
        %3165 = vadd.xlane.f32.xlu0 %v3164
        %v3166 = vpop.xlane.xlu0 %3165
        %v3167 = vsel %vm588, %v3163, 0.0
        %3168 = vadd.xlane.f32.xlu0 %v3167
        %v3169 = vpop.xlane.xlu0 %3168
        %v3170 = vmul.f32 %v3166, %v1307
        %v3171 = vmul.f32 %v3169, %v1307
        %v3172 = vadd.f32 %v3170, 1e-05
        %v3173 = vadd.f32 %v3171, 1e-05
        %v3174 = vrsqrt.pop %v3172
        %v3175 = vrsqrt.pop %v3173
        %v3176 = vmul.f32 %v3160, %v3174
        %v3177 = vmul.f32 %v3161, %v3175
        %v3178 = vlaneseq
        %v3179 = vshrl.u32 %v3178, 7
        %v3180 = vsub.s32 0, %v3179
        %v3181 = vrot.slane %v3149, %v3180
        %v3182 = vmul.f32 %v3181, %v3176
        %v3183 = vmul.f32 %v3181, %v3177
        %3185 = vrot.lane.b32.xlu0 %v3181, 96
        %v3186 = vpop.permute.xlu0 %3185
        %v3188 = vadd.f32 %v3182, %v3186
        %v3189 = vadd.f32 %v3183, %v3186
        %v3190 = vmul.f32 %v3188, %v1343
        %v3191 = vmul.f32 %v3189, %v1348
        %3192 = vst.msk [vmem:[%s553] sm:$0xff] %vm588, %v3190
        %3193 = vst.msk [vmem:[%s553 + $0x8] sm:$0xff] %vm588, %v3191
        %s3194 = sand.u32 %s394, 1
        %s3195 = scalar_lea.sflag [#allocation3], %s3194
        %s3196 = sand.u32 %s394, 1
        %s3197 = smul.addr %s3196, 16
        %s3198 = scalar_lea.vmem [#allocation2], %s3197
        // Predicated region
        $region85: #{decoder_condition_forward.1} parent=83 // pred_check
          %p3199 = pneg %p404
        $region86: #{decoder_condition_forward.1} parent=83 // pred_check_branch
          %3201 = sbr.rel (%p3199) target = $region88
        $region87: #{decoder_condition_forward.1} parent=83 // pred_region
          %s3203 = ssub.s32 256, 256
          %3204 = vsyncadd %s3195, %s3203
          %s3205 = smul.addr %s30, 2
          %s3206 = smul.addr %s3205, 128
          %s3207 = scalar_lea.hbm %s16, %s3206
          %s3208 = sshll.u32 %s3198, 4
          %s3209 = int_to_ptr.vmem [resolvable:$true] %s3208
          %3214 = dma.vmem_to_hbm [thread:$0]  %s3209, 256, %s3207, %s3195, 128, 128, 8
        $region88: #{decoder_condition_forward.1} parent=83 // pred_fallthru
          _
      $region84: #{decoder_condition_forward.1} parent=5 // pred_fallthru
        _
      %p3215 = scmp.le.s32.totalorder 2, %s25
      // Predicated region
      $region89: #{decoder_condition_forward.1} parent=5 // pred_check
        %p3216 = pneg %p3215
      $region90: #{decoder_condition_forward.1} parent=5 // pred_check_branch
        %3218 = sbr.rel (%p3216) target = $region92
      $region91: #{decoder_condition_forward.1} parent=5 // pred_region
        %s3219 = ssub.s32 %s25, 2
        // Predicated region
        $region93: #{decoder_condition_forward.1} parent=91 // pred_check
          %p3220 = pneg %p410
        $region94: #{decoder_condition_forward.1} parent=91 // pred_check_branch
          %3222 = sbr.rel (%p3220) target = $region96
        $region95: #{decoder_condition_forward.1} parent=91 // pred_region
          %s3223 = sand.u32 %s395, 1
          %s3224 = scalar_lea.sflag [#allocation3], %s3223
          %s3225 = sand.u32 %s395, 1
          %s3226 = smul.addr %s3225, 16
          %s3227 = scalar_lea.vmem [#allocation2], %s3226
          %3228 = dma.done %s3224, 256
        $region96: #{decoder_condition_forward.1} parent=91 // pred_fallthru
          _
      $region92: #{decoder_condition_forward.1} parent=5 // pred_fallthru
        _
    $region6: #{decoder_condition_forward.1} parent=1 // loop_footer
      %s29 = sadd.s32 1, %s25
    $region7: #{decoder_condition_forward.1} parent=1 // loop_footer_branch
      %24 = sbr.rel target = $region3
    $region8: #{decoder_condition_forward.1} parent=1 // loop_exit
      _
    %3229 = vsyncpa [#allocation3], 1
    %s3230 = scalar_lea.sflag [#allocation3], 1
    %3231 = vsyncpa %s3230, 1

</llo_original>
